<compile_context>
chip_gen: v7x
topology: tpu7x:2x2x1
jax: 0.10.0
libtpu: 0.0.40
codegen_flags: <defaults>
</compile_context>

<pallas_src>
import functools

import jax
import jax.numpy as jnp
from jax.experimental import pallas as pl
from jax.experimental.pallas import tpu as pltpu

_MIB = 1024 * 1024


def _round_up(x: int, m: int) -> int:
    return ((x + m - 1) // m) * m


def _tpu_vmem_capacity_bytes() -> int:
    try:
        return int(pltpu.get_tpu_info().vmem_capacity_bytes)
    except Exception:
        return 64 * _MIB  # conservative fallback (v7x-like per-core VMEM)


_VMEM_CAP = _tpu_vmem_capacity_bytes()
# Scoped-VMEM limit with headroom: 48 MiB on 64 MiB cores (v7x),
# 112 MiB on 128 MiB cores (v5e/v6e).
_VMEM_LIMIT_BYTES = max(32 * _MIB, min(_VMEM_CAP - 16 * _MIB, 112 * _MIB))
_IS_SMALL_VMEM = _VMEM_CAP <= 64 * _MIB        # v7x-like: 2 TCs, 64 MiB each
_RESIDENT_X_BUDGET = 16 * _MIB if _IS_SMALL_VMEM else 40 * _MIB
_FUSED_VMEM_BUDGET = int(_VMEM_LIMIT_BYTES * 0.75)


def _full(shape):
    # Full-array block (single grid step).
    return pl.BlockSpec(shape, lambda i: (0,) * len(shape))


def _choose_tiles(n: int):
    """Pad N minimally and pick the largest 128-multiple tile (<=1024) that
    divides the padded N exactly (no grid over-padding of the K dim)."""
    align = 512 if n >= 4096 else 128
    n_p = _round_up(n, align)
    tile = 128
    for cand in range(128, min(1024, n_p) + 1, 128):
        if n_p % cand == 0:
            tile = cand
    return n_p, tile, tile


# ---------------------------------------------------------------------------
# Tiled per-layer kernel: grid = (row tiles [parallel], K tiles [arbitrary]).
# ---------------------------------------------------------------------------
def _gcn_layer_kernel(a_ref, x_ref, w_ref, b_ref, g_ref, beta_ref, o_ref,
                      acc_ref, *, apply_norm_relu: bool, x_resident: bool,
                      tk: int):
    k = pl.program_id(1)

    @pl.when(k == 0)
    def _():
        acc_ref[...] = jnp.zeros_like(acc_ref)

    # K-loop body is MXU-only: accumulate A_hat(tile) @ X(tile) in f32 scratch.
    if x_resident:
        start = pl.multiple_of(k * tk, 128)
        x_blk = x_ref[pl.ds(start, tk), :]
    else:
        x_blk = x_ref[...]
    acc_ref[...] += jnp.dot(a_ref[...], x_blk,
                            preferred_element_type=jnp.float32)

    # Epilogue (linear + bias + LN + ReLU) only on the final K step.
    @pl.when(k == pl.num_programs(1) - 1)
    def _():
        # bf16 x bf16 MXU matmul with f32 accumulation (W pre-cast to bf16).
        h = jnp.dot(acc_ref[...].astype(jnp.bfloat16), w_ref[...],
                    preferred_element_type=jnp.float32) + b_ref[...]
        if apply_norm_relu:
            # LayerNorm over feature dim (biased variance, eps=1e-5) in f32.
            mean = jnp.mean(h, axis=-1, keepdims=True)
            centered = h - mean
            var = jnp.mean(centered * centered, axis=-1, keepdims=True)
            h = centered * jax.lax.rsqrt(var + 1e-5) * g_ref[...] + beta_ref[...]
            h = jnp.maximum(h, 0.0)
        o_ref[...] = h.astype(o_ref.dtype)


def gcn_layer(a_p, x_p, w, b, gamma, beta, *, apply_norm_relu: bool,
              tm: int, tk: int):
    """One DistGCNConv (+ optional LayerNorm/ReLU) as a tiled Pallas kernel.

    a_p: (N_p, N_p) bf16 padded normalized adjacency (padded ONCE in wrapper).
    x_p: (N_p, F_in) bf16 padded features / activations.
    Returns (N_p, F_out_p); bf16 for hidden layers, f32 for the final layer.
    """
    n_p = a_p.shape[0]
    f_in = x_p.shape[1]
    f_out = w.shape[1]

    # Lane-dense output for the final layer: pad F_out up to a multiple of 128
    # (padding columns of W/b are zero and sliced off outside).  Hidden layers
    # keep their true width so LayerNorm reduces over the real feature dim.
    f_out_p = f_out if apply_norm_relu else _round_up(f_out, 128)

    w_p = jnp.pad(w, ((0, 0), (0, f_out_p - f_out))).astype(jnp.bfloat16)
    b2 = jnp.pad(b, (0, f_out_p - f_out)).reshape(1, f_out_p)
    g2 = jnp.pad(gamma, (0, f_out_p - f_out)).reshape(1, f_out_p)
    beta2 = jnp.pad(beta, (0, f_out_p - f_out)).reshape(1, f_out_p)

    out_dtype = jnp.bfloat16 if apply_norm_relu else jnp.float32
    grid = (n_p // tm, n_p // tk)

    # Keep X fully VMEM-resident when it fits (eliminates per-row-tile
    # re-reads of X); otherwise stream it per K tile.
    x_resident = (n_p * f_in * 2) <= _RESIDENT_X_BUDGET
    if x_resident:
        x_spec = pl.BlockSpec((n_p, f_in), lambda i, k: (0, 0))
    else:
        x_spec = pl.BlockSpec((tk, f_in), lambda i, k: (k, 0))
    x_reads = 1 if x_resident else grid[0]

    cost = pl.CostEstimate(
        flops=2 * n_p * n_p * f_in + 2 * n_p * f_in * f_out_p,
        transcendentals=n_p if apply_norm_relu else 0,
        bytes_accessed=int(a_p.size * 2 + x_reads * x_p.size * 2
                           + w_p.size * 2 + 3 * f_out_p * 4
                           + n_p * f_out_p * jnp.dtype(out_dtype).itemsize),
    )

    return pl.pallas_call(
        functools.partial(_gcn_layer_kernel, apply_norm_relu=apply_norm_relu,
                          x_resident=x_resident, tk=tk),
        out_shape=jax.ShapeDtypeStruct((n_p, f_out_p), out_dtype),
        grid=grid,
        in_specs=[
            pl.BlockSpec((tm, tk), lambda i, k: (i, k)),          # A_hat tile
            x_spec,                                               # X (resident or per-k)
            pl.BlockSpec((f_in, f_out_p), lambda i, k: (0, 0)),   # W (resident, bf16)
            pl.BlockSpec((1, f_out_p), lambda i, k: (0, 0)),      # bias
            pl.BlockSpec((1, f_out_p), lambda i, k: (0, 0)),      # gamma
            pl.BlockSpec((1, f_out_p), lambda i, k: (0, 0)),      # beta
        ],
        out_specs=pl.BlockSpec((tm, f_out_p), lambda i, k: (i, 0)),
        scratch_shapes=[pltpu.VMEM((tm, f_in), jnp.float32)],     # A_hat@X acc
        compiler_params=pltpu.CompilerParams(
            dimension_semantics=("parallel", "arbitrary"),
            vmem_limit_bytes=_VMEM_LIMIT_BYTES),
        cost_estimate=cost,
    )(a_p, x_p, w_p, b2, g2, beta2)


# ---------------------------------------------------------------------------
# Fused all-layers kernel for small graphs: A_hat + weights stay in VMEM.
# (Auto-selected only on single-TensorCore generations; v7x goes tiled.)
# ---------------------------------------------------------------------------
def _fused_gcn_kernel(*refs, num_layers: int):
    a = refs[0][...]                 # bf16 adjacency, resident across layers
    h = refs[1][...]                 # bf16 input features
    o_ref = refs[-1]
    for li in range(num_layers):
        w_ref, b_ref, g_ref, be_ref = refs[2 + 4 * li: 2 + 4 * (li + 1)]
        agg = jnp.dot(a, h.astype(jnp.bfloat16),
                      preferred_element_type=jnp.float32)
        h = jnp.dot(agg.astype(jnp.bfloat16), w_ref[...],
                    preferred_element_type=jnp.float32) + b_ref[...]
        if li < num_layers - 1:
            mean = jnp.mean(h, axis=-1, keepdims=True)
            centered = h - mean
            var = jnp.mean(centered * centered, axis=-1, keepdims=True)
            h = centered * jax.lax.rsqrt(var + 1e-5) * g_ref[...] + be_ref[...]
            h = jnp.maximum(h, 0.0)
    o_ref[...] = h.astype(o_ref.dtype)


def dist_gcn_fused(a_p, x_p, params):
    n_p = a_p.shape[0]
    num_layers = len(params)
    f_out = params[-1][0].shape[1]
    f_out_p = _round_up(f_out, 128)          # lane-dense logits

    inputs = [a_p, x_p]
    in_specs = [_full(a_p.shape), _full(x_p.shape)]
    flops = 0
    for li, (w, b, g, be) in enumerate(params):
        fo = w.shape[1]
        flops += 2 * n_p * n_p * w.shape[0] + 2 * n_p * w.shape[0] * fo
        if li == num_layers - 1 and f_out_p != fo:
            w = jnp.pad(w, ((0, 0), (0, f_out_p - fo)))
            b = jnp.pad(b, (0, f_out_p - fo))
            g = jnp.pad(g, (0, f_out_p - fo))
            be = jnp.pad(be, (0, f_out_p - fo))
            fo = f_out_p
        w = w.astype(jnp.bfloat16)           # bf16 MXU path for the W matmul
        inputs += [w, b.reshape(1, fo), g.reshape(1, fo), be.reshape(1, fo)]
        in_specs += [_full(w.shape), _full((1, fo)), _full((1, fo)),
                     _full((1, fo))]

    cost = pl.CostEstimate(
        flops=flops, transcendentals=n_p * (num_layers - 1),
        bytes_accessed=int(a_p.size * 2 + x_p.size * 2 + n_p * f_out_p * 4
                           + sum(w.size * 2 for (w, *_) in params)))

    out = pl.pallas_call(
        functools.partial(_fused_gcn_kernel, num_layers=num_layers),
        out_shape=jax.ShapeDtypeStruct((n_p, f_out_p), jnp.float32),
        grid=(1,),
        in_specs=in_specs,
        out_specs=_full((n_p, f_out_p)),
        compiler_params=pltpu.CompilerParams(
            dimension_semantics=("arbitrary",),
            vmem_limit_bytes=_VMEM_LIMIT_BYTES),
        cost_estimate=cost,
    )(*inputs)
    return out


def _fused_fits_vmem(n_p, f_in, params, budget_bytes):
    # Conservative accounting of live buffers inside the fused kernel.
    max_f = max([f_in, 128] + [w.shape[1] for (w, *_) in params])
    adj = n_p * n_p * 2                               # bf16 adjacency
    xin = n_p * f_in * 2                              # bf16 features
    act = 6 * n_p * max_f * 4                         # live f32 intermediates
    wts = sum(w.size * 2 + 3 * w.shape[1] * 4 for (w, *_) in params)
    out = n_p * _round_up(params[-1][0].shape[1], 128) * 4
    return adj + xin + act + wts + out <= budget_bytes


# ---------------------------------------------------------------------------
# Model wrapper.
# ---------------------------------------------------------------------------
def dist_gcn_forward(a_hat, feats, params, *, fuse=None):
    # eval mode: dropout is identity; hidden layers get LayerNorm + ReLU.
    n = a_hat.shape[0]
    f_out = params[-1][0].shape[1]
    n_p, tm, tk = _choose_tiles(n)

    # Pad + cast A_hat (and X) exactly ONCE; reuse the padded bf16 adjacency
    # for every layer.  Padded rows/cols are zero so real rows are unaffected.
    a_p = jnp.pad(a_hat, ((0, n_p - n), (0, n_p - n))).astype(jnp.bfloat16)
    h = jnp.pad(feats, ((0, n_p - n), (0, 0))).astype(jnp.bfloat16)

    if fuse is None:
        # v7x-like chips (2 TCs, small VMEM) prefer the tiled path: its
        # "parallel" row axis gets sharded across TensorCores; the grid=(1,)
        # fused path would leave one core idle there.
        fuse = (not _IS_SMALL_VMEM) and _fused_fits_vmem(
            n_p, feats.shape[1], params, _FUSED_VMEM_BUDGET)

    if fuse:
        out = dist_gcn_fused(a_p, h, params)
        return out[:n, :f_out]

    for (w, b, gamma, beta) in params[:-1]:
        h = gcn_layer(a_p, h, w, b, gamma, beta, apply_norm_relu=True,
                      tm=tm, tk=tk)
    w, b, gamma, beta = params[-1]
    out = gcn_layer(a_p, h, w, b, gamma, beta, apply_norm_relu=False,
                    tm=tm, tk=tk)
    return out[:n, :f_out]


# ---------------------------------------------------------------------------
# Parameter / input construction helpers.
# ---------------------------------------------------------------------------
def xavier_uniform(key, fan_in, fan_out):
    limit = jnp.sqrt(6.0 / (fan_in + fan_out))
    return jax.random.uniform(key, (fan_in, fan_out), jnp.float32, -limit, limit)


def make_dist_gcn_params(key, in_feats, h_feats, num_classes, num_layers):
    dims = [in_feats] + [h_feats] * (num_layers - 1) + [num_classes]
    params = []
    keys = jax.random.split(key, num_layers)
    for i in range(num_layers):
        f_in, f_out = dims[i], dims[i + 1]
        w = xavier_uniform(keys[i], f_in, f_out)
        b = jnp.zeros((f_out,), jnp.float32)
        gamma = jnp.ones((f_out,), jnp.float32)   # LayerNorm weight
        beta = jnp.zeros((f_out,), jnp.float32)   # LayerNorm bias
        params.append((w, b, gamma, beta))
    return params


def make_normalized_adjacency(n):
    # deterministic ring graph + self loops, symmetric normalization
    idx = jnp.arange(n)
    adj = jnp.zeros((n, n), jnp.float32)
    adj = adj.at[idx, (idx + 1) % n].set(1.0)
    adj = adj.at[(idx + 1) % n, idx].set(1.0)
    adj = adj + jnp.eye(n, dtype=jnp.float32)
    deg = jnp.sum(adj, axis=1)
    d_inv_sqrt = 1.0 / jnp.sqrt(deg)
    return adj * d_inv_sqrt[:, None] * d_inv_sqrt[None, :]


def reference_forward(a, x, params):
    # Pure-JAX f32 reference (eval-mode semantics).
    h = x
    for i, (w, b, g, be) in enumerate(params):
        h = (a @ h) @ w + b
        if i < len(params) - 1:
            mean = jnp.mean(h, axis=-1, keepdims=True)
            var = jnp.mean((h - mean) ** 2, axis=-1, keepdims=True)
            h = (h - mean) * jax.lax.rsqrt(var + 1e-5) * g + be
            h = jnp.maximum(h, 0.0)
    return h


if __name__ == "__main__":
    key = jax.random.PRNGKey(0)
    k_feat, k_param = jax.random.split(key)

    N = 640            # graph nodes (exercises padding-free 640-wide tiles)
    IN_FEATS = 128     # lane-dense feature widths (multiples of 128)
    H_FEATS = 128
    NUM_CLASSES = 16   # padded to 128 inside the kernel, sliced outside
    NUM_LAYERS = 3
    DROP_RATE = 0.5    # unused in eval mode

    feats = jax.random.normal(k_feat, (N, IN_FEATS), jnp.float32)
    a_hat = make_normalized_adjacency(N)
    params = make_dist_gcn_params(k_param, IN_FEATS, H_FEATS, NUM_CLASSES,
                                  NUM_LAYERS)

    # Tiled multi-call path (general, scales to large N; v7x default).
    out_tiled = jax.block_until_ready(
        dist_gcn_forward(a_hat, feats, params, fuse=False))
    # Fused single-call path (small graphs, single-TC generations).
    out_fused = jax.block_until_ready(
        dist_gcn_forward(a_hat, feats, params, fuse=True))

    ref = reference_forward(a_hat, feats, params)

    assert out_tiled.shape == (N, NUM_CLASSES), out_tiled.shape
    assert out_fused.shape == (N, NUM_CLASSES), out_fused.shape
    assert jnp.all(jnp.isfinite(out_tiled))
    assert jnp.all(jnp.isfinite(out_fused))
    assert jnp.allclose(out_tiled, out_fused, rtol=5e-2, atol=5e-2), float(
        jnp.max(jnp.abs(out_tiled - out_fused)))
    assert jnp.allclose(out_tiled, ref, rtol=1e-1, atol=1e-1), float(
        jnp.max(jnp.abs(out_tiled - ref)))
    print("KERNEL_OK")
</pallas_src>

<mosaic_0001>
module attributes {stable_mosaic.version = 11 : i64} {
  func.func @_gcn_layer_kernel(%arg0: i32, %arg1: i32, %arg2: memref<640x640xbf16, #tpu.memory_space<vmem>>, %arg3: memref<640x128xbf16, #tpu.memory_space<vmem>>, %arg4: memref<128x128xbf16, #tpu.memory_space<vmem>>, %arg5: memref<1x128xf32, #tpu.memory_space<vmem>>, %arg6: memref<1x128xf32, #tpu.memory_space<vmem>>, %arg7: memref<1x128xf32, #tpu.memory_space<vmem>>, %arg8: memref<640x128xbf16, #tpu.memory_space<vmem>>, %arg9: memref<640x128xf32, #tpu.memory_space<vmem>>) attributes {dimension_semantics = [#tpu.dimension_semantics<parallel>, #tpu.dimension_semantics<arbitrary>], iteration_bounds = array<i64: 1, 1>, scalar_prefetch = 0 : i64, scratch_operands = 1 : i64, tpu.core_type = #tpu.core_type<tc>, window_params = [{transform_indices = @transform_0, window_bounds = array<i64: 640, 640>}, {pipeline_mode = #tpu.pipeline_mode<synchronous>, transform_indices = @transform_1, window_bounds = array<i64: 640, 128>}, {pipeline_mode = #tpu.pipeline_mode<synchronous>, transform_indices = @transform_2, window_bounds = array<i64: 128, 128>}, {pipeline_mode = #tpu.pipeline_mode<synchronous>, transform_indices = @transform_3, window_bounds = array<i64: 1, 128>}, {pipeline_mode = #tpu.pipeline_mode<synchronous>, transform_indices = @transform_4, window_bounds = array<i64: 1, 128>}, {pipeline_mode = #tpu.pipeline_mode<synchronous>, transform_indices = @transform_5, window_bounds = array<i64: 1, 128>}, {transform_indices = @transform_6, window_bounds = array<i64: 640, 128>}]} {
    %c0_i32 = arith.constant 0 : i32
    %0 = arith.cmpi eq, %arg1, %c0_i32 : i32
    %1 = arith.extui %0 : i1 to i32
    %c0_i32_0 = arith.constant 0 : i32
    %2 = arith.cmpi ne, %1, %c0_i32_0 : i32
    scf.if %2 {
      %cst_9 = arith.constant 0.000000e+00 : f32
      %15 = vector.broadcast %cst_9 : f32 to vector<640x128xf32>
      %c0_10 = arith.constant 0 : index
      %c0_11 = arith.constant 0 : index
      %16 = vector.load %arg9[%c0_10, %c0_11] : memref<640x128xf32, #tpu.memory_space<vmem>>, vector<640x128xf32>
      tpu.vector_store %arg9[%c0_10, %c0_11], %15 {strides = array<i32>} : memref<640x128xf32, #tpu.memory_space<vmem>>, vector<640x128xf32>,
    } else {
    }
    %c640_i32 = arith.constant 640 : i32
    %3 = arith.muli %arg1, %c640_i32 : i32
    %4 = tpu.assume_multiple %3, 128 : i32
    %5 = arith.index_cast %4 : i32 to index
    %c0 = arith.constant 0 : index
    %6 = vector.load %arg3[%5, %c0] : memref<640x128xbf16, #tpu.memory_space<vmem>>, vector<640x128xbf16>
    %c0_1 = arith.constant 0 : index
    %c0_2 = arith.constant 0 : index
    %7 = vector.load %arg9[%c0_1, %c0_2] : memref<640x128xf32, #tpu.memory_space<vmem>>, vector<640x128xf32>
    %c0_3 = arith.constant 0 : index
    %c0_4 = arith.constant 0 : index
    %8 = vector.load %arg2[%c0_3, %c0_4] : memref<640x640xbf16, #tpu.memory_space<vmem>>, vector<640x640xbf16>
    %cst = arith.constant dense<0.000000e+00> : vector<640x128xf32>
    %9 = tpu.matmul %8, %6, %cst {dimension_numbers = #tpu.dot_dimension_numbers<[1], [0], [0], [1], [0, 0, 1, 1], [], []>} : vector<640x640xbf16>, vector<640x128xbf16>, vector<640x128xf32> -> vector<640x128xf32>
    %10 = arith.addf %7, %9 : vector<640x128xf32>
    %c0_5 = arith.constant 0 : index
    %c0_6 = arith.constant 0 : index
    %11 = vector.load %arg9[%c0_5, %c0_6] : memref<640x128xf32, #tpu.memory_space<vmem>>, vector<640x128xf32>
    tpu.vector_store %arg9[%c0_5, %c0_6], %10 {strides = array<i32>} : memref<640x128xf32, #tpu.memory_space<vmem>>, vector<640x128xf32>,
    %c0_i32_7 = arith.constant 0 : i32
    %12 = arith.cmpi eq, %arg1, %c0_i32_7 : i32
    %13 = arith.extui %12 : i1 to i32
    %c0_i32_8 = arith.constant 0 : i32
    %14 = arith.cmpi ne, %13, %c0_i32_8 : i32
    scf.if %14 {
      %c0_9 = arith.constant 0 : index
      %c0_10 = arith.constant 0 : index
      %15 = vector.load %arg9[%c0_9, %c0_10] : memref<640x128xf32, #tpu.memory_space<vmem>>, vector<640x128xf32>
      %16 = arith.truncf %15 : vector<640x128xf32> to vector<640x128xbf16>
      %c0_11 = arith.constant 0 : index
      %c0_12 = arith.constant 0 : index
      %17 = vector.load %arg4[%c0_11, %c0_12] : memref<128x128xbf16, #tpu.memory_space<vmem>>, vector<128x128xbf16>
      %cst_13 = arith.constant dense<0.000000e+00> : vector<640x128xf32>
      %18 = tpu.matmul %16, %17, %cst_13 {dimension_numbers = #tpu.dot_dimension_numbers<[1], [0], [0], [1], [0, 0, 1, 1], [], []>} : vector<640x128xbf16>, vector<128x128xbf16>, vector<640x128xf32> -> vector<640x128xf32>
      %c0_14 = arith.constant 0 : index
      %c0_15 = arith.constant 0 : index
      %19 = vector.load %arg5[%c0_14, %c0_15] : memref<1x128xf32, #tpu.memory_space<vmem>>, vector<1x128xf32>
      %20 = vector.broadcast %19 : vector<1x128xf32> to vector<640x128xf32>
      %21 = arith.addf %18, %20 : vector<640x128xf32>
      %cst_16 = arith.constant dense<0.000000e+00> : vector<640xf32>
      %22 = vector.multi_reduction <add>, %21, %cst_16 [1] : vector<640x128xf32> to vector<640xf32>
      %23 = vector.shape_cast %22 : vector<640xf32> to vector<640x1xf32>
      %cst_17 = arith.constant 1.280000e+02 : f32
      %24 = vector.broadcast %cst_17 : f32 to vector<640x1xf32>
      %25 = arith.divf %23, %24 : vector<640x1xf32>
      %26 = vector.broadcast %25 : vector<640x1xf32> to vector<640x128xf32>
      %27 = arith.subf %21, %26 : vector<640x128xf32>
      %28 = arith.mulf %27, %27 : vector<640x128xf32>
      %cst_18 = arith.constant dense<0.000000e+00> : vector<640xf32>
      %29 = vector.multi_reduction <add>, %28, %cst_18 [1] : vector<640x128xf32> to vector<640xf32>
      %30 = vector.shape_cast %29 : vector<640xf32> to vector<640x1xf32>
      %cst_19 = arith.constant 1.280000e+02 : f32
      %31 = vector.broadcast %cst_19 : f32 to vector<640x1xf32>
      %32 = arith.divf %30, %31 : vector<640x1xf32>
      %cst_20 = arith.constant 9.99999974E-6 : f32
      %33 = vector.broadcast %cst_20 : f32 to vector<640x1xf32>
      %34 = arith.addf %32, %33 : vector<640x1xf32>
      %35 = math.rsqrt %34 : vector<640x1xf32>
      %36 = vector.broadcast %35 : vector<640x1xf32> to vector<640x128xf32>
      %37 = arith.mulf %27, %36 : vector<640x128xf32>
      %c0_21 = arith.constant 0 : index
      %c0_22 = arith.constant 0 : index
      %38 = vector.load %arg6[%c0_21, %c0_22] : memref<1x128xf32, #tpu.memory_space<vmem>>, vector<1x128xf32>
      %39 = vector.broadcast %38 : vector<1x128xf32> to vector<640x128xf32>
      %40 = arith.mulf %37, %39 : vector<640x128xf32>
      %c0_23 = arith.constant 0 : index
      %c0_24 = arith.constant 0 : index
      %41 = vector.load %arg7[%c0_23, %c0_24] : memref<1x128xf32, #tpu.memory_space<vmem>>, vector<1x128xf32>
      %42 = vector.broadcast %41 : vector<1x128xf32> to vector<640x128xf32>
      %43 = arith.addf %40, %42 : vector<640x128xf32>
      %cst_25 = arith.constant 0.000000e+00 : f32
      %44 = vector.broadcast %cst_25 : f32 to vector<640x128xf32>
      %45 = arith.maximumf %43, %44 : vector<640x128xf32>
      %46 = arith.truncf %45 : vector<640x128xf32> to vector<640x128xbf16>
      %c0_26 = arith.constant 0 : index
      %c0_27 = arith.constant 0 : index
      %47 = vector.load %arg8[%c0_26, %c0_27] : memref<640x128xbf16, #tpu.memory_space<vmem>>, vector<640x128xbf16>
      tpu.vector_store %arg8[%c0_26, %c0_27], %46 {strides = array<i32>} : memref<640x128xbf16, #tpu.memory_space<vmem>>, vector<640x128xbf16>,
    } else {
    }
    return
  }
  func.func @transform_0(%arg0: i32, %arg1: i32) -> (i32, i32) {
    %c0_i32 = arith.constant 0 : i32
    return %arg0, %arg1 : i32, i32
  }
  func.func @transform_1(%arg0: i32, %arg1: i32) -> (i32, i32) {
    %c0_i32 = arith.constant 0 : i32
    %c0_i32_0 = arith.constant 0 : i32
    %c0_i32_1 = arith.constant 0 : i32
    return %c0_i32, %c0_i32_0 : i32, i32
  }
  func.func @transform_2(%arg0: i32, %arg1: i32) -> (i32, i32) {
    %c0_i32 = arith.constant 0 : i32
    %c0_i32_0 = arith.constant 0 : i32
    %c0_i32_1 = arith.constant 0 : i32
    return %c0_i32, %c0_i32_0 : i32, i32
  }
  func.func @transform_3(%arg0: i32, %arg1: i32) -> (i32, i32) {
    %c0_i32 = arith.constant 0 : i32
    %c0_i32_0 = arith.constant 0 : i32
    %c0_i32_1 = arith.constant 0 : i32
    return %c0_i32, %c0_i32_0 : i32, i32
  }
  func.func @transform_4(%arg0: i32, %arg1: i32) -> (i32, i32) {
    %c0_i32 = arith.constant 0 : i32
    %c0_i32_0 = arith.constant 0 : i32
    %c0_i32_1 = arith.constant 0 : i32
    return %c0_i32, %c0_i32_0 : i32, i32
  }
  func.func @transform_5(%arg0: i32, %arg1: i32) -> (i32, i32) {
    %c0_i32 = arith.constant 0 : i32
    %c0_i32_0 = arith.constant 0 : i32
    %c0_i32_1 = arith.constant 0 : i32
    return %c0_i32, %c0_i32_0 : i32, i32
  }
  func.func @transform_6(%arg0: i32, %arg1: i32) -> (i32, i32) {
    %c0_i32 = arith.constant 0 : i32
    %c0_i32_0 = arith.constant 0 : i32
    return %arg0, %c0_i32 : i32, i32
  }
}

</mosaic_0001>

<llo_original>
// kernel: tpu_custom_call.1
$region0: #{tpu_custom_call.1}
  #allocation0 [shape = 'u32[]', space=smem, size = 0x4, offset = 0x4, fixed_abs, tag = 'smem constant byte address 0x4 - core index']
  #allocation1 [shape = 'u32[144,128]{1,0:T(1,128)}', space=vmem, size = 0x12000, scoped, tag = 'internal scratch']
  #allocation2 [shape = 'f32[640,128]{1,0:T(8,128)}', space=vmem, size = 0x50000, scoped, tag = 'scratch operand']
  %s0 = inlined_call_operand.hbm [shape: bf16[640,640], index: 0, kind: input, shape index: {}]
  %s1 = inlined_call_operand.hbm [shape: bf16[640,128], index: 1, kind: input, shape index: {}]
  %s2 = inlined_call_operand.hbm [shape: bf16[128,128], index: 2, kind: input, shape index: {}]
  %s3 = inlined_call_operand.vmem [shape: f32[1,128], index: 3, kind: input, shape index: {}]
  %s4 = inlined_call_operand.vmem [shape: f32[1,128], index: 4, kind: input, shape index: {}]
  %s5 = inlined_call_operand.vmem [shape: f32[1,128], index: 5, kind: input, shape index: {}]
  %s6 = inlined_call_operand.hbm [shape: bf16[640,128], index: 6, kind: output, shape index: {}]
  %s7 = sld [smem:[#allocation0]]
  $region54: #{tpu_custom_call.1} parent=0
    _
  %s9 = ssub.s32 1, %s7
  %s10 = scalar_select 0, %s9, %s7
  $region1: #{tpu_custom_call.1} parent=0
    #allocation3 [shape = 'u8[819200]{0}', space=vmem, size = 0xc8000, scoped, tag = 'input window, operand 0, single buffered']
    #allocation4 [shape = 's32[1]{0}', space=sflag, size = 0x4, scoped, tag = 'scoped memory for tpu_custom_call.1']
    #allocation5 [shape = 's32[1]{0}', space=sflag, size = 0x4, scoped, tag = 'scoped memory for tpu_custom_call.1']
    #allocation6 [shape = 'u8[163840]{0}', space=vmem, size = 0x28000, scoped, tag = 'input window, operand 1, single buffered']
    #allocation7 [shape = 's32[1]{0}', space=sflag, size = 0x4, scoped, tag = 'scoped memory for tpu_custom_call.1']
    #allocation8 [shape = 'u8[32768]{0}', space=vmem, size = 0x8000, scoped, tag = 'input window, operand 2, single buffered']
    #allocation9 [shape = 'u8[163840]{0}', space=vmem, size = 0x28000, scoped, tag = 'output window, operand 0, single buffered']
    %11 = vsyncpa [#allocation4], 0
    %12 = vsyncpa [#allocation7], 0
    %13 = vsyncpa [#allocation5], 0
    // Predicated region
    $region2: #{tpu_custom_call.1} parent=1 // pred_check
      _
    $region3: #{tpu_custom_call.1} parent=1 // pred_check_branch
      %15 = sbr.rel (0) target = $region5
    $region4: #{tpu_custom_call.1} parent=1 // pred_region
      %s17 = ssub.s32 25600, 25600
      %18 = vsyncadd [#allocation4], %s17
      %s19 = sshll.u32 [#allocation3], 4
      %s20 = int_to_ptr.vmem [resolvable:$true] %s19
      %25 = dma.hbm_to_vmem [thread:$0]  %s0, 25600, %s20, [#allocation4], 320, 320, 20
    $region5: #{tpu_custom_call.1} parent=1 // pred_fallthru
      _
    // Predicated region
    $region6: #{tpu_custom_call.1} parent=1 // pred_check
      _
    $region7: #{tpu_custom_call.1} parent=1 // pred_check_branch
      %27 = sbr.rel (0) target = $region9
    $region8: #{tpu_custom_call.1} parent=1 // pred_region
      %s29 = ssub.s32 5120, 5120
      %30 = vsyncadd [#allocation7], %s29
      %s31 = sshll.u32 [#allocation6], 4
      %s32 = int_to_ptr.vmem [resolvable:$true] %s31
      %37 = dma.hbm_to_vmem [thread:$0]  %s1, 5120, %s32, [#allocation7], 64, 64, 4
    $region9: #{tpu_custom_call.1} parent=1 // pred_fallthru
      _
    // Predicated region
    $region10: #{tpu_custom_call.1} parent=1 // pred_check
      _
    $region11: #{tpu_custom_call.1} parent=1 // pred_check_branch
      %39 = sbr.rel (0) target = $region13
    $region12: #{tpu_custom_call.1} parent=1 // pred_region
      %s41 = ssub.s32 1024, 1024
      %42 = vsyncadd [#allocation7], %s41
      %s43 = sshll.u32 [#allocation8], 4
      %s44 = int_to_ptr.vmem [resolvable:$true] %s43
      %49 = dma.hbm_to_vmem [thread:$0]  %s2, 1024, %s44, [#allocation7], 64, 64, 4
    $region13: #{tpu_custom_call.1} parent=1 // pred_fallthru
      _
    // Predicated region
    $region14: #{tpu_custom_call.1} parent=1 // pred_check
      _
    $region15: #{tpu_custom_call.1} parent=1 // pred_check_branch
      %51 = sbr.rel (0) target = $region17
    $region16: #{tpu_custom_call.1} parent=1 // pred_region
      _
    $region17: #{tpu_custom_call.1} parent=1 // pred_fallthru
      _
    // Predicated region
    $region18: #{tpu_custom_call.1} parent=1 // pred_check
      _
    $region19: #{tpu_custom_call.1} parent=1 // pred_check_branch
      %53 = sbr.rel (0) target = $region21
    $region20: #{tpu_custom_call.1} parent=1 // pred_region
      _
    $region21: #{tpu_custom_call.1} parent=1 // pred_fallthru
      _
    // Predicated region
    $region22: #{tpu_custom_call.1} parent=1 // pred_check
      _
    $region23: #{tpu_custom_call.1} parent=1 // pred_check_branch
      %55 = sbr.rel (0) target = $region25
    $region24: #{tpu_custom_call.1} parent=1 // pred_region
      _
    $region25: #{tpu_custom_call.1} parent=1 // pred_fallthru
      _
    // Predicated region
    $region26: #{tpu_custom_call.1} parent=1 // pred_check
      _
    $region27: #{tpu_custom_call.1} parent=1 // pred_check_branch
      %57 = sbr.rel (0) target = $region29
    $region28: #{tpu_custom_call.1} parent=1 // pred_region
      %58 = dma.done [#allocation4], 25600
    $region29: #{tpu_custom_call.1} parent=1 // pred_fallthru
      _
    // Predicated region
    $region30: #{tpu_custom_call.1} parent=1 // pred_check
      _
    $region31: #{tpu_custom_call.1} parent=1 // pred_check_branch
      %60 = sbr.rel (0) target = $region33
    $region32: #{tpu_custom_call.1} parent=1 // pred_region
      %61 = dma.done [#allocation7], 5120
    $region33: #{tpu_custom_call.1} parent=1 // pred_fallthru
      _
    // Predicated region
    $region34: #{tpu_custom_call.1} parent=1 // pred_check
      _
    $region35: #{tpu_custom_call.1} parent=1 // pred_check_branch
      %63 = sbr.rel (0) target = $region37
    $region36: #{tpu_custom_call.1} parent=1 // pred_region
      %64 = dma.done [#allocation7], 1024
    $region37: #{tpu_custom_call.1} parent=1 // pred_fallthru
      _
    %p66 = scmp.eq.s32.totalorder 0, 0
    // Predicated region
    $region38: #{tpu_custom_call.1} parent=1 // pred_check
      %p67 = pneg %p66
    $region39: #{tpu_custom_call.1} parent=1 // pred_check_branch
      %69 = sbr.rel (%p67) target = $region41
    $region40: #{tpu_custom_call.1} parent=1 // pred_region
      %70 = vst [vmem:[#allocation2] sm:$0xff] 0.0
      %71 = vst [vmem:[#allocation2 + $0x8] sm:$0xff] 0.0
      %72 = vst [vmem:[#allocation2 + $0x10] sm:$0xff] 0.0
      %73 = vst [vmem:[#allocation2 + $0x18] sm:$0xff] 0.0
      %74 = vst [vmem:[#allocation2 + $0x20] sm:$0xff] 0.0
      %75 = vst [vmem:[#allocation2 + $0x28] sm:$0xff] 0.0
      %76 = vst [vmem:[#allocation2 + $0x30] sm:$0xff] 0.0
      %77 = vst [vmem:[#allocation2 + $0x38] sm:$0xff] 0.0
      %78 = vst [vmem:[#allocation2 + $0x40] sm:$0xff] 0.0
      %79 = vst [vmem:[#allocation2 + $0x48] sm:$0xff] 0.0
      %80 = vst [vmem:[#allocation2 + $0x50] sm:$0xff] 0.0
      %81 = vst [vmem:[#allocation2 + $0x58] sm:$0xff] 0.0
      %82 = vst [vmem:[#allocation2 + $0x60] sm:$0xff] 0.0
      %83 = vst [vmem:[#allocation2 + $0x68] sm:$0xff] 0.0
      %84 = vst [vmem:[#allocation2 + $0x70] sm:$0xff] 0.0
      %85 = vst [vmem:[#allocation2 + $0x78] sm:$0xff] 0.0
      %86 = vst [vmem:[#allocation2 + $0x80] sm:$0xff] 0.0
      %87 = vst [vmem:[#allocation2 + $0x88] sm:$0xff] 0.0
      %88 = vst [vmem:[#allocation2 + $0x90] sm:$0xff] 0.0
      %89 = vst [vmem:[#allocation2 + $0x98] sm:$0xff] 0.0
      %90 = vst [vmem:[#allocation2 + $0xa0] sm:$0xff] 0.0
      %91 = vst [vmem:[#allocation2 + $0xa8] sm:$0xff] 0.0
      %92 = vst [vmem:[#allocation2 + $0xb0] sm:$0xff] 0.0
      %93 = vst [vmem:[#allocation2 + $0xb8] sm:$0xff] 0.0
      %94 = vst [vmem:[#allocation2 + $0xc0] sm:$0xff] 0.0
      %95 = vst [vmem:[#allocation2 + $0xc8] sm:$0xff] 0.0
      %96 = vst [vmem:[#allocation2 + $0xd0] sm:$0xff] 0.0
      %97 = vst [vmem:[#allocation2 + $0xd8] sm:$0xff] 0.0
      %98 = vst [vmem:[#allocation2 + $0xe0] sm:$0xff] 0.0
      %99 = vst [vmem:[#allocation2 + $0xe8] sm:$0xff] 0.0
      %100 = vst [vmem:[#allocation2 + $0xf0] sm:$0xff] 0.0
      %101 = vst [vmem:[#allocation2 + $0xf8] sm:$0xff] 0.0
      %102 = vst [vmem:[#allocation2 + $0x100] sm:$0xff] 0.0
      %103 = vst [vmem:[#allocation2 + $0x108] sm:$0xff] 0.0
      %104 = vst [vmem:[#allocation2 + $0x110] sm:$0xff] 0.0
      %105 = vst [vmem:[#allocation2 + $0x118] sm:$0xff] 0.0
      %106 = vst [vmem:[#allocation2 + $0x120] sm:$0xff] 0.0
      %107 = vst [vmem:[#allocation2 + $0x128] sm:$0xff] 0.0
      %108 = vst [vmem:[#allocation2 + $0x130] sm:$0xff] 0.0
      %109 = vst [vmem:[#allocation2 + $0x138] sm:$0xff] 0.0
      %110 = vst [vmem:[#allocation2 + $0x140] sm:$0xff] 0.0
      %111 = vst [vmem:[#allocation2 + $0x148] sm:$0xff] 0.0
      %112 = vst [vmem:[#allocation2 + $0x150] sm:$0xff] 0.0
      %113 = vst [vmem:[#allocation2 + $0x158] sm:$0xff] 0.0
      %114 = vst [vmem:[#allocation2 + $0x160] sm:$0xff] 0.0
      %115 = vst [vmem:[#allocation2 + $0x168] sm:$0xff] 0.0
      %116 = vst [vmem:[#allocation2 + $0x170] sm:$0xff] 0.0
      %117 = vst [vmem:[#allocation2 + $0x178] sm:$0xff] 0.0
      %118 = vst [vmem:[#allocation2 + $0x180] sm:$0xff] 0.0
      %119 = vst [vmem:[#allocation2 + $0x188] sm:$0xff] 0.0
      %120 = vst [vmem:[#allocation2 + $0x190] sm:$0xff] 0.0
      %121 = vst [vmem:[#allocation2 + $0x198] sm:$0xff] 0.0
      %122 = vst [vmem:[#allocation2 + $0x1a0] sm:$0xff] 0.0
      %123 = vst [vmem:[#allocation2 + $0x1a8] sm:$0xff] 0.0
      %124 = vst [vmem:[#allocation2 + $0x1b0] sm:$0xff] 0.0
      %125 = vst [vmem:[#allocation2 + $0x1b8] sm:$0xff] 0.0
      %126 = vst [vmem:[#allocation2 + $0x1c0] sm:$0xff] 0.0
      %127 = vst [vmem:[#allocation2 + $0x1c8] sm:$0xff] 0.0
      %128 = vst [vmem:[#allocation2 + $0x1d0] sm:$0xff] 0.0
      %129 = vst [vmem:[#allocation2 + $0x1d8] sm:$0xff] 0.0
      %130 = vst [vmem:[#allocation2 + $0x1e0] sm:$0xff] 0.0
      %131 = vst [vmem:[#allocation2 + $0x1e8] sm:$0xff] 0.0
      %132 = vst [vmem:[#allocation2 + $0x1f0] sm:$0xff] 0.0
      %133 = vst [vmem:[#allocation2 + $0x1f8] sm:$0xff] 0.0
      %134 = vst [vmem:[#allocation2 + $0x200] sm:$0xff] 0.0
      %135 = vst [vmem:[#allocation2 + $0x208] sm:$0xff] 0.0
      %136 = vst [vmem:[#allocation2 + $0x210] sm:$0xff] 0.0
      %137 = vst [vmem:[#allocation2 + $0x218] sm:$0xff] 0.0
      %138 = vst [vmem:[#allocation2 + $0x220] sm:$0xff] 0.0
      %139 = vst [vmem:[#allocation2 + $0x228] sm:$0xff] 0.0
      %140 = vst [vmem:[#allocation2 + $0x230] sm:$0xff] 0.0
      %141 = vst [vmem:[#allocation2 + $0x238] sm:$0xff] 0.0
      %142 = vst [vmem:[#allocation2 + $0x240] sm:$0xff] 0.0
      %143 = vst [vmem:[#allocation2 + $0x248] sm:$0xff] 0.0
      %144 = vst [vmem:[#allocation2 + $0x250] sm:$0xff] 0.0
      %145 = vst [vmem:[#allocation2 + $0x258] sm:$0xff] 0.0
      %146 = vst [vmem:[#allocation2 + $0x260] sm:$0xff] 0.0
      %147 = vst [vmem:[#allocation2 + $0x268] sm:$0xff] 0.0
      %148 = vst [vmem:[#allocation2 + $0x270] sm:$0xff] 0.0
      %149 = vst [vmem:[#allocation2 + $0x278] sm:$0xff] 0.0
    $region41: #{tpu_custom_call.1} parent=1 // pred_fallthru
      _
    %s150 = smul.u32 0, 640
    %s151 = sshra.s32 %s150, 3
    %s152 = sand.u32 %s150, 7
    %s153 = smul.addr %s151, 4
    %s154 = scalar_lea.vmem [#allocation6], %s153
    %v155 = vld [vmem:[%s154] sm:$0xf]
    %v156 = vld [vmem:[%s154 + $0x4] sm:$0xf]
    %v157 = vld [vmem:[%s154 + $0x8] sm:$0xf]
    %v158 = vld [vmem:[%s154 + $0xc] sm:$0xf]
    %v159 = vld [vmem:[%s154 + $0x10] sm:$0xf]
    %v160 = vld [vmem:[%s154 + $0x14] sm:$0xf]
    %v161 = vld [vmem:[%s154 + $0x18] sm:$0xf]
    %v162 = vld [vmem:[%s154 + $0x1c] sm:$0xf]
    %v163 = vld [vmem:[%s154 + $0x20] sm:$0xf]
    %v164 = vld [vmem:[%s154 + $0x24] sm:$0xf]
    %v165 = vld [vmem:[%s154 + $0x28] sm:$0xf]
    %v166 = vld [vmem:[%s154 + $0x2c] sm:$0xf]
    %v167 = vld [vmem:[%s154 + $0x30] sm:$0xf]
    %v168 = vld [vmem:[%s154 + $0x34] sm:$0xf]
    %v169 = vld [vmem:[%s154 + $0x38] sm:$0xf]
    %v170 = vld [vmem:[%s154 + $0x3c] sm:$0xf]
    %v171 = vld [vmem:[%s154 + $0x40] sm:$0xf]
    %v172 = vld [vmem:[%s154 + $0x44] sm:$0xf]
    %v173 = vld [vmem:[%s154 + $0x48] sm:$0xf]
    %v174 = vld [vmem:[%s154 + $0x4c] sm:$0xf]
    %v175 = vld [vmem:[%s154 + $0x50] sm:$0xf]
    %v176 = vld [vmem:[%s154 + $0x54] sm:$0xf]
    %v177 = vld [vmem:[%s154 + $0x58] sm:$0xf]
    %v178 = vld [vmem:[%s154 + $0x5c] sm:$0xf]
    %v179 = vld [vmem:[%s154 + $0x60] sm:$0xf]
    %v180 = vld [vmem:[%s154 + $0x64] sm:$0xf]
    %v181 = vld [vmem:[%s154 + $0x68] sm:$0xf]
    %v182 = vld [vmem:[%s154 + $0x6c] sm:$0xf]
    %v183 = vld [vmem:[%s154 + $0x70] sm:$0xf]
    %v184 = vld [vmem:[%s154 + $0x74] sm:$0xf]
    %v185 = vld [vmem:[%s154 + $0x78] sm:$0xf]
    %v186 = vld [vmem:[%s154 + $0x7c] sm:$0xf]
    %v187 = vld [vmem:[%s154 + $0x80] sm:$0xf]
    %v188 = vld [vmem:[%s154 + $0x84] sm:$0xf]
    %v189 = vld [vmem:[%s154 + $0x88] sm:$0xf]
    %v190 = vld [vmem:[%s154 + $0x8c] sm:$0xf]
    %v191 = vld [vmem:[%s154 + $0x90] sm:$0xf]
    %v192 = vld [vmem:[%s154 + $0x94] sm:$0xf]
    %v193 = vld [vmem:[%s154 + $0x98] sm:$0xf]
    %v194 = vld [vmem:[%s154 + $0x9c] sm:$0xf]
    %v195 = vld [vmem:[%s154 + $0xa0] sm:$0xf]
    %v196 = vld [vmem:[%s154 + $0xa4] sm:$0xf]
    %v197 = vld [vmem:[%s154 + $0xa8] sm:$0xf]
    %v198 = vld [vmem:[%s154 + $0xac] sm:$0xf]
    %v199 = vld [vmem:[%s154 + $0xb0] sm:$0xf]
    %v200 = vld [vmem:[%s154 + $0xb4] sm:$0xf]
    %v201 = vld [vmem:[%s154 + $0xb8] sm:$0xf]
    %v202 = vld [vmem:[%s154 + $0xbc] sm:$0xf]
    %v203 = vld [vmem:[%s154 + $0xc0] sm:$0xf]
    %v204 = vld [vmem:[%s154 + $0xc4] sm:$0xf]
    %v205 = vld [vmem:[%s154 + $0xc8] sm:$0xf]
    %v206 = vld [vmem:[%s154 + $0xcc] sm:$0xf]
    %v207 = vld [vmem:[%s154 + $0xd0] sm:$0xf]
    %v208 = vld [vmem:[%s154 + $0xd4] sm:$0xf]
    %v209 = vld [vmem:[%s154 + $0xd8] sm:$0xf]
    %v210 = vld [vmem:[%s154 + $0xdc] sm:$0xf]
    %v211 = vld [vmem:[%s154 + $0xe0] sm:$0xf]
    %v212 = vld [vmem:[%s154 + $0xe4] sm:$0xf]
    %v213 = vld [vmem:[%s154 + $0xe8] sm:$0xf]
    %v214 = vld [vmem:[%s154 + $0xec] sm:$0xf]
    %v215 = vld [vmem:[%s154 + $0xf0] sm:$0xf]
    %v216 = vld [vmem:[%s154 + $0xf4] sm:$0xf]
    %v217 = vld [vmem:[%s154 + $0xf8] sm:$0xf]
    %v218 = vld [vmem:[%s154 + $0xfc] sm:$0xf]
    %v219 = vld [vmem:[%s154 + $0x100] sm:$0xf]
    %v220 = vld [vmem:[%s154 + $0x104] sm:$0xf]
    %v221 = vld [vmem:[%s154 + $0x108] sm:$0xf]
    %v222 = vld [vmem:[%s154 + $0x10c] sm:$0xf]
    %v223 = vld [vmem:[%s154 + $0x110] sm:$0xf]
    %v224 = vld [vmem:[%s154 + $0x114] sm:$0xf]
    %v225 = vld [vmem:[%s154 + $0x118] sm:$0xf]
    %v226 = vld [vmem:[%s154 + $0x11c] sm:$0xf]
    %v227 = vld [vmem:[%s154 + $0x120] sm:$0xf]
    %v228 = vld [vmem:[%s154 + $0x124] sm:$0xf]
    %v229 = vld [vmem:[%s154 + $0x128] sm:$0xf]
    %v230 = vld [vmem:[%s154 + $0x12c] sm:$0xf]
    %v231 = vld [vmem:[%s154 + $0x130] sm:$0xf]
    %v232 = vld [vmem:[%s154 + $0x134] sm:$0xf]
    %v233 = vld [vmem:[%s154 + $0x138] sm:$0xf]
    %v234 = vld [vmem:[%s154 + $0x13c] sm:$0xf]
    %v235 = vld [vmem:[#allocation2] sm:$0xff]
    %v236 = vld [vmem:[#allocation2 + $0x8] sm:$0xff]
    %v237 = vld [vmem:[#allocation2 + $0x10] sm:$0xff]
    %v238 = vld [vmem:[#allocation2 + $0x18] sm:$0xff]
    %v239 = vld [vmem:[#allocation2 + $0x20] sm:$0xff]
    %v240 = vld [vmem:[#allocation2 + $0x28] sm:$0xff]
    %v241 = vld [vmem:[#allocation2 + $0x30] sm:$0xff]
    %v242 = vld [vmem:[#allocation2 + $0x38] sm:$0xff]
    %v243 = vld [vmem:[#allocation2 + $0x40] sm:$0xff]
    %v244 = vld [vmem:[#allocation2 + $0x48] sm:$0xff]
    %v245 = vld [vmem:[#allocation2 + $0x50] sm:$0xff]
    %v246 = vld [vmem:[#allocation2 + $0x58] sm:$0xff]
    %v247 = vld [vmem:[#allocation2 + $0x60] sm:$0xff]
    %v248 = vld [vmem:[#allocation2 + $0x68] sm:$0xff]
    %v249 = vld [vmem:[#allocation2 + $0x70] sm:$0xff]
    %v250 = vld [vmem:[#allocation2 + $0x78] sm:$0xff]
    %v251 = vld [vmem:[#allocation2 + $0x80] sm:$0xff]
    %v252 = vld [vmem:[#allocation2 + $0x88] sm:$0xff]
    %v253 = vld [vmem:[#allocation2 + $0x90] sm:$0xff]
    %v254 = vld [vmem:[#allocation2 + $0x98] sm:$0xff]
    %v255 = vld [vmem:[#allocation2 + $0xa0] sm:$0xff]
    %v256 = vld [vmem:[#allocation2 + $0xa8] sm:$0xff]
    %v257 = vld [vmem:[#allocation2 + $0xb0] sm:$0xff]
    %v258 = vld [vmem:[#allocation2 + $0xb8] sm:$0xff]
    %v259 = vld [vmem:[#allocation2 + $0xc0] sm:$0xff]
    %v260 = vld [vmem:[#allocation2 + $0xc8] sm:$0xff]
    %v261 = vld [vmem:[#allocation2 + $0xd0] sm:$0xff]
    %v262 = vld [vmem:[#allocation2 + $0xd8] sm:$0xff]
    %v263 = vld [vmem:[#allocation2 + $0xe0] sm:$0xff]
    %v264 = vld [vmem:[#allocation2 + $0xe8] sm:$0xff]
    %v265 = vld [vmem:[#allocation2 + $0xf0] sm:$0xff]
    %v266 = vld [vmem:[#allocation2 + $0xf8] sm:$0xff]
    %v267 = vld [vmem:[#allocation2 + $0x100] sm:$0xff]
    %v268 = vld [vmem:[#allocation2 + $0x108] sm:$0xff]
    %v269 = vld [vmem:[#allocation2 + $0x110] sm:$0xff]
    %v270 = vld [vmem:[#allocation2 + $0x118] sm:$0xff]
    %v271 = vld [vmem:[#allocation2 + $0x120] sm:$0xff]
    %v272 = vld [vmem:[#allocation2 + $0x128] sm:$0xff]
    %v273 = vld [vmem:[#allocation2 + $0x130] sm:$0xff]
    %v274 = vld [vmem:[#allocation2 + $0x138] sm:$0xff]
    %v275 = vld [vmem:[#allocation2 + $0x140] sm:$0xff]
    %v276 = vld [vmem:[#allocation2 + $0x148] sm:$0xff]
    %v277 = vld [vmem:[#allocation2 + $0x150] sm:$0xff]
    %v278 = vld [vmem:[#allocation2 + $0x158] sm:$0xff]
    %v279 = vld [vmem:[#allocation2 + $0x160] sm:$0xff]
    %v280 = vld [vmem:[#allocation2 + $0x168] sm:$0xff]
    %v281 = vld [vmem:[#allocation2 + $0x170] sm:$0xff]
    %v282 = vld [vmem:[#allocation2 + $0x178] sm:$0xff]
    %v283 = vld [vmem:[#allocation2 + $0x180] sm:$0xff]
    %v284 = vld [vmem:[#allocation2 + $0x188] sm:$0xff]
    %v285 = vld [vmem:[#allocation2 + $0x190] sm:$0xff]
    %v286 = vld [vmem:[#allocation2 + $0x198] sm:$0xff]
    %v287 = vld [vmem:[#allocation2 + $0x1a0] sm:$0xff]
    %v288 = vld [vmem:[#allocation2 + $0x1a8] sm:$0xff]
    %v289 = vld [vmem:[#allocation2 + $0x1b0] sm:$0xff]
    %v290 = vld [vmem:[#allocation2 + $0x1b8] sm:$0xff]
    %v291 = vld [vmem:[#allocation2 + $0x1c0] sm:$0xff]
    %v292 = vld [vmem:[#allocation2 + $0x1c8] sm:$0xff]
    %v293 = vld [vmem:[#allocation2 + $0x1d0] sm:$0xff]
    %v294 = vld [vmem:[#allocation2 + $0x1d8] sm:$0xff]
    %v295 = vld [vmem:[#allocation2 + $0x1e0] sm:$0xff]
    %v296 = vld [vmem:[#allocation2 + $0x1e8] sm:$0xff]
    %v297 = vld [vmem:[#allocation2 + $0x1f0] sm:$0xff]
    %v298 = vld [vmem:[#allocation2 + $0x1f8] sm:$0xff]
    %v299 = vld [vmem:[#allocation2 + $0x200] sm:$0xff]
    %v300 = vld [vmem:[#allocation2 + $0x208] sm:$0xff]
    %v301 = vld [vmem:[#allocation2 + $0x210] sm:$0xff]
    %v302 = vld [vmem:[#allocation2 + $0x218] sm:$0xff]
    %v303 = vld [vmem:[#allocation2 + $0x220] sm:$0xff]
    %v304 = vld [vmem:[#allocation2 + $0x228] sm:$0xff]
    %v305 = vld [vmem:[#allocation2 + $0x230] sm:$0xff]
    %v306 = vld [vmem:[#allocation2 + $0x238] sm:$0xff]
    %v307 = vld [vmem:[#allocation2 + $0x240] sm:$0xff]
    %v308 = vld [vmem:[#allocation2 + $0x248] sm:$0xff]
    %v309 = vld [vmem:[#allocation2 + $0x250] sm:$0xff]
    %v310 = vld [vmem:[#allocation2 + $0x258] sm:$0xff]
    %v311 = vld [vmem:[#allocation2 + $0x260] sm:$0xff]
    %v312 = vld [vmem:[#allocation2 + $0x268] sm:$0xff]
    %v313 = vld [vmem:[#allocation2 + $0x270] sm:$0xff]
    %v314 = vld [vmem:[#allocation2 + $0x278] sm:$0xff]
    %v315 = vld [vmem:[#allocation3] sm:$0xff]
    %v316 = vld [vmem:[#allocation3 + $0x8] sm:$0xff]
    %v317 = vld [vmem:[#allocation3 + $0x10] sm:$0xf]
    %v318 = vld [vmem:[#allocation3 + $0x14] sm:$0xff]
    %v319 = vld [vmem:[#allocation3 + $0x1c] sm:$0xff]
    %v320 = vld [vmem:[#allocation3 + $0x24] sm:$0xf]
    %v321 = vld [vmem:[#allocation3 + $0x28] sm:$0xff]
    %v322 = vld [vmem:[#allocation3 + $0x30] sm:$0xff]
    %v323 = vld [vmem:[#allocation3 + $0x38] sm:$0xf]
    %v324 = vld [vmem:[#allocation3 + $0x3c] sm:$0xff]
    %v325 = vld [vmem:[#allocation3 + $0x44] sm:$0xff]
    %v326 = vld [vmem:[#allocation3 + $0x4c] sm:$0xf]
    %v327 = vld [vmem:[#allocation3 + $0x50] sm:$0xff]
    %v328 = vld [vmem:[#allocation3 + $0x58] sm:$0xff]
    %v329 = vld [vmem:[#allocation3 + $0x60] sm:$0xf]
    %v330 = vld [vmem:[#allocation3 + $0x64] sm:$0xff]
    %v331 = vld [vmem:[#allocation3 + $0x6c] sm:$0xff]
    %v332 = vld [vmem:[#allocation3 + $0x74] sm:$0xf]
    %v333 = vld [vmem:[#allocation3 + $0x78] sm:$0xff]
    %v334 = vld [vmem:[#allocation3 + $0x80] sm:$0xff]
    %v335 = vld [vmem:[#allocation3 + $0x88] sm:$0xf]
    %v336 = vld [vmem:[#allocation3 + $0x8c] sm:$0xff]
    %v337 = vld [vmem:[#allocation3 + $0x94] sm:$0xff]
    %v338 = vld [vmem:[#allocation3 + $0x9c] sm:$0xf]
    %v339 = vld [vmem:[#allocation3 + $0xa0] sm:$0xff]
    %v340 = vld [vmem:[#allocation3 + $0xa8] sm:$0xff]
    %v341 = vld [vmem:[#allocation3 + $0xb0] sm:$0xf]
    %v342 = vld [vmem:[#allocation3 + $0xb4] sm:$0xff]
    %v343 = vld [vmem:[#allocation3 + $0xbc] sm:$0xff]
    %v344 = vld [vmem:[#allocation3 + $0xc4] sm:$0xf]
    %v345 = vld [vmem:[#allocation3 + $0xc8] sm:$0xff]
    %v346 = vld [vmem:[#allocation3 + $0xd0] sm:$0xff]
    %v347 = vld [vmem:[#allocation3 + $0xd8] sm:$0xf]
    %v348 = vld [vmem:[#allocation3 + $0xdc] sm:$0xff]
    %v349 = vld [vmem:[#allocation3 + $0xe4] sm:$0xff]
    %v350 = vld [vmem:[#allocation3 + $0xec] sm:$0xf]
    %v351 = vld [vmem:[#allocation3 + $0xf0] sm:$0xff]
    %v352 = vld [vmem:[#allocation3 + $0xf8] sm:$0xff]
    %v353 = vld [vmem:[#allocation3 + $0x100] sm:$0xf]
    %v354 = vld [vmem:[#allocation3 + $0x104] sm:$0xff]
    %v355 = vld [vmem:[#allocation3 + $0x10c] sm:$0xff]
    %v356 = vld [vmem:[#allocation3 + $0x114] sm:$0xf]
    %v357 = vld [vmem:[#allocation3 + $0x118] sm:$0xff]
    %v358 = vld [vmem:[#allocation3 + $0x120] sm:$0xff]
    %v359 = vld [vmem:[#allocation3 + $0x128] sm:$0xf]
    %v360 = vld [vmem:[#allocation3 + $0x12c] sm:$0xff]
    %v361 = vld [vmem:[#allocation3 + $0x134] sm:$0xff]
    %v362 = vld [vmem:[#allocation3 + $0x13c] sm:$0xf]
    %v363 = vld [vmem:[#allocation3 + $0x140] sm:$0xff]
    %v364 = vld [vmem:[#allocation3 + $0x148] sm:$0xff]
    %v365 = vld [vmem:[#allocation3 + $0x150] sm:$0xf]
    %v366 = vld [vmem:[#allocation3 + $0x154] sm:$0xff]
    %v367 = vld [vmem:[#allocation3 + $0x15c] sm:$0xff]
    %v368 = vld [vmem:[#allocation3 + $0x164] sm:$0xf]
    %v369 = vld [vmem:[#allocation3 + $0x168] sm:$0xff]
    %v370 = vld [vmem:[#allocation3 + $0x170] sm:$0xff]
    %v371 = vld [vmem:[#allocation3 + $0x178] sm:$0xf]
    %v372 = vld [vmem:[#allocation3 + $0x17c] sm:$0xff]
    %v373 = vld [vmem:[#allocation3 + $0x184] sm:$0xff]
    %v374 = vld [vmem:[#allocation3 + $0x18c] sm:$0xf]
    %v375 = vld [vmem:[#allocation3 + $0x190] sm:$0xff]
    %v376 = vld [vmem:[#allocation3 + $0x198] sm:$0xff]
    %v377 = vld [vmem:[#allocation3 + $0x1a0] sm:$0xf]
    %v378 = vld [vmem:[#allocation3 + $0x1a4] sm:$0xff]
    %v379 = vld [vmem:[#allocation3 + $0x1ac] sm:$0xff]
    %v380 = vld [vmem:[#allocation3 + $0x1b4] sm:$0xf]
    %v381 = vld [vmem:[#allocation3 + $0x1b8] sm:$0xff]
    %v382 = vld [vmem:[#allocation3 + $0x1c0] sm:$0xff]
    %v383 = vld [vmem:[#allocation3 + $0x1c8] sm:$0xf]
    %v384 = vld [vmem:[#allocation3 + $0x1cc] sm:$0xff]
    %v385 = vld [vmem:[#allocation3 + $0x1d4] sm:$0xff]
    %v386 = vld [vmem:[#allocation3 + $0x1dc] sm:$0xf]
    %v387 = vld [vmem:[#allocation3 + $0x1e0] sm:$0xff]
    %v388 = vld [vmem:[#allocation3 + $0x1e8] sm:$0xff]
    %v389 = vld [vmem:[#allocation3 + $0x1f0] sm:$0xf]
    %v390 = vld [vmem:[#allocation3 + $0x1f4] sm:$0xff]
    %v391 = vld [vmem:[#allocation3 + $0x1fc] sm:$0xff]
    %v392 = vld [vmem:[#allocation3 + $0x204] sm:$0xf]
    %v393 = vld [vmem:[#allocation3 + $0x208] sm:$0xff]
    %v394 = vld [vmem:[#allocation3 + $0x210] sm:$0xff]
    %v395 = vld [vmem:[#allocation3 + $0x218] sm:$0xf]
    %v396 = vld [vmem:[#allocation3 + $0x21c] sm:$0xff]
    %v397 = vld [vmem:[#allocation3 + $0x224] sm:$0xff]
    %v398 = vld [vmem:[#allocation3 + $0x22c] sm:$0xf]
    %v399 = vld [vmem:[#allocation3 + $0x230] sm:$0xff]
    %v400 = vld [vmem:[#allocation3 + $0x238] sm:$0xff]
    %v401 = vld [vmem:[#allocation3 + $0x240] sm:$0xf]
    %v402 = vld [vmem:[#allocation3 + $0x244] sm:$0xff]
    %v403 = vld [vmem:[#allocation3 + $0x24c] sm:$0xff]
    %v404 = vld [vmem:[#allocation3 + $0x254] sm:$0xf]
    %v405 = vld [vmem:[#allocation3 + $0x258] sm:$0xff]
    %v406 = vld [vmem:[#allocation3 + $0x260] sm:$0xff]
    %v407 = vld [vmem:[#allocation3 + $0x268] sm:$0xf]
    %v408 = vld [vmem:[#allocation3 + $0x26c] sm:$0xff]
    %v409 = vld [vmem:[#allocation3 + $0x274] sm:$0xff]
    %v410 = vld [vmem:[#allocation3 + $0x27c] sm:$0xf]
    %v411 = vld [vmem:[#allocation3 + $0x280] sm:$0xff]
    %v412 = vld [vmem:[#allocation3 + $0x288] sm:$0xff]
    %v413 = vld [vmem:[#allocation3 + $0x290] sm:$0xf]
    %v414 = vld [vmem:[#allocation3 + $0x294] sm:$0xff]
    %v415 = vld [vmem:[#allocation3 + $0x29c] sm:$0xff]
    %v416 = vld [vmem:[#allocation3 + $0x2a4] sm:$0xf]
    %v417 = vld [vmem:[#allocation3 + $0x2a8] sm:$0xff]
    %v418 = vld [vmem:[#allocation3 + $0x2b0] sm:$0xff]
    %v419 = vld [vmem:[#allocation3 + $0x2b8] sm:$0xf]
    %v420 = vld [vmem:[#allocation3 + $0x2bc] sm:$0xff]
    %v421 = vld [vmem:[#allocation3 + $0x2c4] sm:$0xff]
    %v422 = vld [vmem:[#allocation3 + $0x2cc] sm:$0xf]
    %v423 = vld [vmem:[#allocation3 + $0x2d0] sm:$0xff]
    %v424 = vld [vmem:[#allocation3 + $0x2d8] sm:$0xff]
    %v425 = vld [vmem:[#allocation3 + $0x2e0] sm:$0xf]
    %v426 = vld [vmem:[#allocation3 + $0x2e4] sm:$0xff]
    %v427 = vld [vmem:[#allocation3 + $0x2ec] sm:$0xff]
    %v428 = vld [vmem:[#allocation3 + $0x2f4] sm:$0xf]
    %v429 = vld [vmem:[#allocation3 + $0x2f8] sm:$0xff]
    %v430 = vld [vmem:[#allocation3 + $0x300] sm:$0xff]
    %v431 = vld [vmem:[#allocation3 + $0x308] sm:$0xf]
    %v432 = vld [vmem:[#allocation3 + $0x30c] sm:$0xff]
    %v433 = vld [vmem:[#allocation3 + $0x314] sm:$0xff]
    %v434 = vld [vmem:[#allocation3 + $0x31c] sm:$0xf]
    %v435 = vld [vmem:[#allocation3 + $0x320] sm:$0xff]
    %v436 = vld [vmem:[#allocation3 + $0x328] sm:$0xff]
    %v437 = vld [vmem:[#allocation3 + $0x330] sm:$0xf]
    %v438 = vld [vmem:[#allocation3 + $0x334] sm:$0xff]
    %v439 = vld [vmem:[#allocation3 + $0x33c] sm:$0xff]
    %v440 = vld [vmem:[#allocation3 + $0x344] sm:$0xf]
    %v441 = vld [vmem:[#allocation3 + $0x348] sm:$0xff]
    %v442 = vld [vmem:[#allocation3 + $0x350] sm:$0xff]
    %v443 = vld [vmem:[#allocation3 + $0x358] sm:$0xf]
    %v444 = vld [vmem:[#allocation3 + $0x35c] sm:$0xff]
    %v445 = vld [vmem:[#allocation3 + $0x364] sm:$0xff]
    %v446 = vld [vmem:[#allocation3 + $0x36c] sm:$0xf]
    %v447 = vld [vmem:[#allocation3 + $0x370] sm:$0xff]
    %v448 = vld [vmem:[#allocation3 + $0x378] sm:$0xff]
    %v449 = vld [vmem:[#allocation3 + $0x380] sm:$0xf]
    %v450 = vld [vmem:[#allocation3 + $0x384] sm:$0xff]
    %v451 = vld [vmem:[#allocation3 + $0x38c] sm:$0xff]
    %v452 = vld [vmem:[#allocation3 + $0x394] sm:$0xf]
    %v453 = vld [vmem:[#allocation3 + $0x398] sm:$0xff]
    %v454 = vld [vmem:[#allocation3 + $0x3a0] sm:$0xff]
    %v455 = vld [vmem:[#allocation3 + $0x3a8] sm:$0xf]
    %v456 = vld [vmem:[#allocation3 + $0x3ac] sm:$0xff]
    %v457 = vld [vmem:[#allocation3 + $0x3b4] sm:$0xff]
    %v458 = vld [vmem:[#allocation3 + $0x3bc] sm:$0xf]
    %v459 = vld [vmem:[#allocation3 + $0x3c0] sm:$0xff]
    %v460 = vld [vmem:[#allocation3 + $0x3c8] sm:$0xff]
    %v461 = vld [vmem:[#allocation3 + $0x3d0] sm:$0xf]
    %v462 = vld [vmem:[#allocation3 + $0x3d4] sm:$0xff]
    %v463 = vld [vmem:[#allocation3 + $0x3dc] sm:$0xff]
    %v464 = vld [vmem:[#allocation3 + $0x3e4] sm:$0xf]
    %v465 = vld [vmem:[#allocation3 + $0x3e8] sm:$0xff]
    %v466 = vld [vmem:[#allocation3 + $0x3f0] sm:$0xff]
    %v467 = vld [vmem:[#allocation3 + $0x3f8] sm:$0xf]
    %v468 = vld [vmem:[#allocation3 + $0x3fc] sm:$0xff]
    %v469 = vld [vmem:[#allocation3 + $0x404] sm:$0xff]
    %v470 = vld [vmem:[#allocation3 + $0x40c] sm:$0xf]
    %v471 = vld [vmem:[#allocation3 + $0x410] sm:$0xff]
    %v472 = vld [vmem:[#allocation3 + $0x418] sm:$0xff]
    %v473 = vld [vmem:[#allocation3 + $0x420] sm:$0xf]
    %v474 = vld [vmem:[#allocation3 + $0x424] sm:$0xff]
    %v475 = vld [vmem:[#allocation3 + $0x42c] sm:$0xff]
    %v476 = vld [vmem:[#allocation3 + $0x434] sm:$0xf]
    %v477 = vld [vmem:[#allocation3 + $0x438] sm:$0xff]
    %v478 = vld [vmem:[#allocation3 + $0x440] sm:$0xff]
    %v479 = vld [vmem:[#allocation3 + $0x448] sm:$0xf]
    %v480 = vld [vmem:[#allocation3 + $0x44c] sm:$0xff]
    %v481 = vld [vmem:[#allocation3 + $0x454] sm:$0xff]
    %v482 = vld [vmem:[#allocation3 + $0x45c] sm:$0xf]
    %v483 = vld [vmem:[#allocation3 + $0x460] sm:$0xff]
    %v484 = vld [vmem:[#allocation3 + $0x468] sm:$0xff]
    %v485 = vld [vmem:[#allocation3 + $0x470] sm:$0xf]
    %v486 = vld [vmem:[#allocation3 + $0x474] sm:$0xff]
    %v487 = vld [vmem:[#allocation3 + $0x47c] sm:$0xff]
    %v488 = vld [vmem:[#allocation3 + $0x484] sm:$0xf]
    %v489 = vld [vmem:[#allocation3 + $0x488] sm:$0xff]
    %v490 = vld [vmem:[#allocation3 + $0x490] sm:$0xff]
    %v491 = vld [vmem:[#allocation3 + $0x498] sm:$0xf]
    %v492 = vld [vmem:[#allocation3 + $0x49c] sm:$0xff]
    %v493 = vld [vmem:[#allocation3 + $0x4a4] sm:$0xff]
    %v494 = vld [vmem:[#allocation3 + $0x4ac] sm:$0xf]
    %v495 = vld [vmem:[#allocation3 + $0x4b0] sm:$0xff]
    %v496 = vld [vmem:[#allocation3 + $0x4b8] sm:$0xff]
    %v497 = vld [vmem:[#allocation3 + $0x4c0] sm:$0xf]
    %v498 = vld [vmem:[#allocation3 + $0x4c4] sm:$0xff]
    %v499 = vld [vmem:[#allocation3 + $0x4cc] sm:$0xff]
    %v500 = vld [vmem:[#allocation3 + $0x4d4] sm:$0xf]
    %v501 = vld [vmem:[#allocation3 + $0x4d8] sm:$0xff]
    %v502 = vld [vmem:[#allocation3 + $0x4e0] sm:$0xff]
    %v503 = vld [vmem:[#allocation3 + $0x4e8] sm:$0xf]
    %v504 = vld [vmem:[#allocation3 + $0x4ec] sm:$0xff]
    %v505 = vld [vmem:[#allocation3 + $0x4f4] sm:$0xff]
    %v506 = vld [vmem:[#allocation3 + $0x4fc] sm:$0xf]
    %v507 = vld [vmem:[#allocation3 + $0x500] sm:$0xff]
    %v508 = vld [vmem:[#allocation3 + $0x508] sm:$0xff]
    %v509 = vld [vmem:[#allocation3 + $0x510] sm:$0xf]
    %v510 = vld [vmem:[#allocation3 + $0x514] sm:$0xff]
    %v511 = vld [vmem:[#allocation3 + $0x51c] sm:$0xff]
    %v512 = vld [vmem:[#allocation3 + $0x524] sm:$0xf]
    %v513 = vld [vmem:[#allocation3 + $0x528] sm:$0xff]
    %v514 = vld [vmem:[#allocation3 + $0x530] sm:$0xff]
    %v515 = vld [vmem:[#allocation3 + $0x538] sm:$0xf]
    %v516 = vld [vmem:[#allocation3 + $0x53c] sm:$0xff]
    %v517 = vld [vmem:[#allocation3 + $0x544] sm:$0xff]
    %v518 = vld [vmem:[#allocation3 + $0x54c] sm:$0xf]
    %v519 = vld [vmem:[#allocation3 + $0x550] sm:$0xff]
    %v520 = vld [vmem:[#allocation3 + $0x558] sm:$0xff]
    %v521 = vld [vmem:[#allocation3 + $0x560] sm:$0xf]
    %v522 = vld [vmem:[#allocation3 + $0x564] sm:$0xff]
    %v523 = vld [vmem:[#allocation3 + $0x56c] sm:$0xff]
    %v524 = vld [vmem:[#allocation3 + $0x574] sm:$0xf]
    %v525 = vld [vmem:[#allocation3 + $0x578] sm:$0xff]
    %v526 = vld [vmem:[#allocation3 + $0x580] sm:$0xff]
    %v527 = vld [vmem:[#allocation3 + $0x588] sm:$0xf]
    %v528 = vld [vmem:[#allocation3 + $0x58c] sm:$0xff]
    %v529 = vld [vmem:[#allocation3 + $0x594] sm:$0xff]
    %v530 = vld [vmem:[#allocation3 + $0x59c] sm:$0xf]
    %v531 = vld [vmem:[#allocation3 + $0x5a0] sm:$0xff]
    %v532 = vld [vmem:[#allocation3 + $0x5a8] sm:$0xff]
    %v533 = vld [vmem:[#allocation3 + $0x5b0] sm:$0xf]
    %v534 = vld [vmem:[#allocation3 + $0x5b4] sm:$0xff]
    %v535 = vld [vmem:[#allocation3 + $0x5bc] sm:$0xff]
    %v536 = vld [vmem:[#allocation3 + $0x5c4] sm:$0xf]
    %v537 = vld [vmem:[#allocation3 + $0x5c8] sm:$0xff]
    %v538 = vld [vmem:[#allocation3 + $0x5d0] sm:$0xff]
    %v539 = vld [vmem:[#allocation3 + $0x5d8] sm:$0xf]
    %v540 = vld [vmem:[#allocation3 + $0x5dc] sm:$0xff]
    %v541 = vld [vmem:[#allocation3 + $0x5e4] sm:$0xff]
    %v542 = vld [vmem:[#allocation3 + $0x5ec] sm:$0xf]
    %v543 = vld [vmem:[#allocation3 + $0x5f0] sm:$0xff]
    %v544 = vld [vmem:[#allocation3 + $0x5f8] sm:$0xff]
    %v545 = vld [vmem:[#allocation3 + $0x600] sm:$0xf]
    %v546 = vld [vmem:[#allocation3 + $0x604] sm:$0xff]
    %v547 = vld [vmem:[#allocation3 + $0x60c] sm:$0xff]
    %v548 = vld [vmem:[#allocation3 + $0x614] sm:$0xf]
    %v549 = vld [vmem:[#allocation3 + $0x618] sm:$0xff]
    %v550 = vld [vmem:[#allocation3 + $0x620] sm:$0xff]
    %v551 = vld [vmem:[#allocation3 + $0x628] sm:$0xf]
    %v552 = vld [vmem:[#allocation3 + $0x62c] sm:$0xff]
    %v553 = vld [vmem:[#allocation3 + $0x634] sm:$0xff]
    %v554 = vld [vmem:[#allocation3 + $0x63c] sm:$0xf]
    %v795 = vunpack.c.l.b16 %v315
    %v796 = vunpack.c.h.b16 %v315
    %v797 = vunpack.c.l.b16 %v316
    %v798 = vunpack.c.h.b16 %v316
    %v799 = vunpack.c.l.b16 %v317
    %v800 = vunpack.c.l.b16 %v318
    %v801 = vunpack.c.h.b16 %v318
    %v802 = vunpack.c.l.b16 %v319
    %v803 = vunpack.c.h.b16 %v319
    %v804 = vunpack.c.l.b16 %v320
    %v805 = vunpack.c.l.b16 %v321
    %v806 = vunpack.c.h.b16 %v321
    %v807 = vunpack.c.l.b16 %v322
    %v808 = vunpack.c.h.b16 %v322
    %v809 = vunpack.c.l.b16 %v323
    %v810 = vunpack.c.l.b16 %v324
    %v811 = vunpack.c.h.b16 %v324
    %v812 = vunpack.c.l.b16 %v325
    %v813 = vunpack.c.h.b16 %v325
    %v814 = vunpack.c.l.b16 %v326
    %v815 = vunpack.c.l.b16 %v327
    %v816 = vunpack.c.h.b16 %v327
    %v817 = vunpack.c.l.b16 %v328
    %v818 = vunpack.c.h.b16 %v328
    %v819 = vunpack.c.l.b16 %v329
    %v820 = vunpack.c.l.b16 %v330
    %v821 = vunpack.c.h.b16 %v330
    %v822 = vunpack.c.l.b16 %v331
    %v823 = vunpack.c.h.b16 %v331
    %v824 = vunpack.c.l.b16 %v332
    %v825 = vunpack.c.l.b16 %v333
    %v826 = vunpack.c.h.b16 %v333
    %v827 = vunpack.c.l.b16 %v334
    %v828 = vunpack.c.h.b16 %v334
    %v829 = vunpack.c.l.b16 %v335
    %v830 = vunpack.c.l.b16 %v336
    %v831 = vunpack.c.h.b16 %v336
    %v832 = vunpack.c.l.b16 %v337
    %v833 = vunpack.c.h.b16 %v337
    %v834 = vunpack.c.l.b16 %v338
    %v835 = vunpack.c.l.b16 %v339
    %v836 = vunpack.c.h.b16 %v339
    %v837 = vunpack.c.l.b16 %v340
    %v838 = vunpack.c.h.b16 %v340
    %v839 = vunpack.c.l.b16 %v341
    %v840 = vunpack.c.l.b16 %v342
    %v841 = vunpack.c.h.b16 %v342
    %v842 = vunpack.c.l.b16 %v343
    %v843 = vunpack.c.h.b16 %v343
    %v844 = vunpack.c.l.b16 %v344
    %v845 = vunpack.c.l.b16 %v345
    %v846 = vunpack.c.h.b16 %v345
    %v847 = vunpack.c.l.b16 %v346
    %v848 = vunpack.c.h.b16 %v346
    %v849 = vunpack.c.l.b16 %v347
    %v850 = vunpack.c.l.b16 %v348
    %v851 = vunpack.c.h.b16 %v348
    %v852 = vunpack.c.l.b16 %v349
    %v853 = vunpack.c.h.b16 %v349
    %v854 = vunpack.c.l.b16 %v350
    %v855 = vunpack.c.l.b16 %v351
    %v856 = vunpack.c.h.b16 %v351
    %v857 = vunpack.c.l.b16 %v352
    %v858 = vunpack.c.h.b16 %v352
    %v859 = vunpack.c.l.b16 %v353
    %v860 = vunpack.c.l.b16 %v354
    %v861 = vunpack.c.h.b16 %v354
    %v862 = vunpack.c.l.b16 %v355
    %v863 = vunpack.c.h.b16 %v355
    %v864 = vunpack.c.l.b16 %v356
    %v865 = vunpack.c.l.b16 %v357
    %v866 = vunpack.c.h.b16 %v357
    %v867 = vunpack.c.l.b16 %v358
    %v868 = vunpack.c.h.b16 %v358
    %v869 = vunpack.c.l.b16 %v359
    %v870 = vunpack.c.l.b16 %v360
    %v871 = vunpack.c.h.b16 %v360
    %v872 = vunpack.c.l.b16 %v361
    %v873 = vunpack.c.h.b16 %v361
    %v874 = vunpack.c.l.b16 %v362
    %v875 = vunpack.c.l.b16 %v363
    %v876 = vunpack.c.h.b16 %v363
    %v877 = vunpack.c.l.b16 %v364
    %v878 = vunpack.c.h.b16 %v364
    %v879 = vunpack.c.l.b16 %v365
    %v880 = vunpack.c.l.b16 %v366
    %v881 = vunpack.c.h.b16 %v366
    %v882 = vunpack.c.l.b16 %v367
    %v883 = vunpack.c.h.b16 %v367
    %v884 = vunpack.c.l.b16 %v368
    %v885 = vunpack.c.l.b16 %v369
    %v886 = vunpack.c.h.b16 %v369
    %v887 = vunpack.c.l.b16 %v370
    %v888 = vunpack.c.h.b16 %v370
    %v889 = vunpack.c.l.b16 %v371
    %v890 = vunpack.c.l.b16 %v372
    %v891 = vunpack.c.h.b16 %v372
    %v892 = vunpack.c.l.b16 %v373
    %v893 = vunpack.c.h.b16 %v373
    %v894 = vunpack.c.l.b16 %v374
    %v895 = vunpack.c.l.b16 %v375
    %v896 = vunpack.c.h.b16 %v375
    %v897 = vunpack.c.l.b16 %v376
    %v898 = vunpack.c.h.b16 %v376
    %v899 = vunpack.c.l.b16 %v377
    %v900 = vunpack.c.l.b16 %v378
    %v901 = vunpack.c.h.b16 %v378
    %v902 = vunpack.c.l.b16 %v379
    %v903 = vunpack.c.h.b16 %v379
    %v904 = vunpack.c.l.b16 %v380
    %v905 = vunpack.c.l.b16 %v381
    %v906 = vunpack.c.h.b16 %v381
    %v907 = vunpack.c.l.b16 %v382
    %v908 = vunpack.c.h.b16 %v382
    %v909 = vunpack.c.l.b16 %v383
    %v910 = vunpack.c.l.b16 %v384
    %v911 = vunpack.c.h.b16 %v384
    %v912 = vunpack.c.l.b16 %v385
    %v913 = vunpack.c.h.b16 %v385
    %v914 = vunpack.c.l.b16 %v386
    %v915 = vunpack.c.l.b16 %v387
    %v916 = vunpack.c.h.b16 %v387
    %v917 = vunpack.c.l.b16 %v388
    %v918 = vunpack.c.h.b16 %v388
    %v919 = vunpack.c.l.b16 %v389
    %v920 = vunpack.c.l.b16 %v390
    %v921 = vunpack.c.h.b16 %v390
    %v922 = vunpack.c.l.b16 %v391
    %v923 = vunpack.c.h.b16 %v391
    %v924 = vunpack.c.l.b16 %v392
    %v925 = vunpack.c.l.b16 %v393
    %v926 = vunpack.c.h.b16 %v393
    %v927 = vunpack.c.l.b16 %v394
    %v928 = vunpack.c.h.b16 %v394
    %v929 = vunpack.c.l.b16 %v395
    %v930 = vunpack.c.l.b16 %v396
    %v931 = vunpack.c.h.b16 %v396
    %v932 = vunpack.c.l.b16 %v397
    %v933 = vunpack.c.h.b16 %v397
    %v934 = vunpack.c.l.b16 %v398
    %v935 = vunpack.c.l.b16 %v399
    %v936 = vunpack.c.h.b16 %v399
    %v937 = vunpack.c.l.b16 %v400
    %v938 = vunpack.c.h.b16 %v400
    %v939 = vunpack.c.l.b16 %v401
    %v940 = vunpack.c.l.b16 %v402
    %v941 = vunpack.c.h.b16 %v402
    %v942 = vunpack.c.l.b16 %v403
    %v943 = vunpack.c.h.b16 %v403
    %v944 = vunpack.c.l.b16 %v404
    %v945 = vunpack.c.l.b16 %v405
    %v946 = vunpack.c.h.b16 %v405
    %v947 = vunpack.c.l.b16 %v406
    %v948 = vunpack.c.h.b16 %v406
    %v949 = vunpack.c.l.b16 %v407
    %v950 = vunpack.c.l.b16 %v408
    %v951 = vunpack.c.h.b16 %v408
    %v952 = vunpack.c.l.b16 %v409
    %v953 = vunpack.c.h.b16 %v409
    %v954 = vunpack.c.l.b16 %v410
    %v955 = vunpack.c.l.b16 %v411
    %v956 = vunpack.c.h.b16 %v411
    %v957 = vunpack.c.l.b16 %v412
    %v958 = vunpack.c.h.b16 %v412
    %v959 = vunpack.c.l.b16 %v413
    %v960 = vunpack.c.l.b16 %v414
    %v961 = vunpack.c.h.b16 %v414
    %v962 = vunpack.c.l.b16 %v415
    %v963 = vunpack.c.h.b16 %v415
    %v964 = vunpack.c.l.b16 %v416
    %v965 = vunpack.c.l.b16 %v417
    %v966 = vunpack.c.h.b16 %v417
    %v967 = vunpack.c.l.b16 %v418
    %v968 = vunpack.c.h.b16 %v418
    %v969 = vunpack.c.l.b16 %v419
    %v970 = vunpack.c.l.b16 %v420
    %v971 = vunpack.c.h.b16 %v420
    %v972 = vunpack.c.l.b16 %v421
    %v973 = vunpack.c.h.b16 %v421
    %v974 = vunpack.c.l.b16 %v422
    %v975 = vunpack.c.l.b16 %v423
    %v976 = vunpack.c.h.b16 %v423
    %v977 = vunpack.c.l.b16 %v424
    %v978 = vunpack.c.h.b16 %v424
    %v979 = vunpack.c.l.b16 %v425
    %v980 = vunpack.c.l.b16 %v426
    %v981 = vunpack.c.h.b16 %v426
    %v982 = vunpack.c.l.b16 %v427
    %v983 = vunpack.c.h.b16 %v427
    %v984 = vunpack.c.l.b16 %v428
    %v985 = vunpack.c.l.b16 %v429
    %v986 = vunpack.c.h.b16 %v429
    %v987 = vunpack.c.l.b16 %v430
    %v988 = vunpack.c.h.b16 %v430
    %v989 = vunpack.c.l.b16 %v431
    %v990 = vunpack.c.l.b16 %v432
    %v991 = vunpack.c.h.b16 %v432
    %v992 = vunpack.c.l.b16 %v433
    %v993 = vunpack.c.h.b16 %v433
    %v994 = vunpack.c.l.b16 %v434
    %v995 = vunpack.c.l.b16 %v435
    %v996 = vunpack.c.h.b16 %v435
    %v997 = vunpack.c.l.b16 %v436
    %v998 = vunpack.c.h.b16 %v436
    %v999 = vunpack.c.l.b16 %v437
    %v1000 = vunpack.c.l.b16 %v438
    %v1001 = vunpack.c.h.b16 %v438
    %v1002 = vunpack.c.l.b16 %v439
    %v1003 = vunpack.c.h.b16 %v439
    %v1004 = vunpack.c.l.b16 %v440
    %v1005 = vunpack.c.l.b16 %v441
    %v1006 = vunpack.c.h.b16 %v441
    %v1007 = vunpack.c.l.b16 %v442
    %v1008 = vunpack.c.h.b16 %v442
    %v1009 = vunpack.c.l.b16 %v443
    %v1010 = vunpack.c.l.b16 %v444
    %v1011 = vunpack.c.h.b16 %v444
    %v1012 = vunpack.c.l.b16 %v445
    %v1013 = vunpack.c.h.b16 %v445
    %v1014 = vunpack.c.l.b16 %v446
    %v1015 = vunpack.c.l.b16 %v447
    %v1016 = vunpack.c.h.b16 %v447
    %v1017 = vunpack.c.l.b16 %v448
    %v1018 = vunpack.c.h.b16 %v448
    %v1019 = vunpack.c.l.b16 %v449
    %v1020 = vunpack.c.l.b16 %v450
    %v1021 = vunpack.c.h.b16 %v450
    %v1022 = vunpack.c.l.b16 %v451
    %v1023 = vunpack.c.h.b16 %v451
    %v1024 = vunpack.c.l.b16 %v452
    %v1025 = vunpack.c.l.b16 %v453
    %v1026 = vunpack.c.h.b16 %v453
    %v1027 = vunpack.c.l.b16 %v454
    %v1028 = vunpack.c.h.b16 %v454
    %v1029 = vunpack.c.l.b16 %v455
    %v1030 = vunpack.c.l.b16 %v456
    %v1031 = vunpack.c.h.b16 %v456
    %v1032 = vunpack.c.l.b16 %v457
    %v1033 = vunpack.c.h.b16 %v457
    %v1034 = vunpack.c.l.b16 %v458
    %v1035 = vunpack.c.l.b16 %v459
    %v1036 = vunpack.c.h.b16 %v459
    %v1037 = vunpack.c.l.b16 %v460
    %v1038 = vunpack.c.h.b16 %v460
    %v1039 = vunpack.c.l.b16 %v461
    %v1040 = vunpack.c.l.b16 %v462
    %v1041 = vunpack.c.h.b16 %v462
    %v1042 = vunpack.c.l.b16 %v463
    %v1043 = vunpack.c.h.b16 %v463
    %v1044 = vunpack.c.l.b16 %v464
    %v1045 = vunpack.c.l.b16 %v465
    %v1046 = vunpack.c.h.b16 %v465
    %v1047 = vunpack.c.l.b16 %v466
    %v1048 = vunpack.c.h.b16 %v466
    %v1049 = vunpack.c.l.b16 %v467
    %v1050 = vunpack.c.l.b16 %v468
    %v1051 = vunpack.c.h.b16 %v468
    %v1052 = vunpack.c.l.b16 %v469
    %v1053 = vunpack.c.h.b16 %v469
    %v1054 = vunpack.c.l.b16 %v470
    %v1055 = vunpack.c.l.b16 %v471
    %v1056 = vunpack.c.h.b16 %v471
    %v1057 = vunpack.c.l.b16 %v472
    %v1058 = vunpack.c.h.b16 %v472
    %v1059 = vunpack.c.l.b16 %v473
    %v1060 = vunpack.c.l.b16 %v474
    %v1061 = vunpack.c.h.b16 %v474
    %v1062 = vunpack.c.l.b16 %v475
    %v1063 = vunpack.c.h.b16 %v475
    %v1064 = vunpack.c.l.b16 %v476
    %v1065 = vunpack.c.l.b16 %v477
    %v1066 = vunpack.c.h.b16 %v477
    %v1067 = vunpack.c.l.b16 %v478
    %v1068 = vunpack.c.h.b16 %v478
    %v1069 = vunpack.c.l.b16 %v479
    %v1070 = vunpack.c.l.b16 %v480
    %v1071 = vunpack.c.h.b16 %v480
    %v1072 = vunpack.c.l.b16 %v481
    %v1073 = vunpack.c.h.b16 %v481
    %v1074 = vunpack.c.l.b16 %v482
    %v1075 = vunpack.c.l.b16 %v483
    %v1076 = vunpack.c.h.b16 %v483
    %v1077 = vunpack.c.l.b16 %v484
    %v1078 = vunpack.c.h.b16 %v484
    %v1079 = vunpack.c.l.b16 %v485
    %v1080 = vunpack.c.l.b16 %v486
    %v1081 = vunpack.c.h.b16 %v486
    %v1082 = vunpack.c.l.b16 %v487
    %v1083 = vunpack.c.h.b16 %v487
    %v1084 = vunpack.c.l.b16 %v488
    %v1085 = vunpack.c.l.b16 %v489
    %v1086 = vunpack.c.h.b16 %v489
    %v1087 = vunpack.c.l.b16 %v490
    %v1088 = vunpack.c.h.b16 %v490
    %v1089 = vunpack.c.l.b16 %v491
    %v1090 = vunpack.c.l.b16 %v492
    %v1091 = vunpack.c.h.b16 %v492
    %v1092 = vunpack.c.l.b16 %v493
    %v1093 = vunpack.c.h.b16 %v493
    %v1094 = vunpack.c.l.b16 %v494
    %v1095 = vunpack.c.l.b16 %v495
    %v1096 = vunpack.c.h.b16 %v495
    %v1097 = vunpack.c.l.b16 %v496
    %v1098 = vunpack.c.h.b16 %v496
    %v1099 = vunpack.c.l.b16 %v497
    %v1100 = vunpack.c.l.b16 %v498
    %v1101 = vunpack.c.h.b16 %v498
    %v1102 = vunpack.c.l.b16 %v499
    %v1103 = vunpack.c.h.b16 %v499
    %v1104 = vunpack.c.l.b16 %v500
    %v1105 = vunpack.c.l.b16 %v501
    %v1106 = vunpack.c.h.b16 %v501
    %v1107 = vunpack.c.l.b16 %v502
    %v1108 = vunpack.c.h.b16 %v502
    %v1109 = vunpack.c.l.b16 %v503
    %v1110 = vunpack.c.l.b16 %v504
    %v1111 = vunpack.c.h.b16 %v504
    %v1112 = vunpack.c.l.b16 %v505
    %v1113 = vunpack.c.h.b16 %v505
    %v1114 = vunpack.c.l.b16 %v506
    %v1115 = vunpack.c.l.b16 %v507
    %v1116 = vunpack.c.h.b16 %v507
    %v1117 = vunpack.c.l.b16 %v508
    %v1118 = vunpack.c.h.b16 %v508
    %v1119 = vunpack.c.l.b16 %v509
    %v1120 = vunpack.c.l.b16 %v510
    %v1121 = vunpack.c.h.b16 %v510
    %v1122 = vunpack.c.l.b16 %v511
    %v1123 = vunpack.c.h.b16 %v511
    %v1124 = vunpack.c.l.b16 %v512
    %v1125 = vunpack.c.l.b16 %v513
    %v1126 = vunpack.c.h.b16 %v513
    %v1127 = vunpack.c.l.b16 %v514
    %v1128 = vunpack.c.h.b16 %v514
    %v1129 = vunpack.c.l.b16 %v515
    %v1130 = vunpack.c.l.b16 %v516
    %v1131 = vunpack.c.h.b16 %v516
    %v1132 = vunpack.c.l.b16 %v517
    %v1133 = vunpack.c.h.b16 %v517
    %v1134 = vunpack.c.l.b16 %v518
    %v1135 = vunpack.c.l.b16 %v519
    %v1136 = vunpack.c.h.b16 %v519
    %v1137 = vunpack.c.l.b16 %v520
    %v1138 = vunpack.c.h.b16 %v520
    %v1139 = vunpack.c.l.b16 %v521
    %v1140 = vunpack.c.l.b16 %v522
    %v1141 = vunpack.c.h.b16 %v522
    %v1142 = vunpack.c.l.b16 %v523
    %v1143 = vunpack.c.h.b16 %v523
    %v1144 = vunpack.c.l.b16 %v524
    %v1145 = vunpack.c.l.b16 %v525
    %v1146 = vunpack.c.h.b16 %v525
    %v1147 = vunpack.c.l.b16 %v526
    %v1148 = vunpack.c.h.b16 %v526
    %v1149 = vunpack.c.l.b16 %v527
    %v1150 = vunpack.c.l.b16 %v528
    %v1151 = vunpack.c.h.b16 %v528
    %v1152 = vunpack.c.l.b16 %v529
    %v1153 = vunpack.c.h.b16 %v529
    %v1154 = vunpack.c.l.b16 %v530
    %v1155 = vunpack.c.l.b16 %v531
    %v1156 = vunpack.c.h.b16 %v531
    %v1157 = vunpack.c.l.b16 %v532
    %v1158 = vunpack.c.h.b16 %v532
    %v1159 = vunpack.c.l.b16 %v533
    %v1160 = vunpack.c.l.b16 %v534
    %v1161 = vunpack.c.h.b16 %v534
    %v1162 = vunpack.c.l.b16 %v535
    %v1163 = vunpack.c.h.b16 %v535
    %v1164 = vunpack.c.l.b16 %v536
    %v1165 = vunpack.c.l.b16 %v537
    %v1166 = vunpack.c.h.b16 %v537
    %v1167 = vunpack.c.l.b16 %v538
    %v1168 = vunpack.c.h.b16 %v538
    %v1169 = vunpack.c.l.b16 %v539
    %v1170 = vunpack.c.l.b16 %v540
    %v1171 = vunpack.c.h.b16 %v540
    %v1172 = vunpack.c.l.b16 %v541
    %v1173 = vunpack.c.h.b16 %v541
    %v1174 = vunpack.c.l.b16 %v542
    %v1175 = vunpack.c.l.b16 %v543
    %v1176 = vunpack.c.h.b16 %v543
    %v1177 = vunpack.c.l.b16 %v544
    %v1178 = vunpack.c.h.b16 %v544
    %v1179 = vunpack.c.l.b16 %v545
    %v1180 = vunpack.c.l.b16 %v546
    %v1181 = vunpack.c.h.b16 %v546
    %v1182 = vunpack.c.l.b16 %v547
    %v1183 = vunpack.c.h.b16 %v547
    %v1184 = vunpack.c.l.b16 %v548
    %v1185 = vunpack.c.l.b16 %v549
    %v1186 = vunpack.c.h.b16 %v549
    %v1187 = vunpack.c.l.b16 %v550
    %v1188 = vunpack.c.h.b16 %v550
    %v1189 = vunpack.c.l.b16 %v551
    %v1190 = vunpack.c.l.b16 %v552
    %v1191 = vunpack.c.h.b16 %v552
    %v1192 = vunpack.c.l.b16 %v553
    %v1193 = vunpack.c.h.b16 %v553
    %v1194 = vunpack.c.l.b16 %v554
    %v1195 = vpack.c.b16 %v800, %v795
    %v1196 = vpack.c.b16 %v801, %v796
    %v1197 = vpack.c.b16 %v802, %v797
    %v1198 = vpack.c.b16 %v803, %v798
    %v1199 = vpack.c.b16 %v804, %v799
    %v1200 = vpack.c.b16 %v810, %v805
    %v1201 = vpack.c.b16 %v811, %v806
    %v1202 = vpack.c.b16 %v812, %v807
    %v1203 = vpack.c.b16 %v813, %v808
    %v1204 = vpack.c.b16 %v814, %v809
    %v1205 = vpack.c.b16 %v820, %v815
    %v1206 = vpack.c.b16 %v821, %v816
    %v1207 = vpack.c.b16 %v822, %v817
    %v1208 = vpack.c.b16 %v823, %v818
    %v1209 = vpack.c.b16 %v824, %v819
    %v1210 = vpack.c.b16 %v830, %v825
    %v1211 = vpack.c.b16 %v831, %v826
    %v1212 = vpack.c.b16 %v832, %v827
    %v1213 = vpack.c.b16 %v833, %v828
    %v1214 = vpack.c.b16 %v834, %v829
    %v1215 = vpack.c.b16 %v840, %v835
    %v1216 = vpack.c.b16 %v841, %v836
    %v1217 = vpack.c.b16 %v842, %v837
    %v1218 = vpack.c.b16 %v843, %v838
    %v1219 = vpack.c.b16 %v844, %v839
    %v1220 = vpack.c.b16 %v850, %v845
    %v1221 = vpack.c.b16 %v851, %v846
    %v1222 = vpack.c.b16 %v852, %v847
    %v1223 = vpack.c.b16 %v853, %v848
    %v1224 = vpack.c.b16 %v854, %v849
    %v1225 = vpack.c.b16 %v860, %v855
    %v1226 = vpack.c.b16 %v861, %v856
    %v1227 = vpack.c.b16 %v862, %v857
    %v1228 = vpack.c.b16 %v863, %v858
    %v1229 = vpack.c.b16 %v864, %v859
    %v1230 = vpack.c.b16 %v870, %v865
    %v1231 = vpack.c.b16 %v871, %v866
    %v1232 = vpack.c.b16 %v872, %v867
    %v1233 = vpack.c.b16 %v873, %v868
    %v1234 = vpack.c.b16 %v874, %v869
    %v1235 = vpack.c.b16 %v880, %v875
    %v1236 = vpack.c.b16 %v881, %v876
    %v1237 = vpack.c.b16 %v882, %v877
    %v1238 = vpack.c.b16 %v883, %v878
    %v1239 = vpack.c.b16 %v884, %v879
    %v1240 = vpack.c.b16 %v890, %v885
    %v1241 = vpack.c.b16 %v891, %v886
    %v1242 = vpack.c.b16 %v892, %v887
    %v1243 = vpack.c.b16 %v893, %v888
    %v1244 = vpack.c.b16 %v894, %v889
    %v1245 = vpack.c.b16 %v900, %v895
    %v1246 = vpack.c.b16 %v901, %v896
    %v1247 = vpack.c.b16 %v902, %v897
    %v1248 = vpack.c.b16 %v903, %v898
    %v1249 = vpack.c.b16 %v904, %v899
    %v1250 = vpack.c.b16 %v910, %v905
    %v1251 = vpack.c.b16 %v911, %v906
    %v1252 = vpack.c.b16 %v912, %v907
    %v1253 = vpack.c.b16 %v913, %v908
    %v1254 = vpack.c.b16 %v914, %v909
    %v1255 = vpack.c.b16 %v920, %v915
    %v1256 = vpack.c.b16 %v921, %v916
    %v1257 = vpack.c.b16 %v922, %v917
    %v1258 = vpack.c.b16 %v923, %v918
    %v1259 = vpack.c.b16 %v924, %v919
    %v1260 = vpack.c.b16 %v930, %v925
    %v1261 = vpack.c.b16 %v931, %v926
    %v1262 = vpack.c.b16 %v932, %v927
    %v1263 = vpack.c.b16 %v933, %v928
    %v1264 = vpack.c.b16 %v934, %v929
    %v1265 = vpack.c.b16 %v940, %v935
    %v1266 = vpack.c.b16 %v941, %v936
    %v1267 = vpack.c.b16 %v942, %v937
    %v1268 = vpack.c.b16 %v943, %v938
    %v1269 = vpack.c.b16 %v944, %v939
    %v1270 = vpack.c.b16 %v950, %v945
    %v1271 = vpack.c.b16 %v951, %v946
    %v1272 = vpack.c.b16 %v952, %v947
    %v1273 = vpack.c.b16 %v953, %v948
    %v1274 = vpack.c.b16 %v954, %v949
    %v1275 = vpack.c.b16 %v960, %v955
    %v1276 = vpack.c.b16 %v961, %v956
    %v1277 = vpack.c.b16 %v962, %v957
    %v1278 = vpack.c.b16 %v963, %v958
    %v1279 = vpack.c.b16 %v964, %v959
    %v1280 = vpack.c.b16 %v970, %v965
    %v1281 = vpack.c.b16 %v971, %v966
    %v1282 = vpack.c.b16 %v972, %v967
    %v1283 = vpack.c.b16 %v973, %v968
    %v1284 = vpack.c.b16 %v974, %v969
    %v1285 = vpack.c.b16 %v980, %v975
    %v1286 = vpack.c.b16 %v981, %v976
    %v1287 = vpack.c.b16 %v982, %v977
    %v1288 = vpack.c.b16 %v983, %v978
    %v1289 = vpack.c.b16 %v984, %v979
    %v1290 = vpack.c.b16 %v990, %v985
    %v1291 = vpack.c.b16 %v991, %v986
    %v1292 = vpack.c.b16 %v992, %v987
    %v1293 = vpack.c.b16 %v993, %v988
    %v1294 = vpack.c.b16 %v994, %v989
    %v1295 = vpack.c.b16 %v1000, %v995
    %v1296 = vpack.c.b16 %v1001, %v996
    %v1297 = vpack.c.b16 %v1002, %v997
    %v1298 = vpack.c.b16 %v1003, %v998
    %v1299 = vpack.c.b16 %v1004, %v999
    %v1300 = vpack.c.b16 %v1010, %v1005
    %v1301 = vpack.c.b16 %v1011, %v1006
    %v1302 = vpack.c.b16 %v1012, %v1007
    %v1303 = vpack.c.b16 %v1013, %v1008
    %v1304 = vpack.c.b16 %v1014, %v1009
    %v1305 = vpack.c.b16 %v1020, %v1015
    %v1306 = vpack.c.b16 %v1021, %v1016
    %v1307 = vpack.c.b16 %v1022, %v1017
    %v1308 = vpack.c.b16 %v1023, %v1018
    %v1309 = vpack.c.b16 %v1024, %v1019
    %v1310 = vpack.c.b16 %v1030, %v1025
    %v1311 = vpack.c.b16 %v1031, %v1026
    %v1312 = vpack.c.b16 %v1032, %v1027
    %v1313 = vpack.c.b16 %v1033, %v1028
    %v1314 = vpack.c.b16 %v1034, %v1029
    %v1315 = vpack.c.b16 %v1040, %v1035
    %v1316 = vpack.c.b16 %v1041, %v1036
    %v1317 = vpack.c.b16 %v1042, %v1037
    %v1318 = vpack.c.b16 %v1043, %v1038
    %v1319 = vpack.c.b16 %v1044, %v1039
    %v1320 = vpack.c.b16 %v1050, %v1045
    %v1321 = vpack.c.b16 %v1051, %v1046
    %v1322 = vpack.c.b16 %v1052, %v1047
    %v1323 = vpack.c.b16 %v1053, %v1048
    %v1324 = vpack.c.b16 %v1054, %v1049
    %v1325 = vpack.c.b16 %v1060, %v1055
    %v1326 = vpack.c.b16 %v1061, %v1056
    %v1327 = vpack.c.b16 %v1062, %v1057
    %v1328 = vpack.c.b16 %v1063, %v1058
    %v1329 = vpack.c.b16 %v1064, %v1059
    %v1330 = vpack.c.b16 %v1070, %v1065
    %v1331 = vpack.c.b16 %v1071, %v1066
    %v1332 = vpack.c.b16 %v1072, %v1067
    %v1333 = vpack.c.b16 %v1073, %v1068
    %v1334 = vpack.c.b16 %v1074, %v1069
    %v1335 = vpack.c.b16 %v1080, %v1075
    %v1336 = vpack.c.b16 %v1081, %v1076
    %v1337 = vpack.c.b16 %v1082, %v1077
    %v1338 = vpack.c.b16 %v1083, %v1078
    %v1339 = vpack.c.b16 %v1084, %v1079
    %v1340 = vpack.c.b16 %v1090, %v1085
    %v1341 = vpack.c.b16 %v1091, %v1086
    %v1342 = vpack.c.b16 %v1092, %v1087
    %v1343 = vpack.c.b16 %v1093, %v1088
    %v1344 = vpack.c.b16 %v1094, %v1089
    %v1345 = vpack.c.b16 %v1100, %v1095
    %v1346 = vpack.c.b16 %v1101, %v1096
    %v1347 = vpack.c.b16 %v1102, %v1097
    %v1348 = vpack.c.b16 %v1103, %v1098
    %v1349 = vpack.c.b16 %v1104, %v1099
    %v1350 = vpack.c.b16 %v1110, %v1105
    %v1351 = vpack.c.b16 %v1111, %v1106
    %v1352 = vpack.c.b16 %v1112, %v1107
    %v1353 = vpack.c.b16 %v1113, %v1108
    %v1354 = vpack.c.b16 %v1114, %v1109
    %v1355 = vpack.c.b16 %v1120, %v1115
    %v1356 = vpack.c.b16 %v1121, %v1116
    %v1357 = vpack.c.b16 %v1122, %v1117
    %v1358 = vpack.c.b16 %v1123, %v1118
    %v1359 = vpack.c.b16 %v1124, %v1119
    %v1360 = vpack.c.b16 %v1130, %v1125
    %v1361 = vpack.c.b16 %v1131, %v1126
    %v1362 = vpack.c.b16 %v1132, %v1127
    %v1363 = vpack.c.b16 %v1133, %v1128
    %v1364 = vpack.c.b16 %v1134, %v1129
    %v1365 = vpack.c.b16 %v1140, %v1135
    %v1366 = vpack.c.b16 %v1141, %v1136
    %v1367 = vpack.c.b16 %v1142, %v1137
    %v1368 = vpack.c.b16 %v1143, %v1138
    %v1369 = vpack.c.b16 %v1144, %v1139
    %v1370 = vpack.c.b16 %v1150, %v1145
    %v1371 = vpack.c.b16 %v1151, %v1146
    %v1372 = vpack.c.b16 %v1152, %v1147
    %v1373 = vpack.c.b16 %v1153, %v1148
    %v1374 = vpack.c.b16 %v1154, %v1149
    %v1375 = vpack.c.b16 %v1160, %v1155
    %v1376 = vpack.c.b16 %v1161, %v1156
    %v1377 = vpack.c.b16 %v1162, %v1157
    %v1378 = vpack.c.b16 %v1163, %v1158
    %v1379 = vpack.c.b16 %v1164, %v1159
    %v1380 = vpack.c.b16 %v1170, %v1165
    %v1381 = vpack.c.b16 %v1171, %v1166
    %v1382 = vpack.c.b16 %v1172, %v1167
    %v1383 = vpack.c.b16 %v1173, %v1168
    %v1384 = vpack.c.b16 %v1174, %v1169
    %v1385 = vpack.c.b16 %v1180, %v1175
    %v1386 = vpack.c.b16 %v1181, %v1176
    %v1387 = vpack.c.b16 %v1182, %v1177
    %v1388 = vpack.c.b16 %v1183, %v1178
    %v1389 = vpack.c.b16 %v1184, %v1179
    %v1390 = vpack.c.b16 %v1190, %v1185
    %v1391 = vpack.c.b16 %v1191, %v1186
    %v1392 = vpack.c.b16 %v1192, %v1187
    %v1393 = vpack.c.b16 %v1193, %v1188
    %v1394 = vpack.c.b16 %v1194, %v1189
    %v1675 = vunpack.c.l.b16 %v155
    %v1676 = vunpack.c.l.b16 %v156
    %v1677 = vunpack.c.l.b16 %v157
    %v1678 = vunpack.c.l.b16 %v158
    %v1679 = vunpack.c.l.b16 %v159
    %v1680 = vunpack.c.l.b16 %v160
    %v1681 = vunpack.c.l.b16 %v161
    %v1682 = vunpack.c.l.b16 %v162
    %v1683 = vunpack.c.l.b16 %v163
    %v1684 = vunpack.c.l.b16 %v164
    %v1685 = vunpack.c.l.b16 %v165
    %v1686 = vunpack.c.l.b16 %v166
    %v1687 = vunpack.c.l.b16 %v167
    %v1688 = vunpack.c.l.b16 %v168
    %v1689 = vunpack.c.l.b16 %v169
    %v1690 = vunpack.c.l.b16 %v170
    %v1691 = vunpack.c.l.b16 %v171
    %v1692 = vunpack.c.l.b16 %v172
    %v1693 = vunpack.c.l.b16 %v173
    %v1694 = vunpack.c.l.b16 %v174
    %v1695 = vunpack.c.l.b16 %v175
    %v1696 = vunpack.c.l.b16 %v176
    %v1697 = vunpack.c.l.b16 %v177
    %v1698 = vunpack.c.l.b16 %v178
    %v1699 = vunpack.c.l.b16 %v179
    %v1700 = vunpack.c.l.b16 %v180
    %v1701 = vunpack.c.l.b16 %v181
    %v1702 = vunpack.c.l.b16 %v182
    %v1703 = vunpack.c.l.b16 %v183
    %v1704 = vunpack.c.l.b16 %v184
    %v1705 = vunpack.c.l.b16 %v185
    %v1706 = vunpack.c.l.b16 %v186
    %v1707 = vunpack.c.l.b16 %v187
    %v1708 = vunpack.c.l.b16 %v188
    %v1709 = vunpack.c.l.b16 %v189
    %v1710 = vunpack.c.l.b16 %v190
    %v1711 = vunpack.c.l.b16 %v191
    %v1712 = vunpack.c.l.b16 %v192
    %v1713 = vunpack.c.l.b16 %v193
    %v1714 = vunpack.c.l.b16 %v194
    %v1715 = vunpack.c.l.b16 %v195
    %v1716 = vunpack.c.l.b16 %v196
    %v1717 = vunpack.c.l.b16 %v197
    %v1718 = vunpack.c.l.b16 %v198
    %v1719 = vunpack.c.l.b16 %v199
    %v1720 = vunpack.c.l.b16 %v200
    %v1721 = vunpack.c.l.b16 %v201
    %v1722 = vunpack.c.l.b16 %v202
    %v1723 = vunpack.c.l.b16 %v203
    %v1724 = vunpack.c.l.b16 %v204
    %v1725 = vunpack.c.l.b16 %v205
    %v1726 = vunpack.c.l.b16 %v206
    %v1727 = vunpack.c.l.b16 %v207
    %v1728 = vunpack.c.l.b16 %v208
    %v1729 = vunpack.c.l.b16 %v209
    %v1730 = vunpack.c.l.b16 %v210
    %v1731 = vunpack.c.l.b16 %v211
    %v1732 = vunpack.c.l.b16 %v212
    %v1733 = vunpack.c.l.b16 %v213
    %v1734 = vunpack.c.l.b16 %v214
    %v1735 = vunpack.c.l.b16 %v215
    %v1736 = vunpack.c.l.b16 %v216
    %v1737 = vunpack.c.l.b16 %v217
    %v1738 = vunpack.c.l.b16 %v218
    %v1739 = vunpack.c.l.b16 %v219
    %v1740 = vunpack.c.l.b16 %v220
    %v1741 = vunpack.c.l.b16 %v221
    %v1742 = vunpack.c.l.b16 %v222
    %v1743 = vunpack.c.l.b16 %v223
    %v1744 = vunpack.c.l.b16 %v224
    %v1745 = vunpack.c.l.b16 %v225
    %v1746 = vunpack.c.l.b16 %v226
    %v1747 = vunpack.c.l.b16 %v227
    %v1748 = vunpack.c.l.b16 %v228
    %v1749 = vunpack.c.l.b16 %v229
    %v1750 = vunpack.c.l.b16 %v230
    %v1751 = vunpack.c.l.b16 %v231
    %v1752 = vunpack.c.l.b16 %v232
    %v1753 = vunpack.c.l.b16 %v233
    %v1754 = vunpack.c.l.b16 %v234
    %v1755 = vpack.c.b16 %v1676, %v1675
    %v1756 = vpack.c.b16 %v1678, %v1677
    %v1757 = vpack.c.b16 %v1680, %v1679
    %v1758 = vpack.c.b16 %v1682, %v1681
    %v1759 = vpack.c.b16 %v1684, %v1683
    %v1760 = vpack.c.b16 %v1686, %v1685
    %v1761 = vpack.c.b16 %v1688, %v1687
    %v1762 = vpack.c.b16 %v1690, %v1689
    %v1763 = vpack.c.b16 %v1692, %v1691
    %v1764 = vpack.c.b16 %v1694, %v1693
    %v1765 = vpack.c.b16 %v1696, %v1695
    %v1766 = vpack.c.b16 %v1698, %v1697
    %v1767 = vpack.c.b16 %v1700, %v1699
    %v1768 = vpack.c.b16 %v1702, %v1701
    %v1769 = vpack.c.b16 %v1704, %v1703
    %v1770 = vpack.c.b16 %v1706, %v1705
    %v1771 = vpack.c.b16 %v1708, %v1707
    %v1772 = vpack.c.b16 %v1710, %v1709
    %v1773 = vpack.c.b16 %v1712, %v1711
    %v1774 = vpack.c.b16 %v1714, %v1713
    %v1775 = vpack.c.b16 %v1716, %v1715
    %v1776 = vpack.c.b16 %v1718, %v1717
    %v1777 = vpack.c.b16 %v1720, %v1719
    %v1778 = vpack.c.b16 %v1722, %v1721
    %v1779 = vpack.c.b16 %v1724, %v1723
    %v1780 = vpack.c.b16 %v1726, %v1725
    %v1781 = vpack.c.b16 %v1728, %v1727
    %v1782 = vpack.c.b16 %v1730, %v1729
    %v1783 = vpack.c.b16 %v1732, %v1731
    %v1784 = vpack.c.b16 %v1734, %v1733
    %v1785 = vpack.c.b16 %v1736, %v1735
    %v1786 = vpack.c.b16 %v1738, %v1737
    %v1787 = vpack.c.b16 %v1740, %v1739
    %v1788 = vpack.c.b16 %v1742, %v1741
    %v1789 = vpack.c.b16 %v1744, %v1743
    %v1790 = vpack.c.b16 %v1746, %v1745
    %v1791 = vpack.c.b16 %v1748, %v1747
    %v1792 = vpack.c.b16 %v1750, %v1749
    %v1793 = vpack.c.b16 %v1752, %v1751
    %v1794 = vpack.c.b16 %v1754, %v1753
    %1835 = vmatprep.subr.bf16.mxu0 0
    %1836 = vmatpush1.bf16.msra.mxu0 %v1755
    %1837 = vmatprep.subr.bf16.mxu0 0
    %1838 = vmatpush1.bf16.msra.mxu0 %v1756
    %1839 = vmatprep.subr.bf16.mxu0 0
    %1840 = vmatpush1.bf16.msra.mxu0 %v1757
    %1841 = vmatprep.subr.bf16.mxu0 0
    %1842 = vmatpush1.bf16.msra.mxu0 %v1758
    %1843 = vmatprep.subr.bf16.mxu0 0
    %1844 = vmatpush1.bf16.msra.mxu0 %v1759
    %1845 = vmatprep.subr.bf16.mxu0 0
    %1846 = vmatpush1.bf16.msra.mxu0 %v1760
    %1847 = vmatprep.subr.bf16.mxu0 0
    %1848 = vmatpush1.bf16.msra.mxu0 %v1761
    %1849 = vmatprep.subr.bf16.mxu0 0
    %1850 = vmatpush1.bf16.msra.mxu0 %v1762
    %1851 = vmatprep.subr.bf16.mxu0 0
    %1852 = vmatpush1.bf16.msra.mxu0 %v1763
    %1853 = vmatprep.subr.bf16.mxu0 0
    %1854 = vmatpush1.bf16.msra.mxu0 %v1764
    %1855 = vmatprep.subr.bf16.mxu0 0
    %1856 = vmatpush1.bf16.msra.mxu0 %v1765
    %1857 = vmatprep.subr.bf16.mxu0 0
    %1858 = vmatpush1.bf16.msra.mxu0 %v1766
    %1859 = vmatprep.subr.bf16.mxu0 0
    %1860 = vmatpush1.bf16.msra.mxu0 %v1767
    %1861 = vmatprep.subr.bf16.mxu0 0
    %1862 = vmatpush1.bf16.msra.mxu0 %v1768
    %1863 = vmatprep.subr.bf16.mxu0 0
    %1864 = vmatpush1.bf16.msra.mxu0 %v1769
    %1865 = vmatprep.subr.bf16.mxu0 0
    %1866 = vmatpush1.bf16.msra.mxu0 %v1770
    %1867 = vmatprep.mubr.bf16.mxu0 %v1196
    %1868 = vmatmul.mubr.bf16.gmra.mrb[0].mxu0 %v1195
    %v1869 = vpop.f32.mrb[0].mxu0
    %v1870 = vadd.f32 0.0, %v1869
    %v1871 = vpop.f32.mrb[0].mxu0
    %v1872 = vpop.f32.mrb[0].mxu0
    %v1873 = vadd.f32 0.0, %v1872
    %v1874 = vpop.f32.mrb[0].mxu0
    %1875 = vmatprep.mubr.bf16.mxu0 %v1201
    %1876 = vmatmul.mubr.bf16.gmra.mrb[0].mxu0 %v1200
    %v1877 = vpop.f32.mrb[0].mxu0
    %v1878 = vadd.f32 0.0, %v1877
    %v1879 = vpop.f32.mrb[0].mxu0
    %v1880 = vpop.f32.mrb[0].mxu0
    %v1881 = vadd.f32 0.0, %v1880
    %v1882 = vpop.f32.mrb[0].mxu0
    %1883 = vmatprep.mubr.bf16.mxu0 %v1206
    %1884 = vmatmul.mubr.bf16.gmra.mrb[0].mxu0 %v1205
    %v1885 = vpop.f32.mrb[0].mxu0
    %v1886 = vadd.f32 0.0, %v1885
    %v1887 = vpop.f32.mrb[0].mxu0
    %v1888 = vpop.f32.mrb[0].mxu0
    %v1889 = vadd.f32 0.0, %v1888
    %v1890 = vpop.f32.mrb[0].mxu0
    %1891 = vmatprep.mubr.bf16.mxu0 %v1211
    %1892 = vmatmul.mubr.bf16.gmra.mrb[0].mxu0 %v1210
    %v1893 = vpop.f32.mrb[0].mxu0
    %v1894 = vadd.f32 0.0, %v1893
    %v1895 = vpop.f32.mrb[0].mxu0
    %v1896 = vpop.f32.mrb[0].mxu0
    %v1897 = vadd.f32 0.0, %v1896
    %v1898 = vpop.f32.mrb[0].mxu0
    %1899 = vmatprep.mubr.bf16.mxu0 %v1216
    %1900 = vmatmul.mubr.bf16.gmra.mrb[0].mxu0 %v1215
    %v1901 = vpop.f32.mrb[0].mxu0
    %v1902 = vadd.f32 0.0, %v1901
    %v1903 = vpop.f32.mrb[0].mxu0
    %v1904 = vpop.f32.mrb[0].mxu0
    %v1905 = vadd.f32 0.0, %v1904
    %v1906 = vpop.f32.mrb[0].mxu0
    %1907 = vmatprep.mubr.bf16.mxu0 %v1221
    %1908 = vmatmul.mubr.bf16.gmra.mrb[0].mxu0 %v1220
    %v1909 = vpop.f32.mrb[0].mxu0
    %v1910 = vadd.f32 0.0, %v1909
    %v1911 = vpop.f32.mrb[0].mxu0
    %v1912 = vpop.f32.mrb[0].mxu0
    %v1913 = vadd.f32 0.0, %v1912
    %v1914 = vpop.f32.mrb[0].mxu0
    %1915 = vmatprep.mubr.bf16.mxu0 %v1226
    %1916 = vmatmul.mubr.bf16.gmra.mrb[0].mxu0 %v1225
    %v1917 = vpop.f32.mrb[0].mxu0
    %v1918 = vadd.f32 0.0, %v1917
    %v1919 = vpop.f32.mrb[0].mxu0
    %v1920 = vpop.f32.mrb[0].mxu0
    %v1921 = vadd.f32 0.0, %v1920
    %v1922 = vpop.f32.mrb[0].mxu0
    %1923 = vmatprep.mubr.bf16.mxu0 %v1231
    %1924 = vmatmul.mubr.bf16.gmra.mrb[0].mxu0 %v1230
    %v1925 = vpop.f32.mrb[0].mxu0
    %v1926 = vadd.f32 0.0, %v1925
    %v1927 = vpop.f32.mrb[0].mxu0
    %v1928 = vpop.f32.mrb[0].mxu0
    %v1929 = vadd.f32 0.0, %v1928
    %v1930 = vpop.f32.mrb[0].mxu0
    %1931 = vmatprep.mubr.bf16.mxu0 %v1236
    %1932 = vmatmul.mubr.bf16.gmra.mrb[0].mxu0 %v1235
    %v1933 = vpop.f32.mrb[0].mxu0
    %v1934 = vadd.f32 0.0, %v1933
    %v1935 = vpop.f32.mrb[0].mxu0
    %v1936 = vpop.f32.mrb[0].mxu0
    %v1937 = vadd.f32 0.0, %v1936
    %v1938 = vpop.f32.mrb[0].mxu0
    %1939 = vmatprep.mubr.bf16.mxu0 %v1241
    %1940 = vmatmul.mubr.bf16.gmra.mrb[0].mxu0 %v1240
    %v1941 = vpop.f32.mrb[0].mxu0
    %v1942 = vadd.f32 0.0, %v1941
    %v1943 = vpop.f32.mrb[0].mxu0
    %v1944 = vpop.f32.mrb[0].mxu0
    %v1945 = vadd.f32 0.0, %v1944
    %v1946 = vpop.f32.mrb[0].mxu0
    %1947 = vmatprep.mubr.bf16.mxu0 %v1246
    %1948 = vmatmul.mubr.bf16.gmra.mrb[0].mxu0 %v1245
    %v1949 = vpop.f32.mrb[0].mxu0
    %v1950 = vadd.f32 0.0, %v1949
    %v1951 = vpop.f32.mrb[0].mxu0
    %v1952 = vpop.f32.mrb[0].mxu0
    %v1953 = vadd.f32 0.0, %v1952
    %v1954 = vpop.f32.mrb[0].mxu0
    %1955 = vmatprep.mubr.bf16.mxu0 %v1251
    %1956 = vmatmul.mubr.bf16.gmra.mrb[0].mxu0 %v1250
    %v1957 = vpop.f32.mrb[0].mxu0
    %v1958 = vadd.f32 0.0, %v1957
    %v1959 = vpop.f32.mrb[0].mxu0
    %v1960 = vpop.f32.mrb[0].mxu0
    %v1961 = vadd.f32 0.0, %v1960
    %v1962 = vpop.f32.mrb[0].mxu0
    %1963 = vmatprep.mubr.bf16.mxu0 %v1256
    %1964 = vmatmul.mubr.bf16.gmra.mrb[0].mxu0 %v1255
    %v1965 = vpop.f32.mrb[0].mxu0
    %v1966 = vadd.f32 0.0, %v1965
    %v1967 = vpop.f32.mrb[0].mxu0
    %v1968 = vpop.f32.mrb[0].mxu0
    %v1969 = vadd.f32 0.0, %v1968
    %v1970 = vpop.f32.mrb[0].mxu0
    %1971 = vmatprep.mubr.bf16.mxu0 %v1261
    %1972 = vmatmul.mubr.bf16.gmra.mrb[0].mxu0 %v1260
    %v1973 = vpop.f32.mrb[0].mxu0
    %v1974 = vadd.f32 0.0, %v1973
    %v1975 = vpop.f32.mrb[0].mxu0
    %v1976 = vpop.f32.mrb[0].mxu0
    %v1977 = vadd.f32 0.0, %v1976
    %v1978 = vpop.f32.mrb[0].mxu0
    %1979 = vmatprep.mubr.bf16.mxu0 %v1266
    %1980 = vmatmul.mubr.bf16.gmra.mrb[0].mxu0 %v1265
    %v1981 = vpop.f32.mrb[0].mxu0
    %v1982 = vadd.f32 0.0, %v1981
    %v1983 = vpop.f32.mrb[0].mxu0
    %v1984 = vpop.f32.mrb[0].mxu0
    %v1985 = vadd.f32 0.0, %v1984
    %v1986 = vpop.f32.mrb[0].mxu0
    %1987 = vmatprep.mubr.bf16.mxu0 %v1271
    %1988 = vmatmul.mubr.bf16.gmra.mrb[0].mxu0 %v1270
    %v1989 = vpop.f32.mrb[0].mxu0
    %v1990 = vadd.f32 0.0, %v1989
    %v1991 = vpop.f32.mrb[0].mxu0
    %v1992 = vpop.f32.mrb[0].mxu0
    %v1993 = vadd.f32 0.0, %v1992
    %v1994 = vpop.f32.mrb[0].mxu0
    %1995 = vmatprep.mubr.bf16.mxu0 %v1276
    %1996 = vmatmul.mubr.bf16.gmra.mrb[0].mxu0 %v1275
    %v1997 = vpop.f32.mrb[0].mxu0
    %v1998 = vadd.f32 0.0, %v1997
    %v1999 = vpop.f32.mrb[0].mxu0
    %v2000 = vpop.f32.mrb[0].mxu0
    %v2001 = vadd.f32 0.0, %v2000
    %v2002 = vpop.f32.mrb[0].mxu0
    %2003 = vmatprep.mubr.bf16.mxu0 %v1281
    %2004 = vmatmul.mubr.bf16.gmra.mrb[0].mxu0 %v1280
    %v2005 = vpop.f32.mrb[0].mxu0
    %v2006 = vadd.f32 0.0, %v2005
    %v2007 = vpop.f32.mrb[0].mxu0
    %v2008 = vpop.f32.mrb[0].mxu0
    %v2009 = vadd.f32 0.0, %v2008
    %v2010 = vpop.f32.mrb[0].mxu0
    %2011 = vmatprep.mubr.bf16.mxu0 %v1286
    %2012 = vmatmul.mubr.bf16.gmra.mrb[0].mxu0 %v1285
    %v2013 = vpop.f32.mrb[0].mxu0
    %v2014 = vadd.f32 0.0, %v2013
    %v2015 = vpop.f32.mrb[0].mxu0
    %v2016 = vpop.f32.mrb[0].mxu0
    %v2017 = vadd.f32 0.0, %v2016
    %v2018 = vpop.f32.mrb[0].mxu0
    %2019 = vmatprep.mubr.bf16.mxu0 %v1291
    %2020 = vmatmul.mubr.bf16.gmra.mrb[0].mxu0 %v1290
    %v2021 = vpop.f32.mrb[0].mxu0
    %v2022 = vadd.f32 0.0, %v2021
    %v2023 = vpop.f32.mrb[0].mxu0
    %v2024 = vpop.f32.mrb[0].mxu0
    %v2025 = vadd.f32 0.0, %v2024
    %v2026 = vpop.f32.mrb[0].mxu0
    %2027 = vmatprep.mubr.bf16.mxu0 %v1296
    %2028 = vmatmul.mubr.bf16.gmra.mrb[0].mxu0 %v1295
    %v2029 = vpop.f32.mrb[0].mxu0
    %v2030 = vadd.f32 0.0, %v2029
    %v2031 = vpop.f32.mrb[0].mxu0
    %v2032 = vpop.f32.mrb[0].mxu0
    %v2033 = vadd.f32 0.0, %v2032
    %v2034 = vpop.f32.mrb[0].mxu0
    %2035 = vmatprep.mubr.bf16.mxu0 %v1301
    %2036 = vmatmul.mubr.bf16.gmra.mrb[0].mxu0 %v1300
    %v2037 = vpop.f32.mrb[0].mxu0
    %v2038 = vadd.f32 0.0, %v2037
    %v2039 = vpop.f32.mrb[0].mxu0
    %v2040 = vpop.f32.mrb[0].mxu0
    %v2041 = vadd.f32 0.0, %v2040
    %v2042 = vpop.f32.mrb[0].mxu0
    %2043 = vmatprep.mubr.bf16.mxu0 %v1306
    %2044 = vmatmul.mubr.bf16.gmra.mrb[0].mxu0 %v1305
    %v2045 = vpop.f32.mrb[0].mxu0
    %v2046 = vadd.f32 0.0, %v2045
    %v2047 = vpop.f32.mrb[0].mxu0
    %v2048 = vpop.f32.mrb[0].mxu0
    %v2049 = vadd.f32 0.0, %v2048
    %v2050 = vpop.f32.mrb[0].mxu0
    %2051 = vmatprep.mubr.bf16.mxu0 %v1311
    %2052 = vmatmul.mubr.bf16.gmra.mrb[0].mxu0 %v1310
    %v2053 = vpop.f32.mrb[0].mxu0
    %v2054 = vadd.f32 0.0, %v2053
    %v2055 = vpop.f32.mrb[0].mxu0
    %v2056 = vpop.f32.mrb[0].mxu0
    %v2057 = vadd.f32 0.0, %v2056
    %v2058 = vpop.f32.mrb[0].mxu0
    %2059 = vmatprep.mubr.bf16.mxu0 %v1316
    %2060 = vmatmul.mubr.bf16.gmra.mrb[0].mxu0 %v1315
    %v2061 = vpop.f32.mrb[0].mxu0
    %v2062 = vadd.f32 0.0, %v2061
    %v2063 = vpop.f32.mrb[0].mxu0
    %v2064 = vpop.f32.mrb[0].mxu0
    %v2065 = vadd.f32 0.0, %v2064
    %v2066 = vpop.f32.mrb[0].mxu0
    %2067 = vmatprep.mubr.bf16.mxu0 %v1321
    %2068 = vmatmul.mubr.bf16.gmra.mrb[0].mxu0 %v1320
    %v2069 = vpop.f32.mrb[0].mxu0
    %v2070 = vadd.f32 0.0, %v2069
    %v2071 = vpop.f32.mrb[0].mxu0
    %v2072 = vpop.f32.mrb[0].mxu0
    %v2073 = vadd.f32 0.0, %v2072
    %v2074 = vpop.f32.mrb[0].mxu0
    %2075 = vmatprep.mubr.bf16.mxu0 %v1326
    %2076 = vmatmul.mubr.bf16.gmra.mrb[0].mxu0 %v1325
    %v2077 = vpop.f32.mrb[0].mxu0
    %v2078 = vadd.f32 0.0, %v2077
    %v2079 = vpop.f32.mrb[0].mxu0
    %v2080 = vpop.f32.mrb[0].mxu0
    %v2081 = vadd.f32 0.0, %v2080
    %v2082 = vpop.f32.mrb[0].mxu0
    %2083 = vmatprep.mubr.bf16.mxu0 %v1331
    %2084 = vmatmul.mubr.bf16.gmra.mrb[0].mxu0 %v1330
    %v2085 = vpop.f32.mrb[0].mxu0
    %v2086 = vadd.f32 0.0, %v2085
    %v2087 = vpop.f32.mrb[0].mxu0
    %v2088 = vpop.f32.mrb[0].mxu0
    %v2089 = vadd.f32 0.0, %v2088
    %v2090 = vpop.f32.mrb[0].mxu0
    %2091 = vmatprep.mubr.bf16.mxu0 %v1336
    %2092 = vmatmul.mubr.bf16.gmra.mrb[0].mxu0 %v1335
    %v2093 = vpop.f32.mrb[0].mxu0
    %v2094 = vadd.f32 0.0, %v2093
    %v2095 = vpop.f32.mrb[0].mxu0
    %v2096 = vpop.f32.mrb[0].mxu0
    %v2097 = vadd.f32 0.0, %v2096
    %v2098 = vpop.f32.mrb[0].mxu0
    %2099 = vmatprep.mubr.bf16.mxu0 %v1341
    %2100 = vmatmul.mubr.bf16.gmra.mrb[0].mxu0 %v1340
    %v2101 = vpop.f32.mrb[0].mxu0
    %v2102 = vadd.f32 0.0, %v2101
    %v2103 = vpop.f32.mrb[0].mxu0
    %v2104 = vpop.f32.mrb[0].mxu0
    %v2105 = vadd.f32 0.0, %v2104
    %v2106 = vpop.f32.mrb[0].mxu0
    %2107 = vmatprep.mubr.bf16.mxu0 %v1346
    %2108 = vmatmul.mubr.bf16.gmra.mrb[0].mxu0 %v1345
    %v2109 = vpop.f32.mrb[0].mxu0
    %v2110 = vadd.f32 0.0, %v2109
    %v2111 = vpop.f32.mrb[0].mxu0
    %v2112 = vpop.f32.mrb[0].mxu0
    %v2113 = vadd.f32 0.0, %v2112
    %v2114 = vpop.f32.mrb[0].mxu0
    %2115 = vmatprep.mubr.bf16.mxu0 %v1351
    %2116 = vmatmul.mubr.bf16.gmra.mrb[0].mxu0 %v1350
    %v2117 = vpop.f32.mrb[0].mxu0
    %v2118 = vadd.f32 0.0, %v2117
    %v2119 = vpop.f32.mrb[0].mxu0
    %v2120 = vpop.f32.mrb[0].mxu0
    %v2121 = vadd.f32 0.0, %v2120
    %v2122 = vpop.f32.mrb[0].mxu0
    %2123 = vmatprep.mubr.bf16.mxu0 %v1356
    %2124 = vmatmul.mubr.bf16.gmra.mrb[0].mxu0 %v1355
    %v2125 = vpop.f32.mrb[0].mxu0
    %v2126 = vadd.f32 0.0, %v2125
    %v2127 = vpop.f32.mrb[0].mxu0
    %v2128 = vpop.f32.mrb[0].mxu0
    %v2129 = vadd.f32 0.0, %v2128
    %v2130 = vpop.f32.mrb[0].mxu0
    %2131 = vmatprep.mubr.bf16.mxu0 %v1361
    %2132 = vmatmul.mubr.bf16.gmra.mrb[0].mxu0 %v1360
    %v2133 = vpop.f32.mrb[0].mxu0
    %v2134 = vadd.f32 0.0, %v2133
    %v2135 = vpop.f32.mrb[0].mxu0
    %v2136 = vpop.f32.mrb[0].mxu0
    %v2137 = vadd.f32 0.0, %v2136
    %v2138 = vpop.f32.mrb[0].mxu0
    %2139 = vmatprep.mubr.bf16.mxu0 %v1366
    %2140 = vmatmul.mubr.bf16.gmra.mrb[0].mxu0 %v1365
    %v2141 = vpop.f32.mrb[0].mxu0
    %v2142 = vadd.f32 0.0, %v2141
    %v2143 = vpop.f32.mrb[0].mxu0
    %v2144 = vpop.f32.mrb[0].mxu0
    %v2145 = vadd.f32 0.0, %v2144
    %v2146 = vpop.f32.mrb[0].mxu0
    %2147 = vmatprep.mubr.bf16.mxu0 %v1371
    %2148 = vmatmul.mubr.bf16.gmra.mrb[0].mxu0 %v1370
    %v2149 = vpop.f32.mrb[0].mxu0
    %v2150 = vadd.f32 0.0, %v2149
    %v2151 = vpop.f32.mrb[0].mxu0
    %v2152 = vpop.f32.mrb[0].mxu0
    %v2153 = vadd.f32 0.0, %v2152
    %v2154 = vpop.f32.mrb[0].mxu0
    %2155 = vmatprep.mubr.bf16.mxu0 %v1376
    %2156 = vmatmul.mubr.bf16.gmra.mrb[0].mxu0 %v1375
    %v2157 = vpop.f32.mrb[0].mxu0
    %v2158 = vadd.f32 0.0, %v2157
    %v2159 = vpop.f32.mrb[0].mxu0
    %v2160 = vpop.f32.mrb[0].mxu0
    %v2161 = vadd.f32 0.0, %v2160
    %v2162 = vpop.f32.mrb[0].mxu0
    %2163 = vmatprep.mubr.bf16.mxu0 %v1381
    %2164 = vmatmul.mubr.bf16.gmra.mrb[0].mxu0 %v1380
    %v2165 = vpop.f32.mrb[0].mxu0
    %v2166 = vadd.f32 0.0, %v2165
    %v2167 = vpop.f32.mrb[0].mxu0
    %v2168 = vpop.f32.mrb[0].mxu0
    %v2169 = vadd.f32 0.0, %v2168
    %v2170 = vpop.f32.mrb[0].mxu0
    %2171 = vmatprep.mubr.bf16.mxu0 %v1386
    %2172 = vmatmul.mubr.bf16.gmra.mrb[0].mxu0 %v1385
    %v2173 = vpop.f32.mrb[0].mxu0
    %v2174 = vadd.f32 0.0, %v2173
    %v2175 = vpop.f32.mrb[0].mxu0
    %v2176 = vpop.f32.mrb[0].mxu0
    %v2177 = vadd.f32 0.0, %v2176
    %v2178 = vpop.f32.mrb[0].mxu0
    %2179 = vmatprep.mubr.bf16.mxu0 %v1391
    %2180 = vmatmul.mubr.bf16.gmra.mrb[0].mxu0 %v1390
    %v2181 = vpop.f32.mrb[0].mxu0
    %v2182 = vadd.f32 0.0, %v2181
    %v2183 = vpop.f32.mrb[0].mxu0
    %v2184 = vpop.f32.mrb[0].mxu0
    %v2185 = vadd.f32 0.0, %v2184
    %v2186 = vpop.f32.mrb[0].mxu0
    %2187 = vdwg.mxu0
    %2188 = vmatprep.subr.bf16.mxu0 0
    %2189 = vmatpush1.bf16.msra.mxu0 %v1771
    %2190 = vmatprep.subr.bf16.mxu0 0
    %2191 = vmatpush1.bf16.msra.mxu0 %v1772
    %2192 = vmatprep.subr.bf16.mxu0 0
    %2193 = vmatpush1.bf16.msra.mxu0 %v1773
    %2194 = vmatprep.subr.bf16.mxu0 0
    %2195 = vmatpush1.bf16.msra.mxu0 %v1774
    %2196 = vmatprep.subr.bf16.mxu0 0
    %2197 = vmatpush1.bf16.msra.mxu0 %v1775
    %2198 = vmatprep.subr.bf16.mxu0 0
    %2199 = vmatpush1.bf16.msra.mxu0 %v1776
    %2200 = vmatprep.subr.bf16.mxu0 0
    %2201 = vmatpush1.bf16.msra.mxu0 %v1777
    %2202 = vmatprep.subr.bf16.mxu0 0
    %2203 = vmatpush1.bf16.msra.mxu0 %v1778
    %2204 = vmatprep.subr.bf16.mxu0 0
    %2205 = vmatpush1.bf16.msra.mxu0 %v1779
    %2206 = vmatprep.subr.bf16.mxu0 0
    %2207 = vmatpush1.bf16.msra.mxu0 %v1780
    %2208 = vmatprep.subr.bf16.mxu0 0
    %2209 = vmatpush1.bf16.msra.mxu0 %v1781
    %2210 = vmatprep.subr.bf16.mxu0 0
    %2211 = vmatpush1.bf16.msra.mxu0 %v1782
    %2212 = vmatprep.subr.bf16.mxu0 0
    %2213 = vmatpush1.bf16.msra.mxu0 %v1783
    %2214 = vmatprep.subr.bf16.mxu0 0
    %2215 = vmatpush1.bf16.msra.mxu0 %v1784
    %2216 = vmatprep.subr.bf16.mxu0 0
    %2217 = vmatpush1.bf16.msra.mxu0 %v1785
    %2218 = vmatprep.subr.bf16.mxu0 0
    %2219 = vmatpush1.bf16.msra.mxu0 %v1786
    %2220 = vmatprep.mubr.bf16.mxu0 %v1198
    %2221 = vmatmul.mubr.bf16.gmra.mrb[0].mxu0 %v1197
    %v2222 = vpop.f32.mrb[0].mxu0
    %v2223 = vadd.f32 %v1870, %v2222
    %v2224 = vpop.f32.mrb[0].mxu0
    %v2225 = vpop.f32.mrb[0].mxu0
    %v2226 = vadd.f32 %v1873, %v2225
    %v2227 = vpop.f32.mrb[0].mxu0
    %2228 = vmatprep.mubr.bf16.mxu0 %v1203
    %2229 = vmatmul.mubr.bf16.gmra.mrb[0].mxu0 %v1202
    %v2230 = vpop.f32.mrb[0].mxu0
    %v2231 = vadd.f32 %v1878, %v2230
    %v2232 = vpop.f32.mrb[0].mxu0
    %v2233 = vpop.f32.mrb[0].mxu0
    %v2234 = vadd.f32 %v1881, %v2233
    %v2235 = vpop.f32.mrb[0].mxu0
    %2236 = vmatprep.mubr.bf16.mxu0 %v1208
    %2237 = vmatmul.mubr.bf16.gmra.mrb[0].mxu0 %v1207
    %v2238 = vpop.f32.mrb[0].mxu0
    %v2239 = vadd.f32 %v1886, %v2238
    %v2240 = vpop.f32.mrb[0].mxu0
    %v2241 = vpop.f32.mrb[0].mxu0
    %v2242 = vadd.f32 %v1889, %v2241
    %v2243 = vpop.f32.mrb[0].mxu0
    %2244 = vmatprep.mubr.bf16.mxu0 %v1213
    %2245 = vmatmul.mubr.bf16.gmra.mrb[0].mxu0 %v1212
    %v2246 = vpop.f32.mrb[0].mxu0
    %v2247 = vadd.f32 %v1894, %v2246
    %v2248 = vpop.f32.mrb[0].mxu0
    %v2249 = vpop.f32.mrb[0].mxu0
    %v2250 = vadd.f32 %v1897, %v2249
    %v2251 = vpop.f32.mrb[0].mxu0
    %2252 = vmatprep.mubr.bf16.mxu0 %v1218
    %2253 = vmatmul.mubr.bf16.gmra.mrb[0].mxu0 %v1217
    %v2254 = vpop.f32.mrb[0].mxu0
    %v2255 = vadd.f32 %v1902, %v2254
    %v2256 = vpop.f32.mrb[0].mxu0
    %v2257 = vpop.f32.mrb[0].mxu0
    %v2258 = vadd.f32 %v1905, %v2257
    %v2259 = vpop.f32.mrb[0].mxu0
    %2260 = vmatprep.mubr.bf16.mxu0 %v1223
    %2261 = vmatmul.mubr.bf16.gmra.mrb[0].mxu0 %v1222
    %v2262 = vpop.f32.mrb[0].mxu0
    %v2263 = vadd.f32 %v1910, %v2262
    %v2264 = vpop.f32.mrb[0].mxu0
    %v2265 = vpop.f32.mrb[0].mxu0
    %v2266 = vadd.f32 %v1913, %v2265
    %v2267 = vpop.f32.mrb[0].mxu0
    %2268 = vmatprep.mubr.bf16.mxu0 %v1228
    %2269 = vmatmul.mubr.bf16.gmra.mrb[0].mxu0 %v1227
    %v2270 = vpop.f32.mrb[0].mxu0
    %v2271 = vadd.f32 %v1918, %v2270
    %v2272 = vpop.f32.mrb[0].mxu0
    %v2273 = vpop.f32.mrb[0].mxu0
    %v2274 = vadd.f32 %v1921, %v2273
    %v2275 = vpop.f32.mrb[0].mxu0
    %2276 = vmatprep.mubr.bf16.mxu0 %v1233
    %2277 = vmatmul.mubr.bf16.gmra.mrb[0].mxu0 %v1232
    %v2278 = vpop.f32.mrb[0].mxu0
    %v2279 = vadd.f32 %v1926, %v2278
    %v2280 = vpop.f32.mrb[0].mxu0
    %v2281 = vpop.f32.mrb[0].mxu0
    %v2282 = vadd.f32 %v1929, %v2281
    %v2283 = vpop.f32.mrb[0].mxu0
    %2284 = vmatprep.mubr.bf16.mxu0 %v1238
    %2285 = vmatmul.mubr.bf16.gmra.mrb[0].mxu0 %v1237
    %v2286 = vpop.f32.mrb[0].mxu0
    %v2287 = vadd.f32 %v1934, %v2286
    %v2288 = vpop.f32.mrb[0].mxu0
    %v2289 = vpop.f32.mrb[0].mxu0
    %v2290 = vadd.f32 %v1937, %v2289
    %v2291 = vpop.f32.mrb[0].mxu0
    %2292 = vmatprep.mubr.bf16.mxu0 %v1243
    %2293 = vmatmul.mubr.bf16.gmra.mrb[0].mxu0 %v1242
    %v2294 = vpop.f32.mrb[0].mxu0
    %v2295 = vadd.f32 %v1942, %v2294
    %v2296 = vpop.f32.mrb[0].mxu0
    %v2297 = vpop.f32.mrb[0].mxu0
    %v2298 = vadd.f32 %v1945, %v2297
    %v2299 = vpop.f32.mrb[0].mxu0
    %2300 = vmatprep.mubr.bf16.mxu0 %v1248
    %2301 = vmatmul.mubr.bf16.gmra.mrb[0].mxu0 %v1247
    %v2302 = vpop.f32.mrb[0].mxu0
    %v2303 = vadd.f32 %v1950, %v2302
    %v2304 = vpop.f32.mrb[0].mxu0
    %v2305 = vpop.f32.mrb[0].mxu0
    %v2306 = vadd.f32 %v1953, %v2305
    %v2307 = vpop.f32.mrb[0].mxu0
    %2308 = vmatprep.mubr.bf16.mxu0 %v1253
    %2309 = vmatmul.mubr.bf16.gmra.mrb[0].mxu0 %v1252
    %v2310 = vpop.f32.mrb[0].mxu0
    %v2311 = vadd.f32 %v1958, %v2310
    %v2312 = vpop.f32.mrb[0].mxu0
    %v2313 = vpop.f32.mrb[0].mxu0
    %v2314 = vadd.f32 %v1961, %v2313
    %v2315 = vpop.f32.mrb[0].mxu0
    %2316 = vmatprep.mubr.bf16.mxu0 %v1258
    %2317 = vmatmul.mubr.bf16.gmra.mrb[0].mxu0 %v1257
    %v2318 = vpop.f32.mrb[0].mxu0
    %v2319 = vadd.f32 %v1966, %v2318
    %v2320 = vpop.f32.mrb[0].mxu0
    %v2321 = vpop.f32.mrb[0].mxu0
    %v2322 = vadd.f32 %v1969, %v2321
    %v2323 = vpop.f32.mrb[0].mxu0
    %2324 = vmatprep.mubr.bf16.mxu0 %v1263
    %2325 = vmatmul.mubr.bf16.gmra.mrb[0].mxu0 %v1262
    %v2326 = vpop.f32.mrb[0].mxu0
    %v2327 = vadd.f32 %v1974, %v2326
    %v2328 = vpop.f32.mrb[0].mxu0
    %v2329 = vpop.f32.mrb[0].mxu0
    %v2330 = vadd.f32 %v1977, %v2329
    %v2331 = vpop.f32.mrb[0].mxu0
    %2332 = vmatprep.mubr.bf16.mxu0 %v1268
    %2333 = vmatmul.mubr.bf16.gmra.mrb[0].mxu0 %v1267
    %v2334 = vpop.f32.mrb[0].mxu0
    %v2335 = vadd.f32 %v1982, %v2334
    %v2336 = vpop.f32.mrb[0].mxu0
    %v2337 = vpop.f32.mrb[0].mxu0
    %v2338 = vadd.f32 %v1985, %v2337
    %v2339 = vpop.f32.mrb[0].mxu0
    %2340 = vmatprep.mubr.bf16.mxu0 %v1273
    %2341 = vmatmul.mubr.bf16.gmra.mrb[0].mxu0 %v1272
    %v2342 = vpop.f32.mrb[0].mxu0
    %v2343 = vadd.f32 %v1990, %v2342
    %v2344 = vpop.f32.mrb[0].mxu0
    %v2345 = vpop.f32.mrb[0].mxu0
    %v2346 = vadd.f32 %v1993, %v2345
    %v2347 = vpop.f32.mrb[0].mxu0
    %2348 = vmatprep.mubr.bf16.mxu0 %v1278
    %2349 = vmatmul.mubr.bf16.gmra.mrb[0].mxu0 %v1277
    %v2350 = vpop.f32.mrb[0].mxu0
    %v2351 = vadd.f32 %v1998, %v2350
    %v2352 = vpop.f32.mrb[0].mxu0
    %v2353 = vpop.f32.mrb[0].mxu0
    %v2354 = vadd.f32 %v2001, %v2353
    %v2355 = vpop.f32.mrb[0].mxu0
    %2356 = vmatprep.mubr.bf16.mxu0 %v1283
    %2357 = vmatmul.mubr.bf16.gmra.mrb[0].mxu0 %v1282
    %v2358 = vpop.f32.mrb[0].mxu0
    %v2359 = vadd.f32 %v2006, %v2358
    %v2360 = vpop.f32.mrb[0].mxu0
    %v2361 = vpop.f32.mrb[0].mxu0
    %v2362 = vadd.f32 %v2009, %v2361
    %v2363 = vpop.f32.mrb[0].mxu0
    %2364 = vmatprep.mubr.bf16.mxu0 %v1288
    %2365 = vmatmul.mubr.bf16.gmra.mrb[0].mxu0 %v1287
    %v2366 = vpop.f32.mrb[0].mxu0
    %v2367 = vadd.f32 %v2014, %v2366
    %v2368 = vpop.f32.mrb[0].mxu0
    %v2369 = vpop.f32.mrb[0].mxu0
    %v2370 = vadd.f32 %v2017, %v2369
    %v2371 = vpop.f32.mrb[0].mxu0
    %2372 = vmatprep.mubr.bf16.mxu0 %v1293
    %2373 = vmatmul.mubr.bf16.gmra.mrb[0].mxu0 %v1292
    %v2374 = vpop.f32.mrb[0].mxu0
    %v2375 = vadd.f32 %v2022, %v2374
    %v2376 = vpop.f32.mrb[0].mxu0
    %v2377 = vpop.f32.mrb[0].mxu0
    %v2378 = vadd.f32 %v2025, %v2377
    %v2379 = vpop.f32.mrb[0].mxu0
    %2380 = vmatprep.mubr.bf16.mxu0 %v1298
    %2381 = vmatmul.mubr.bf16.gmra.mrb[0].mxu0 %v1297
    %v2382 = vpop.f32.mrb[0].mxu0
    %v2383 = vadd.f32 %v2030, %v2382
    %v2384 = vpop.f32.mrb[0].mxu0
    %v2385 = vpop.f32.mrb[0].mxu0
    %v2386 = vadd.f32 %v2033, %v2385
    %v2387 = vpop.f32.mrb[0].mxu0
    %2388 = vmatprep.mubr.bf16.mxu0 %v1303
    %2389 = vmatmul.mubr.bf16.gmra.mrb[0].mxu0 %v1302
    %v2390 = vpop.f32.mrb[0].mxu0
    %v2391 = vadd.f32 %v2038, %v2390
    %v2392 = vpop.f32.mrb[0].mxu0
    %v2393 = vpop.f32.mrb[0].mxu0
    %v2394 = vadd.f32 %v2041, %v2393
    %v2395 = vpop.f32.mrb[0].mxu0
    %2396 = vmatprep.mubr.bf16.mxu0 %v1308
    %2397 = vmatmul.mubr.bf16.gmra.mrb[0].mxu0 %v1307
    %v2398 = vpop.f32.mrb[0].mxu0
    %v2399 = vadd.f32 %v2046, %v2398
    %v2400 = vpop.f32.mrb[0].mxu0
    %v2401 = vpop.f32.mrb[0].mxu0
    %v2402 = vadd.f32 %v2049, %v2401
    %v2403 = vpop.f32.mrb[0].mxu0
    %2404 = vmatprep.mubr.bf16.mxu0 %v1313
    %2405 = vmatmul.mubr.bf16.gmra.mrb[0].mxu0 %v1312
    %v2406 = vpop.f32.mrb[0].mxu0
    %v2407 = vadd.f32 %v2054, %v2406
    %v2408 = vpop.f32.mrb[0].mxu0
    %v2409 = vpop.f32.mrb[0].mxu0
    %v2410 = vadd.f32 %v2057, %v2409
    %v2411 = vpop.f32.mrb[0].mxu0
    %2412 = vmatprep.mubr.bf16.mxu0 %v1318
    %2413 = vmatmul.mubr.bf16.gmra.mrb[0].mxu0 %v1317
    %v2414 = vpop.f32.mrb[0].mxu0
    %v2415 = vadd.f32 %v2062, %v2414
    %v2416 = vpop.f32.mrb[0].mxu0
    %v2417 = vpop.f32.mrb[0].mxu0
    %v2418 = vadd.f32 %v2065, %v2417
    %v2419 = vpop.f32.mrb[0].mxu0
    %2420 = vmatprep.mubr.bf16.mxu0 %v1323
    %2421 = vmatmul.mubr.bf16.gmra.mrb[0].mxu0 %v1322
    %v2422 = vpop.f32.mrb[0].mxu0
    %v2423 = vadd.f32 %v2070, %v2422
    %v2424 = vpop.f32.mrb[0].mxu0
    %v2425 = vpop.f32.mrb[0].mxu0
    %v2426 = vadd.f32 %v2073, %v2425
    %v2427 = vpop.f32.mrb[0].mxu0
    %2428 = vmatprep.mubr.bf16.mxu0 %v1328
    %2429 = vmatmul.mubr.bf16.gmra.mrb[0].mxu0 %v1327
    %v2430 = vpop.f32.mrb[0].mxu0
    %v2431 = vadd.f32 %v2078, %v2430
    %v2432 = vpop.f32.mrb[0].mxu0
    %v2433 = vpop.f32.mrb[0].mxu0
    %v2434 = vadd.f32 %v2081, %v2433
    %v2435 = vpop.f32.mrb[0].mxu0
    %2436 = vmatprep.mubr.bf16.mxu0 %v1333
    %2437 = vmatmul.mubr.bf16.gmra.mrb[0].mxu0 %v1332
    %v2438 = vpop.f32.mrb[0].mxu0
    %v2439 = vadd.f32 %v2086, %v2438
    %v2440 = vpop.f32.mrb[0].mxu0
    %v2441 = vpop.f32.mrb[0].mxu0
    %v2442 = vadd.f32 %v2089, %v2441
    %v2443 = vpop.f32.mrb[0].mxu0
    %2444 = vmatprep.mubr.bf16.mxu0 %v1338
    %2445 = vmatmul.mubr.bf16.gmra.mrb[0].mxu0 %v1337
    %v2446 = vpop.f32.mrb[0].mxu0
    %v2447 = vadd.f32 %v2094, %v2446
    %v2448 = vpop.f32.mrb[0].mxu0
    %v2449 = vpop.f32.mrb[0].mxu0
    %v2450 = vadd.f32 %v2097, %v2449
    %v2451 = vpop.f32.mrb[0].mxu0
    %2452 = vmatprep.mubr.bf16.mxu0 %v1343
    %2453 = vmatmul.mubr.bf16.gmra.mrb[0].mxu0 %v1342
    %v2454 = vpop.f32.mrb[0].mxu0
    %v2455 = vadd.f32 %v2102, %v2454
    %v2456 = vpop.f32.mrb[0].mxu0
    %v2457 = vpop.f32.mrb[0].mxu0
    %v2458 = vadd.f32 %v2105, %v2457
    %v2459 = vpop.f32.mrb[0].mxu0
    %2460 = vmatprep.mubr.bf16.mxu0 %v1348
    %2461 = vmatmul.mubr.bf16.gmra.mrb[0].mxu0 %v1347
    %v2462 = vpop.f32.mrb[0].mxu0
    %v2463 = vadd.f32 %v2110, %v2462
    %v2464 = vpop.f32.mrb[0].mxu0
    %v2465 = vpop.f32.mrb[0].mxu0
    %v2466 = vadd.f32 %v2113, %v2465
    %v2467 = vpop.f32.mrb[0].mxu0
    %2468 = vmatprep.mubr.bf16.mxu0 %v1353
    %2469 = vmatmul.mubr.bf16.gmra.mrb[0].mxu0 %v1352
    %v2470 = vpop.f32.mrb[0].mxu0
    %v2471 = vadd.f32 %v2118, %v2470
    %v2472 = vpop.f32.mrb[0].mxu0
    %v2473 = vpop.f32.mrb[0].mxu0
    %v2474 = vadd.f32 %v2121, %v2473
    %v2475 = vpop.f32.mrb[0].mxu0
    %2476 = vmatprep.mubr.bf16.mxu0 %v1358
    %2477 = vmatmul.mubr.bf16.gmra.mrb[0].mxu0 %v1357
    %v2478 = vpop.f32.mrb[0].mxu0
    %v2479 = vadd.f32 %v2126, %v2478
    %v2480 = vpop.f32.mrb[0].mxu0
    %v2481 = vpop.f32.mrb[0].mxu0
    %v2482 = vadd.f32 %v2129, %v2481
    %v2483 = vpop.f32.mrb[0].mxu0
    %2484 = vmatprep.mubr.bf16.mxu0 %v1363
    %2485 = vmatmul.mubr.bf16.gmra.mrb[0].mxu0 %v1362
    %v2486 = vpop.f32.mrb[0].mxu0
    %v2487 = vadd.f32 %v2134, %v2486
    %v2488 = vpop.f32.mrb[0].mxu0
    %v2489 = vpop.f32.mrb[0].mxu0
    %v2490 = vadd.f32 %v2137, %v2489
    %v2491 = vpop.f32.mrb[0].mxu0
    %2492 = vmatprep.mubr.bf16.mxu0 %v1368
    %2493 = vmatmul.mubr.bf16.gmra.mrb[0].mxu0 %v1367
    %v2494 = vpop.f32.mrb[0].mxu0
    %v2495 = vadd.f32 %v2142, %v2494
    %v2496 = vpop.f32.mrb[0].mxu0
    %v2497 = vpop.f32.mrb[0].mxu0
    %v2498 = vadd.f32 %v2145, %v2497
    %v2499 = vpop.f32.mrb[0].mxu0
    %2500 = vmatprep.mubr.bf16.mxu0 %v1373
    %2501 = vmatmul.mubr.bf16.gmra.mrb[0].mxu0 %v1372
    %v2502 = vpop.f32.mrb[0].mxu0
    %v2503 = vadd.f32 %v2150, %v2502
    %v2504 = vpop.f32.mrb[0].mxu0
    %v2505 = vpop.f32.mrb[0].mxu0
    %v2506 = vadd.f32 %v2153, %v2505
    %v2507 = vpop.f32.mrb[0].mxu0
    %2508 = vmatprep.mubr.bf16.mxu0 %v1378
    %2509 = vmatmul.mubr.bf16.gmra.mrb[0].mxu0 %v1377
    %v2510 = vpop.f32.mrb[0].mxu0
    %v2511 = vadd.f32 %v2158, %v2510
    %v2512 = vpop.f32.mrb[0].mxu0
    %v2513 = vpop.f32.mrb[0].mxu0
    %v2514 = vadd.f32 %v2161, %v2513
    %v2515 = vpop.f32.mrb[0].mxu0
    %2516 = vmatprep.mubr.bf16.mxu0 %v1383
    %2517 = vmatmul.mubr.bf16.gmra.mrb[0].mxu0 %v1382
    %v2518 = vpop.f32.mrb[0].mxu0
    %v2519 = vadd.f32 %v2166, %v2518
    %v2520 = vpop.f32.mrb[0].mxu0
    %v2521 = vpop.f32.mrb[0].mxu0
    %v2522 = vadd.f32 %v2169, %v2521
    %v2523 = vpop.f32.mrb[0].mxu0
    %2524 = vmatprep.mubr.bf16.mxu0 %v1388
    %2525 = vmatmul.mubr.bf16.gmra.mrb[0].mxu0 %v1387
    %v2526 = vpop.f32.mrb[0].mxu0
    %v2527 = vadd.f32 %v2174, %v2526
    %v2528 = vpop.f32.mrb[0].mxu0
    %v2529 = vpop.f32.mrb[0].mxu0
    %v2530 = vadd.f32 %v2177, %v2529
    %v2531 = vpop.f32.mrb[0].mxu0
    %2532 = vmatprep.mubr.bf16.mxu0 %v1393
    %2533 = vmatmul.mubr.bf16.gmra.mrb[0].mxu0 %v1392
    %v2534 = vpop.f32.mrb[0].mxu0
    %v2535 = vadd.f32 %v2182, %v2534
    %v2536 = vpop.f32.mrb[0].mxu0
    %v2537 = vpop.f32.mrb[0].mxu0
    %v2538 = vadd.f32 %v2185, %v2537
    %v2539 = vpop.f32.mrb[0].mxu0
    %2540 = vdwg.mxu0
    %2541 = vmatprep.subr.bf16.mxu0 0
    %2542 = vmatpush1.bf16.msra.mxu0 %v1787
    %2543 = vmatprep.subr.bf16.mxu0 0
    %2544 = vmatpush1.bf16.msra.mxu0 %v1788
    %2545 = vmatprep.subr.bf16.mxu0 0
    %2546 = vmatpush1.bf16.msra.mxu0 %v1789
    %2547 = vmatprep.subr.bf16.mxu0 0
    %2548 = vmatpush1.bf16.msra.mxu0 %v1790
    %2549 = vmatprep.subr.bf16.mxu0 0
    %2550 = vmatpush1.bf16.msra.mxu0 %v1791
    %2551 = vmatprep.subr.bf16.mxu0 0
    %2552 = vmatpush1.bf16.msra.mxu0 %v1792
    %2553 = vmatprep.subr.bf16.mxu0 0
    %2554 = vmatpush1.bf16.msra.mxu0 %v1793
    %2555 = vmatprep.subr.bf16.mxu0 0
    %2556 = vmatpush1.bf16.msra.mxu0 %v1794
    %2557 = vmatprep.subr.bf16.mxu0 0
    %2558 = vmatpush1.bf16.msra.mxu0 0
    %2559 = vmatprep.subr.bf16.mxu0 0
    %2560 = vmatpush1.bf16.msra.mxu0 0
    %2561 = vmatprep.subr.bf16.mxu0 0
    %2562 = vmatpush1.bf16.msra.mxu0 0
    %2563 = vmatprep.subr.bf16.mxu0 0
    %2564 = vmatpush1.bf16.msra.mxu0 0
    %2565 = vmatprep.subr.bf16.mxu0 0
    %2566 = vmatpush1.bf16.msra.mxu0 0
    %2567 = vmatprep.subr.bf16.mxu0 0
    %2568 = vmatpush1.bf16.msra.mxu0 0
    %2569 = vmatprep.subr.bf16.mxu0 0
    %2570 = vmatpush1.bf16.msra.mxu0 0
    %2571 = vmatprep.subr.bf16.mxu0 0
    %2572 = vmatpush1.bf16.msra.mxu0 0
    %2573 = vmatprep.mubr.bf16.mxu0 0
    %2574 = vmatmul.mubr.bf16.gmra.mrb[0].mxu0 %v1199
    %v2575 = vpop.f32.mrb[0].mxu0
    %v2576 = vadd.f32 %v2223, %v2575
    %v2577 = vpop.f32.mrb[0].mxu0
    %v2578 = vpop.f32.mrb[0].mxu0
    %v2579 = vadd.f32 %v2226, %v2578
    %v2580 = vpop.f32.mrb[0].mxu0
    %2581 = vmatprep.mubr.bf16.mxu0 0
    %2582 = vmatmul.mubr.bf16.gmra.mrb[0].mxu0 %v1204
    %v2583 = vpop.f32.mrb[0].mxu0
    %v2584 = vadd.f32 %v2231, %v2583
    %v2585 = vpop.f32.mrb[0].mxu0
    %v2586 = vpop.f32.mrb[0].mxu0
    %v2587 = vadd.f32 %v2234, %v2586
    %v2588 = vpop.f32.mrb[0].mxu0
    %2589 = vmatprep.mubr.bf16.mxu0 0
    %2590 = vmatmul.mubr.bf16.gmra.mrb[0].mxu0 %v1209
    %v2591 = vpop.f32.mrb[0].mxu0
    %v2592 = vadd.f32 %v2239, %v2591
    %v2593 = vpop.f32.mrb[0].mxu0
    %v2594 = vpop.f32.mrb[0].mxu0
    %v2595 = vadd.f32 %v2242, %v2594
    %v2596 = vpop.f32.mrb[0].mxu0
    %2597 = vmatprep.mubr.bf16.mxu0 0
    %2598 = vmatmul.mubr.bf16.gmra.mrb[0].mxu0 %v1214
    %v2599 = vpop.f32.mrb[0].mxu0
    %v2600 = vadd.f32 %v2247, %v2599
    %v2601 = vpop.f32.mrb[0].mxu0
    %v2602 = vpop.f32.mrb[0].mxu0
    %v2603 = vadd.f32 %v2250, %v2602
    %v2604 = vpop.f32.mrb[0].mxu0
    %2605 = vmatprep.mubr.bf16.mxu0 0
    %2606 = vmatmul.mubr.bf16.gmra.mrb[0].mxu0 %v1219
    %v2607 = vpop.f32.mrb[0].mxu0
    %v2608 = vadd.f32 %v2255, %v2607
    %v2609 = vpop.f32.mrb[0].mxu0
    %v2610 = vpop.f32.mrb[0].mxu0
    %v2611 = vadd.f32 %v2258, %v2610
    %v2612 = vpop.f32.mrb[0].mxu0
    %2613 = vmatprep.mubr.bf16.mxu0 0
    %2614 = vmatmul.mubr.bf16.gmra.mrb[0].mxu0 %v1224
    %v2615 = vpop.f32.mrb[0].mxu0
    %v2616 = vadd.f32 %v2263, %v2615
    %v2617 = vpop.f32.mrb[0].mxu0
    %v2618 = vpop.f32.mrb[0].mxu0
    %v2619 = vadd.f32 %v2266, %v2618
    %v2620 = vpop.f32.mrb[0].mxu0
    %2621 = vmatprep.mubr.bf16.mxu0 0
    %2622 = vmatmul.mubr.bf16.gmra.mrb[0].mxu0 %v1229
    %v2623 = vpop.f32.mrb[0].mxu0
    %v2624 = vadd.f32 %v2271, %v2623
    %v2625 = vpop.f32.mrb[0].mxu0
    %v2626 = vpop.f32.mrb[0].mxu0
    %v2627 = vadd.f32 %v2274, %v2626
    %v2628 = vpop.f32.mrb[0].mxu0
    %2629 = vmatprep.mubr.bf16.mxu0 0
    %2630 = vmatmul.mubr.bf16.gmra.mrb[0].mxu0 %v1234
    %v2631 = vpop.f32.mrb[0].mxu0
    %v2632 = vadd.f32 %v2279, %v2631
    %v2633 = vpop.f32.mrb[0].mxu0
    %v2634 = vpop.f32.mrb[0].mxu0
    %v2635 = vadd.f32 %v2282, %v2634
    %v2636 = vpop.f32.mrb[0].mxu0
    %2637 = vmatprep.mubr.bf16.mxu0 0
    %2638 = vmatmul.mubr.bf16.gmra.mrb[0].mxu0 %v1239
    %v2639 = vpop.f32.mrb[0].mxu0
    %v2640 = vadd.f32 %v2287, %v2639
    %v2641 = vpop.f32.mrb[0].mxu0
    %v2642 = vpop.f32.mrb[0].mxu0
    %v2643 = vadd.f32 %v2290, %v2642
    %v2644 = vpop.f32.mrb[0].mxu0
    %2645 = vmatprep.mubr.bf16.mxu0 0
    %2646 = vmatmul.mubr.bf16.gmra.mrb[0].mxu0 %v1244
    %v2647 = vpop.f32.mrb[0].mxu0
    %v2648 = vadd.f32 %v2295, %v2647
    %v2649 = vpop.f32.mrb[0].mxu0
    %v2650 = vpop.f32.mrb[0].mxu0
    %v2651 = vadd.f32 %v2298, %v2650
    %v2652 = vpop.f32.mrb[0].mxu0
    %2653 = vmatprep.mubr.bf16.mxu0 0
    %2654 = vmatmul.mubr.bf16.gmra.mrb[0].mxu0 %v1249
    %v2655 = vpop.f32.mrb[0].mxu0
    %v2656 = vadd.f32 %v2303, %v2655
    %v2657 = vpop.f32.mrb[0].mxu0
    %v2658 = vpop.f32.mrb[0].mxu0
    %v2659 = vadd.f32 %v2306, %v2658
    %v2660 = vpop.f32.mrb[0].mxu0
    %2661 = vmatprep.mubr.bf16.mxu0 0
    %2662 = vmatmul.mubr.bf16.gmra.mrb[0].mxu0 %v1254
    %v2663 = vpop.f32.mrb[0].mxu0
    %v2664 = vadd.f32 %v2311, %v2663
    %v2665 = vpop.f32.mrb[0].mxu0
    %v2666 = vpop.f32.mrb[0].mxu0
    %v2667 = vadd.f32 %v2314, %v2666
    %v2668 = vpop.f32.mrb[0].mxu0
    %2669 = vmatprep.mubr.bf16.mxu0 0
    %2670 = vmatmul.mubr.bf16.gmra.mrb[0].mxu0 %v1259
    %v2671 = vpop.f32.mrb[0].mxu0
    %v2672 = vadd.f32 %v2319, %v2671
    %v2673 = vpop.f32.mrb[0].mxu0
    %v2674 = vpop.f32.mrb[0].mxu0
    %v2675 = vadd.f32 %v2322, %v2674
    %v2676 = vpop.f32.mrb[0].mxu0
    %2677 = vmatprep.mubr.bf16.mxu0 0
    %2678 = vmatmul.mubr.bf16.gmra.mrb[0].mxu0 %v1264
    %v2679 = vpop.f32.mrb[0].mxu0
    %v2680 = vadd.f32 %v2327, %v2679
    %v2681 = vpop.f32.mrb[0].mxu0
    %v2682 = vpop.f32.mrb[0].mxu0
    %v2683 = vadd.f32 %v2330, %v2682
    %v2684 = vpop.f32.mrb[0].mxu0
    %2685 = vmatprep.mubr.bf16.mxu0 0
    %2686 = vmatmul.mubr.bf16.gmra.mrb[0].mxu0 %v1269
    %v2687 = vpop.f32.mrb[0].mxu0
    %v2688 = vadd.f32 %v2335, %v2687
    %v2689 = vpop.f32.mrb[0].mxu0
    %v2690 = vpop.f32.mrb[0].mxu0
    %v2691 = vadd.f32 %v2338, %v2690
    %v2692 = vpop.f32.mrb[0].mxu0
    %2693 = vmatprep.mubr.bf16.mxu0 0
    %2694 = vmatmul.mubr.bf16.gmra.mrb[0].mxu0 %v1274
    %v2695 = vpop.f32.mrb[0].mxu0
    %v2696 = vadd.f32 %v2343, %v2695
    %v2697 = vpop.f32.mrb[0].mxu0
    %v2698 = vpop.f32.mrb[0].mxu0
    %v2699 = vadd.f32 %v2346, %v2698
    %v2700 = vpop.f32.mrb[0].mxu0
    %2701 = vmatprep.mubr.bf16.mxu0 0
    %2702 = vmatmul.mubr.bf16.gmra.mrb[0].mxu0 %v1279
    %v2703 = vpop.f32.mrb[0].mxu0
    %v2704 = vadd.f32 %v2351, %v2703
    %v2705 = vpop.f32.mrb[0].mxu0
    %v2706 = vpop.f32.mrb[0].mxu0
    %v2707 = vadd.f32 %v2354, %v2706
    %v2708 = vpop.f32.mrb[0].mxu0
    %2709 = vmatprep.mubr.bf16.mxu0 0
    %2710 = vmatmul.mubr.bf16.gmra.mrb[0].mxu0 %v1284
    %v2711 = vpop.f32.mrb[0].mxu0
    %v2712 = vadd.f32 %v2359, %v2711
    %v2713 = vpop.f32.mrb[0].mxu0
    %v2714 = vpop.f32.mrb[0].mxu0
    %v2715 = vadd.f32 %v2362, %v2714
    %v2716 = vpop.f32.mrb[0].mxu0
    %2717 = vmatprep.mubr.bf16.mxu0 0
    %2718 = vmatmul.mubr.bf16.gmra.mrb[0].mxu0 %v1289
    %v2719 = vpop.f32.mrb[0].mxu0
    %v2720 = vadd.f32 %v2367, %v2719
    %v2721 = vpop.f32.mrb[0].mxu0
    %v2722 = vpop.f32.mrb[0].mxu0
    %v2723 = vadd.f32 %v2370, %v2722
    %v2724 = vpop.f32.mrb[0].mxu0
    %2725 = vmatprep.mubr.bf16.mxu0 0
    %2726 = vmatmul.mubr.bf16.gmra.mrb[0].mxu0 %v1294
    %v2727 = vpop.f32.mrb[0].mxu0
    %v2728 = vadd.f32 %v2375, %v2727
    %v2729 = vpop.f32.mrb[0].mxu0
    %v2730 = vpop.f32.mrb[0].mxu0
    %v2731 = vadd.f32 %v2378, %v2730
    %v2732 = vpop.f32.mrb[0].mxu0
    %2733 = vmatprep.mubr.bf16.mxu0 0
    %2734 = vmatmul.mubr.bf16.gmra.mrb[0].mxu0 %v1299
    %v2735 = vpop.f32.mrb[0].mxu0
    %v2736 = vadd.f32 %v2383, %v2735
    %v2737 = vpop.f32.mrb[0].mxu0
    %v2738 = vpop.f32.mrb[0].mxu0
    %v2739 = vadd.f32 %v2386, %v2738
    %v2740 = vpop.f32.mrb[0].mxu0
    %2741 = vmatprep.mubr.bf16.mxu0 0
    %2742 = vmatmul.mubr.bf16.gmra.mrb[0].mxu0 %v1304
    %v2743 = vpop.f32.mrb[0].mxu0
    %v2744 = vadd.f32 %v2391, %v2743
    %v2745 = vpop.f32.mrb[0].mxu0
    %v2746 = vpop.f32.mrb[0].mxu0
    %v2747 = vadd.f32 %v2394, %v2746
    %v2748 = vpop.f32.mrb[0].mxu0
    %2749 = vmatprep.mubr.bf16.mxu0 0
    %2750 = vmatmul.mubr.bf16.gmra.mrb[0].mxu0 %v1309
    %v2751 = vpop.f32.mrb[0].mxu0
    %v2752 = vadd.f32 %v2399, %v2751
    %v2753 = vpop.f32.mrb[0].mxu0
    %v2754 = vpop.f32.mrb[0].mxu0
    %v2755 = vadd.f32 %v2402, %v2754
    %v2756 = vpop.f32.mrb[0].mxu0
    %2757 = vmatprep.mubr.bf16.mxu0 0
    %2758 = vmatmul.mubr.bf16.gmra.mrb[0].mxu0 %v1314
    %v2759 = vpop.f32.mrb[0].mxu0
    %v2760 = vadd.f32 %v2407, %v2759
    %v2761 = vpop.f32.mrb[0].mxu0
    %v2762 = vpop.f32.mrb[0].mxu0
    %v2763 = vadd.f32 %v2410, %v2762
    %v2764 = vpop.f32.mrb[0].mxu0
    %2765 = vmatprep.mubr.bf16.mxu0 0
    %2766 = vmatmul.mubr.bf16.gmra.mrb[0].mxu0 %v1319
    %v2767 = vpop.f32.mrb[0].mxu0
    %v2768 = vadd.f32 %v2415, %v2767
    %v2769 = vpop.f32.mrb[0].mxu0
    %v2770 = vpop.f32.mrb[0].mxu0
    %v2771 = vadd.f32 %v2418, %v2770
    %v2772 = vpop.f32.mrb[0].mxu0
    %2773 = vmatprep.mubr.bf16.mxu0 0
    %2774 = vmatmul.mubr.bf16.gmra.mrb[0].mxu0 %v1324
    %v2775 = vpop.f32.mrb[0].mxu0
    %v2776 = vadd.f32 %v2423, %v2775
    %v2777 = vpop.f32.mrb[0].mxu0
    %v2778 = vpop.f32.mrb[0].mxu0
    %v2779 = vadd.f32 %v2426, %v2778
    %v2780 = vpop.f32.mrb[0].mxu0
    %2781 = vmatprep.mubr.bf16.mxu0 0
    %2782 = vmatmul.mubr.bf16.gmra.mrb[0].mxu0 %v1329
    %v2783 = vpop.f32.mrb[0].mxu0
    %v2784 = vadd.f32 %v2431, %v2783
    %v2785 = vpop.f32.mrb[0].mxu0
    %v2786 = vpop.f32.mrb[0].mxu0
    %v2787 = vadd.f32 %v2434, %v2786
    %v2788 = vpop.f32.mrb[0].mxu0
    %2789 = vmatprep.mubr.bf16.mxu0 0
    %2790 = vmatmul.mubr.bf16.gmra.mrb[0].mxu0 %v1334
    %v2791 = vpop.f32.mrb[0].mxu0
    %v2792 = vadd.f32 %v2439, %v2791
    %v2793 = vpop.f32.mrb[0].mxu0
    %v2794 = vpop.f32.mrb[0].mxu0
    %v2795 = vadd.f32 %v2442, %v2794
    %v2796 = vpop.f32.mrb[0].mxu0
    %2797 = vmatprep.mubr.bf16.mxu0 0
    %2798 = vmatmul.mubr.bf16.gmra.mrb[0].mxu0 %v1339
    %v2799 = vpop.f32.mrb[0].mxu0
    %v2800 = vadd.f32 %v2447, %v2799
    %v2801 = vpop.f32.mrb[0].mxu0
    %v2802 = vpop.f32.mrb[0].mxu0
    %v2803 = vadd.f32 %v2450, %v2802
    %v2804 = vpop.f32.mrb[0].mxu0
    %2805 = vmatprep.mubr.bf16.mxu0 0
    %2806 = vmatmul.mubr.bf16.gmra.mrb[0].mxu0 %v1344
    %v2807 = vpop.f32.mrb[0].mxu0
    %v2808 = vadd.f32 %v2455, %v2807
    %v2809 = vpop.f32.mrb[0].mxu0
    %v2810 = vpop.f32.mrb[0].mxu0
    %v2811 = vadd.f32 %v2458, %v2810
    %v2812 = vpop.f32.mrb[0].mxu0
    %2813 = vmatprep.mubr.bf16.mxu0 0
    %2814 = vmatmul.mubr.bf16.gmra.mrb[0].mxu0 %v1349
    %v2815 = vpop.f32.mrb[0].mxu0
    %v2816 = vadd.f32 %v2463, %v2815
    %v2817 = vpop.f32.mrb[0].mxu0
    %v2818 = vpop.f32.mrb[0].mxu0
    %v2819 = vadd.f32 %v2466, %v2818
    %v2820 = vpop.f32.mrb[0].mxu0
    %2821 = vmatprep.mubr.bf16.mxu0 0
    %2822 = vmatmul.mubr.bf16.gmra.mrb[0].mxu0 %v1354
    %v2823 = vpop.f32.mrb[0].mxu0
    %v2824 = vadd.f32 %v2471, %v2823
    %v2825 = vpop.f32.mrb[0].mxu0
    %v2826 = vpop.f32.mrb[0].mxu0
    %v2827 = vadd.f32 %v2474, %v2826
    %v2828 = vpop.f32.mrb[0].mxu0
    %2829 = vmatprep.mubr.bf16.mxu0 0
    %2830 = vmatmul.mubr.bf16.gmra.mrb[0].mxu0 %v1359
    %v2831 = vpop.f32.mrb[0].mxu0
    %v2832 = vadd.f32 %v2479, %v2831
    %v2833 = vpop.f32.mrb[0].mxu0
    %v2834 = vpop.f32.mrb[0].mxu0
    %v2835 = vadd.f32 %v2482, %v2834
    %v2836 = vpop.f32.mrb[0].mxu0
    %2837 = vmatprep.mubr.bf16.mxu0 0
    %2838 = vmatmul.mubr.bf16.gmra.mrb[0].mxu0 %v1364
    %v2839 = vpop.f32.mrb[0].mxu0
    %v2840 = vadd.f32 %v2487, %v2839
    %v2841 = vpop.f32.mrb[0].mxu0
    %v2842 = vpop.f32.mrb[0].mxu0
    %v2843 = vadd.f32 %v2490, %v2842
    %v2844 = vpop.f32.mrb[0].mxu0
    %2845 = vmatprep.mubr.bf16.mxu0 0
    %2846 = vmatmul.mubr.bf16.gmra.mrb[0].mxu0 %v1369
    %v2847 = vpop.f32.mrb[0].mxu0
    %v2848 = vadd.f32 %v2495, %v2847
    %v2849 = vpop.f32.mrb[0].mxu0
    %v2850 = vpop.f32.mrb[0].mxu0
    %v2851 = vadd.f32 %v2498, %v2850
    %v2852 = vpop.f32.mrb[0].mxu0
    %2853 = vmatprep.mubr.bf16.mxu0 0
    %2854 = vmatmul.mubr.bf16.gmra.mrb[0].mxu0 %v1374
    %v2855 = vpop.f32.mrb[0].mxu0
    %v2856 = vadd.f32 %v2503, %v2855
    %v2857 = vpop.f32.mrb[0].mxu0
    %v2858 = vpop.f32.mrb[0].mxu0
    %v2859 = vadd.f32 %v2506, %v2858
    %v2860 = vpop.f32.mrb[0].mxu0
    %2861 = vmatprep.mubr.bf16.mxu0 0
    %2862 = vmatmul.mubr.bf16.gmra.mrb[0].mxu0 %v1379
    %v2863 = vpop.f32.mrb[0].mxu0
    %v2864 = vadd.f32 %v2511, %v2863
    %v2865 = vpop.f32.mrb[0].mxu0
    %v2866 = vpop.f32.mrb[0].mxu0
    %v2867 = vadd.f32 %v2514, %v2866
    %v2868 = vpop.f32.mrb[0].mxu0
    %2869 = vmatprep.mubr.bf16.mxu0 0
    %2870 = vmatmul.mubr.bf16.gmra.mrb[0].mxu0 %v1384
    %v2871 = vpop.f32.mrb[0].mxu0
    %v2872 = vadd.f32 %v2519, %v2871
    %v2873 = vpop.f32.mrb[0].mxu0
    %v2874 = vpop.f32.mrb[0].mxu0
    %v2875 = vadd.f32 %v2522, %v2874
    %v2876 = vpop.f32.mrb[0].mxu0
    %2877 = vmatprep.mubr.bf16.mxu0 0
    %2878 = vmatmul.mubr.bf16.gmra.mrb[0].mxu0 %v1389
    %v2879 = vpop.f32.mrb[0].mxu0
    %v2880 = vadd.f32 %v2527, %v2879
    %v2881 = vpop.f32.mrb[0].mxu0
    %v2882 = vpop.f32.mrb[0].mxu0
    %v2883 = vadd.f32 %v2530, %v2882
    %v2884 = vpop.f32.mrb[0].mxu0
    %2885 = vmatprep.mubr.bf16.mxu0 0
    %2886 = vmatmul.mubr.bf16.gmra.mrb[0].mxu0 %v1394
    %v2887 = vpop.f32.mrb[0].mxu0
    %v2888 = vadd.f32 %v2535, %v2887
    %v2889 = vpop.f32.mrb[0].mxu0
    %v2890 = vpop.f32.mrb[0].mxu0
    %v2891 = vadd.f32 %v2538, %v2890
    %v2892 = vpop.f32.mrb[0].mxu0
    %2893 = vdwg.mxu0
    %v2894 = vadd.f32 %v235, %v2576
    %v2895 = vadd.f32 %v236, %v2579
    %v2896 = vadd.f32 %v237, %v2584
    %v2897 = vadd.f32 %v238, %v2587
    %v2898 = vadd.f32 %v239, %v2592
    %v2899 = vadd.f32 %v240, %v2595
    %v2900 = vadd.f32 %v241, %v2600
    %v2901 = vadd.f32 %v242, %v2603
    %v2902 = vadd.f32 %v243, %v2608
    %v2903 = vadd.f32 %v244, %v2611
    %v2904 = vadd.f32 %v245, %v2616
    %v2905 = vadd.f32 %v246, %v2619
    %v2906 = vadd.f32 %v247, %v2624
    %v2907 = vadd.f32 %v248, %v2627
    %v2908 = vadd.f32 %v249, %v2632
    %v2909 = vadd.f32 %v250, %v2635
    %v2910 = vadd.f32 %v251, %v2640
    %v2911 = vadd.f32 %v252, %v2643
    %v2912 = vadd.f32 %v253, %v2648
    %v2913 = vadd.f32 %v254, %v2651
    %v2914 = vadd.f32 %v255, %v2656
    %v2915 = vadd.f32 %v256, %v2659
    %v2916 = vadd.f32 %v257, %v2664
    %v2917 = vadd.f32 %v258, %v2667
    %v2918 = vadd.f32 %v259, %v2672
    %v2919 = vadd.f32 %v260, %v2675
    %v2920 = vadd.f32 %v261, %v2680
    %v2921 = vadd.f32 %v262, %v2683
    %v2922 = vadd.f32 %v263, %v2688
    %v2923 = vadd.f32 %v264, %v2691
    %v2924 = vadd.f32 %v265, %v2696
    %v2925 = vadd.f32 %v266, %v2699
    %v2926 = vadd.f32 %v267, %v2704
    %v2927 = vadd.f32 %v268, %v2707
    %v2928 = vadd.f32 %v269, %v2712
    %v2929 = vadd.f32 %v270, %v2715
    %v2930 = vadd.f32 %v271, %v2720
    %v2931 = vadd.f32 %v272, %v2723
    %v2932 = vadd.f32 %v273, %v2728
    %v2933 = vadd.f32 %v274, %v2731
    %v2934 = vadd.f32 %v275, %v2736
    %v2935 = vadd.f32 %v276, %v2739
    %v2936 = vadd.f32 %v277, %v2744
    %v2937 = vadd.f32 %v278, %v2747
    %v2938 = vadd.f32 %v279, %v2752
    %v2939 = vadd.f32 %v280, %v2755
    %v2940 = vadd.f32 %v281, %v2760
    %v2941 = vadd.f32 %v282, %v2763
    %v2942 = vadd.f32 %v283, %v2768
    %v2943 = vadd.f32 %v284, %v2771
    %v2944 = vadd.f32 %v285, %v2776
    %v2945 = vadd.f32 %v286, %v2779
    %v2946 = vadd.f32 %v287, %v2784
    %v2947 = vadd.f32 %v288, %v2787
    %v2948 = vadd.f32 %v289, %v2792
    %v2949 = vadd.f32 %v290, %v2795
    %v2950 = vadd.f32 %v291, %v2800
    %v2951 = vadd.f32 %v292, %v2803
    %v2952 = vadd.f32 %v293, %v2808
    %v2953 = vadd.f32 %v294, %v2811
    %v2954 = vadd.f32 %v295, %v2816
    %v2955 = vadd.f32 %v296, %v2819
    %v2956 = vadd.f32 %v297, %v2824
    %v2957 = vadd.f32 %v298, %v2827
    %v2958 = vadd.f32 %v299, %v2832
    %v2959 = vadd.f32 %v300, %v2835
    %v2960 = vadd.f32 %v301, %v2840
    %v2961 = vadd.f32 %v302, %v2843
    %v2962 = vadd.f32 %v303, %v2848
    %v2963 = vadd.f32 %v304, %v2851
    %v2964 = vadd.f32 %v305, %v2856
    %v2965 = vadd.f32 %v306, %v2859
    %v2966 = vadd.f32 %v307, %v2864
    %v2967 = vadd.f32 %v308, %v2867
    %v2968 = vadd.f32 %v309, %v2872
    %v2969 = vadd.f32 %v310, %v2875
    %v2970 = vadd.f32 %v311, %v2880
    %v2971 = vadd.f32 %v312, %v2883
    %v2972 = vadd.f32 %v313, %v2888
    %v2973 = vadd.f32 %v314, %v2891
    %2974 = vst [vmem:[#allocation2] sm:$0xff] %v2894
    %2975 = vst [vmem:[#allocation2 + $0x8] sm:$0xff] %v2895
    %2976 = vst [vmem:[#allocation2 + $0x10] sm:$0xff] %v2896
    %2977 = vst [vmem:[#allocation2 + $0x18] sm:$0xff] %v2897
    %2978 = vst [vmem:[#allocation2 + $0x20] sm:$0xff] %v2898
    %2979 = vst [vmem:[#allocation2 + $0x28] sm:$0xff] %v2899
    %2980 = vst [vmem:[#allocation2 + $0x30] sm:$0xff] %v2900
    %2981 = vst [vmem:[#allocation2 + $0x38] sm:$0xff] %v2901
    %2982 = vst [vmem:[#allocation2 + $0x40] sm:$0xff] %v2902
    %2983 = vst [vmem:[#allocation2 + $0x48] sm:$0xff] %v2903
    %2984 = vst [vmem:[#allocation2 + $0x50] sm:$0xff] %v2904
    %2985 = vst [vmem:[#allocation2 + $0x58] sm:$0xff] %v2905
    %2986 = vst [vmem:[#allocation2 + $0x60] sm:$0xff] %v2906
    %2987 = vst [vmem:[#allocation2 + $0x68] sm:$0xff] %v2907
    %2988 = vst [vmem:[#allocation2 + $0x70] sm:$0xff] %v2908
    %2989 = vst [vmem:[#allocation2 + $0x78] sm:$0xff] %v2909
    %2990 = vst [vmem:[#allocation2 + $0x80] sm:$0xff] %v2910
    %2991 = vst [vmem:[#allocation2 + $0x88] sm:$0xff] %v2911
    %2992 = vst [vmem:[#allocation2 + $0x90] sm:$0xff] %v2912
    %2993 = vst [vmem:[#allocation2 + $0x98] sm:$0xff] %v2913
    %2994 = vst [vmem:[#allocation2 + $0xa0] sm:$0xff] %v2914
    %2995 = vst [vmem:[#allocation2 + $0xa8] sm:$0xff] %v2915
    %2996 = vst [vmem:[#allocation2 + $0xb0] sm:$0xff] %v2916
    %2997 = vst [vmem:[#allocation2 + $0xb8] sm:$0xff] %v2917
    %2998 = vst [vmem:[#allocation2 + $0xc0] sm:$0xff] %v2918
    %2999 = vst [vmem:[#allocation2 + $0xc8] sm:$0xff] %v2919
    %3000 = vst [vmem:[#allocation2 + $0xd0] sm:$0xff] %v2920
    %3001 = vst [vmem:[#allocation2 + $0xd8] sm:$0xff] %v2921
    %3002 = vst [vmem:[#allocation2 + $0xe0] sm:$0xff] %v2922
    %3003 = vst [vmem:[#allocation2 + $0xe8] sm:$0xff] %v2923
    %3004 = vst [vmem:[#allocation2 + $0xf0] sm:$0xff] %v2924
    %3005 = vst [vmem:[#allocation2 + $0xf8] sm:$0xff] %v2925
    %3006 = vst [vmem:[#allocation2 + $0x100] sm:$0xff] %v2926
    %3007 = vst [vmem:[#allocation2 + $0x108] sm:$0xff] %v2927
    %3008 = vst [vmem:[#allocation2 + $0x110] sm:$0xff] %v2928
    %3009 = vst [vmem:[#allocation2 + $0x118] sm:$0xff] %v2929
    %3010 = vst [vmem:[#allocation2 + $0x120] sm:$0xff] %v2930
    %3011 = vst [vmem:[#allocation2 + $0x128] sm:$0xff] %v2931
    %3012 = vst [vmem:[#allocation2 + $0x130] sm:$0xff] %v2932
    %3013 = vst [vmem:[#allocation2 + $0x138] sm:$0xff] %v2933
    %3014 = vst [vmem:[#allocation2 + $0x140] sm:$0xff] %v2934
    %3015 = vst [vmem:[#allocation2 + $0x148] sm:$0xff] %v2935
    %3016 = vst [vmem:[#allocation2 + $0x150] sm:$0xff] %v2936
    %3017 = vst [vmem:[#allocation2 + $0x158] sm:$0xff] %v2937
    %3018 = vst [vmem:[#allocation2 + $0x160] sm:$0xff] %v2938
    %3019 = vst [vmem:[#allocation2 + $0x168] sm:$0xff] %v2939
    %3020 = vst [vmem:[#allocation2 + $0x170] sm:$0xff] %v2940
    %3021 = vst [vmem:[#allocation2 + $0x178] sm:$0xff] %v2941
    %3022 = vst [vmem:[#allocation2 + $0x180] sm:$0xff] %v2942
    %3023 = vst [vmem:[#allocation2 + $0x188] sm:$0xff] %v2943
    %3024 = vst [vmem:[#allocation2 + $0x190] sm:$0xff] %v2944
    %3025 = vst [vmem:[#allocation2 + $0x198] sm:$0xff] %v2945
    %3026 = vst [vmem:[#allocation2 + $0x1a0] sm:$0xff] %v2946
    %3027 = vst [vmem:[#allocation2 + $0x1a8] sm:$0xff] %v2947
    %3028 = vst [vmem:[#allocation2 + $0x1b0] sm:$0xff] %v2948
    %3029 = vst [vmem:[#allocation2 + $0x1b8] sm:$0xff] %v2949
    %3030 = vst [vmem:[#allocation2 + $0x1c0] sm:$0xff] %v2950
    %3031 = vst [vmem:[#allocation2 + $0x1c8] sm:$0xff] %v2951
    %3032 = vst [vmem:[#allocation2 + $0x1d0] sm:$0xff] %v2952
    %3033 = vst [vmem:[#allocation2 + $0x1d8] sm:$0xff] %v2953
    %3034 = vst [vmem:[#allocation2 + $0x1e0] sm:$0xff] %v2954
    %3035 = vst [vmem:[#allocation2 + $0x1e8] sm:$0xff] %v2955
    %3036 = vst [vmem:[#allocation2 + $0x1f0] sm:$0xff] %v2956
    %3037 = vst [vmem:[#allocation2 + $0x1f8] sm:$0xff] %v2957
    %3038 = vst [vmem:[#allocation2 + $0x200] sm:$0xff] %v2958
    %3039 = vst [vmem:[#allocation2 + $0x208] sm:$0xff] %v2959
    %3040 = vst [vmem:[#allocation2 + $0x210] sm:$0xff] %v2960
    %3041 = vst [vmem:[#allocation2 + $0x218] sm:$0xff] %v2961
    %3042 = vst [vmem:[#allocation2 + $0x220] sm:$0xff] %v2962
    %3043 = vst [vmem:[#allocation2 + $0x228] sm:$0xff] %v2963
    %3044 = vst [vmem:[#allocation2 + $0x230] sm:$0xff] %v2964
    %3045 = vst [vmem:[#allocation2 + $0x238] sm:$0xff] %v2965
    %3046 = vst [vmem:[#allocation2 + $0x240] sm:$0xff] %v2966
    %3047 = vst [vmem:[#allocation2 + $0x248] sm:$0xff] %v2967
    %3048 = vst [vmem:[#allocation2 + $0x250] sm:$0xff] %v2968
    %3049 = vst [vmem:[#allocation2 + $0x258] sm:$0xff] %v2969
    %3050 = vst [vmem:[#allocation2 + $0x260] sm:$0xff] %v2970
    %3051 = vst [vmem:[#allocation2 + $0x268] sm:$0xff] %v2971
    %3052 = vst [vmem:[#allocation2 + $0x270] sm:$0xff] %v2972
    %3053 = vst [vmem:[#allocation2 + $0x278] sm:$0xff] %v2973
    // Predicated region
    $region42: #{tpu_custom_call.1} parent=1 // pred_check
      %p3054 = pneg %p66
    $region43: #{tpu_custom_call.1} parent=1 // pred_check_branch
      %3056 = sbr.rel (%p3054) target = $region45
    $region44: #{tpu_custom_call.1} parent=1 // pred_region
      %v3057 = vld [vmem:[#allocation2] sm:$0xff]
      %v3058 = vld [vmem:[#allocation2 + $0x8] sm:$0xff]
      %v3059 = vld [vmem:[#allocation2 + $0x10] sm:$0xff]
      %v3060 = vld [vmem:[#allocation2 + $0x18] sm:$0xff]
      %v3061 = vld [vmem:[#allocation2 + $0x20] sm:$0xff]
      %v3062 = vld [vmem:[#allocation2 + $0x28] sm:$0xff]
      %v3063 = vld [vmem:[#allocation2 + $0x30] sm:$0xff]
      %v3064 = vld [vmem:[#allocation2 + $0x38] sm:$0xff]
      %v3065 = vld [vmem:[#allocation2 + $0x40] sm:$0xff]
      %v3066 = vld [vmem:[#allocation2 + $0x48] sm:$0xff]
      %v3067 = vld [vmem:[#allocation2 + $0x50] sm:$0xff]
      %v3068 = vld [vmem:[#allocation2 + $0x58] sm:$0xff]
      %v3069 = vld [vmem:[#allocation2 + $0x60] sm:$0xff]
      %v3070 = vld [vmem:[#allocation2 + $0x68] sm:$0xff]
      %v3071 = vld [vmem:[#allocation2 + $0x70] sm:$0xff]
      %v3072 = vld [vmem:[#allocation2 + $0x78] sm:$0xff]
      %v3073 = vld [vmem:[#allocation2 + $0x80] sm:$0xff]
      %v3074 = vld [vmem:[#allocation2 + $0x88] sm:$0xff]
      %v3075 = vld [vmem:[#allocation2 + $0x90] sm:$0xff]
      %v3076 = vld [vmem:[#allocation2 + $0x98] sm:$0xff]
      %v3077 = vld [vmem:[#allocation2 + $0xa0] sm:$0xff]
      %v3078 = vld [vmem:[#allocation2 + $0xa8] sm:$0xff]
      %v3079 = vld [vmem:[#allocation2 + $0xb0] sm:$0xff]
      %v3080 = vld [vmem:[#allocation2 + $0xb8] sm:$0xff]
      %v3081 = vld [vmem:[#allocation2 + $0xc0] sm:$0xff]
      %v3082 = vld [vmem:[#allocation2 + $0xc8] sm:$0xff]
      %v3083 = vld [vmem:[#allocation2 + $0xd0] sm:$0xff]
      %v3084 = vld [vmem:[#allocation2 + $0xd8] sm:$0xff]
      %v3085 = vld [vmem:[#allocation2 + $0xe0] sm:$0xff]
      %v3086 = vld [vmem:[#allocation2 + $0xe8] sm:$0xff]
      %v3087 = vld [vmem:[#allocation2 + $0xf0] sm:$0xff]
      %v3088 = vld [vmem:[#allocation2 + $0xf8] sm:$0xff]
      %v3089 = vld [vmem:[#allocation2 + $0x100] sm:$0xff]
      %v3090 = vld [vmem:[#allocation2 + $0x108] sm:$0xff]
      %v3091 = vld [vmem:[#allocation2 + $0x110] sm:$0xff]
      %v3092 = vld [vmem:[#allocation2 + $0x118] sm:$0xff]
      %v3093 = vld [vmem:[#allocation2 + $0x120] sm:$0xff]
      %v3094 = vld [vmem:[#allocation2 + $0x128] sm:$0xff]
      %v3095 = vld [vmem:[#allocation2 + $0x130] sm:$0xff]
      %v3096 = vld [vmem:[#allocation2 + $0x138] sm:$0xff]
      %v3097 = vld [vmem:[#allocation2 + $0x140] sm:$0xff]
      %v3098 = vld [vmem:[#allocation2 + $0x148] sm:$0xff]
      %v3099 = vld [vmem:[#allocation2 + $0x150] sm:$0xff]
      %v3100 = vld [vmem:[#allocation2 + $0x158] sm:$0xff]
      %v3101 = vld [vmem:[#allocation2 + $0x160] sm:$0xff]
      %v3102 = vld [vmem:[#allocation2 + $0x168] sm:$0xff]
      %v3103 = vld [vmem:[#allocation2 + $0x170] sm:$0xff]
      %v3104 = vld [vmem:[#allocation2 + $0x178] sm:$0xff]
      %v3105 = vld [vmem:[#allocation2 + $0x180] sm:$0xff]
      %v3106 = vld [vmem:[#allocation2 + $0x188] sm:$0xff]
      %v3107 = vld [vmem:[#allocation2 + $0x190] sm:$0xff]
      %v3108 = vld [vmem:[#allocation2 + $0x198] sm:$0xff]
      %v3109 = vld [vmem:[#allocation2 + $0x1a0] sm:$0xff]
      %v3110 = vld [vmem:[#allocation2 + $0x1a8] sm:$0xff]
      %v3111 = vld [vmem:[#allocation2 + $0x1b0] sm:$0xff]
      %v3112 = vld [vmem:[#allocation2 + $0x1b8] sm:$0xff]
      %v3113 = vld [vmem:[#allocation2 + $0x1c0] sm:$0xff]
      %v3114 = vld [vmem:[#allocation2 + $0x1c8] sm:$0xff]
      %v3115 = vld [vmem:[#allocation2 + $0x1d0] sm:$0xff]
      %v3116 = vld [vmem:[#allocation2 + $0x1d8] sm:$0xff]
      %v3117 = vld [vmem:[#allocation2 + $0x1e0] sm:$0xff]
      %v3118 = vld [vmem:[#allocation2 + $0x1e8] sm:$0xff]
      %v3119 = vld [vmem:[#allocation2 + $0x1f0] sm:$0xff]
      %v3120 = vld [vmem:[#allocation2 + $0x1f8] sm:$0xff]
      %v3121 = vld [vmem:[#allocation2 + $0x200] sm:$0xff]
      %v3122 = vld [vmem:[#allocation2 + $0x208] sm:$0xff]
      %v3123 = vld [vmem:[#allocation2 + $0x210] sm:$0xff]
      %v3124 = vld [vmem:[#allocation2 + $0x218] sm:$0xff]
      %v3125 = vld [vmem:[#allocation2 + $0x220] sm:$0xff]
      %v3126 = vld [vmem:[#allocation2 + $0x228] sm:$0xff]
      %v3127 = vld [vmem:[#allocation2 + $0x230] sm:$0xff]
      %v3128 = vld [vmem:[#allocation2 + $0x238] sm:$0xff]
      %v3129 = vld [vmem:[#allocation2 + $0x240] sm:$0xff]
      %v3130 = vld [vmem:[#allocation2 + $0x248] sm:$0xff]
      %v3131 = vld [vmem:[#allocation2 + $0x250] sm:$0xff]
      %v3132 = vld [vmem:[#allocation2 + $0x258] sm:$0xff]
      %v3133 = vld [vmem:[#allocation2 + $0x260] sm:$0xff]
      %v3134 = vld [vmem:[#allocation2 + $0x268] sm:$0xff]
      %v3135 = vld [vmem:[#allocation2 + $0x270] sm:$0xff]
      %v3136 = vld [vmem:[#allocation2 + $0x278] sm:$0xff]
      %v3137 = vpack.c.bf16 %v3058, %v3057
      %v3138 = vpack.c.bf16 %v3060, %v3059
      %v3139 = vpack.c.bf16 %v3062, %v3061
      %v3140 = vpack.c.bf16 %v3064, %v3063
      %v3141 = vpack.c.bf16 %v3066, %v3065
      %v3142 = vpack.c.bf16 %v3068, %v3067
      %v3143 = vpack.c.bf16 %v3070, %v3069
      %v3144 = vpack.c.bf16 %v3072, %v3071
      %v3145 = vpack.c.bf16 %v3074, %v3073
      %v3146 = vpack.c.bf16 %v3076, %v3075
      %v3147 = vpack.c.bf16 %v3078, %v3077
      %v3148 = vpack.c.bf16 %v3080, %v3079
      %v3149 = vpack.c.bf16 %v3082, %v3081
      %v3150 = vpack.c.bf16 %v3084, %v3083
      %v3151 = vpack.c.bf16 %v3086, %v3085
      %v3152 = vpack.c.bf16 %v3088, %v3087
      %v3153 = vpack.c.bf16 %v3090, %v3089
      %v3154 = vpack.c.bf16 %v3092, %v3091
      %v3155 = vpack.c.bf16 %v3094, %v3093
      %v3156 = vpack.c.bf16 %v3096, %v3095
      %v3157 = vpack.c.bf16 %v3098, %v3097
      %v3158 = vpack.c.bf16 %v3100, %v3099
      %v3159 = vpack.c.bf16 %v3102, %v3101
      %v3160 = vpack.c.bf16 %v3104, %v3103
      %v3161 = vpack.c.bf16 %v3106, %v3105
      %v3162 = vpack.c.bf16 %v3108, %v3107
      %v3163 = vpack.c.bf16 %v3110, %v3109
      %v3164 = vpack.c.bf16 %v3112, %v3111
      %v3165 = vpack.c.bf16 %v3114, %v3113
      %v3166 = vpack.c.bf16 %v3116, %v3115
      %v3167 = vpack.c.bf16 %v3118, %v3117
      %v3168 = vpack.c.bf16 %v3120, %v3119
      %v3169 = vpack.c.bf16 %v3122, %v3121
      %v3170 = vpack.c.bf16 %v3124, %v3123
      %v3171 = vpack.c.bf16 %v3126, %v3125
      %v3172 = vpack.c.bf16 %v3128, %v3127
      %v3173 = vpack.c.bf16 %v3130, %v3129
      %v3174 = vpack.c.bf16 %v3132, %v3131
      %v3175 = vpack.c.bf16 %v3134, %v3133
      %v3176 = vpack.c.bf16 %v3136, %v3135
      %v3177 = vld [vmem:[#allocation8] sm:$0xf]
      %v3178 = vld [vmem:[#allocation8 + $0x4] sm:$0xf]
      %v3179 = vld [vmem:[#allocation8 + $0x8] sm:$0xf]
      %v3180 = vld [vmem:[#allocation8 + $0xc] sm:$0xf]
      %v3181 = vld [vmem:[#allocation8 + $0x10] sm:$0xf]
      %v3182 = vld [vmem:[#allocation8 + $0x14] sm:$0xf]
      %v3183 = vld [vmem:[#allocation8 + $0x18] sm:$0xf]
      %v3184 = vld [vmem:[#allocation8 + $0x1c] sm:$0xf]
      %v3185 = vld [vmem:[#allocation8 + $0x20] sm:$0xf]
      %v3186 = vld [vmem:[#allocation8 + $0x24] sm:$0xf]
      %v3187 = vld [vmem:[#allocation8 + $0x28] sm:$0xf]
      %v3188 = vld [vmem:[#allocation8 + $0x2c] sm:$0xf]
      %v3189 = vld [vmem:[#allocation8 + $0x30] sm:$0xf]
      %v3190 = vld [vmem:[#allocation8 + $0x34] sm:$0xf]
      %v3191 = vld [vmem:[#allocation8 + $0x38] sm:$0xf]
      %v3192 = vld [vmem:[#allocation8 + $0x3c] sm:$0xf]
      %v3193 = vld [vmem:[%s3] sm:$0x1]
      %v3195 = vlaneseq
      %v3196 = vshrl.u32 %v3195, 7
      %v3197 = vsub.s32 0, %v3196
      %v3198 = vrot.slane %v3193, %v3197
      %v3216 = vunpack.c.l.b16 %v3177
      %v3217 = vunpack.c.l.b16 %v3178
      %v3218 = vunpack.c.l.b16 %v3179
      %v3219 = vunpack.c.l.b16 %v3180
      %v3220 = vunpack.c.l.b16 %v3181
      %v3221 = vunpack.c.l.b16 %v3182
      %v3222 = vunpack.c.l.b16 %v3183
      %v3223 = vunpack.c.l.b16 %v3184
      %v3224 = vunpack.c.l.b16 %v3185
      %v3225 = vunpack.c.l.b16 %v3186
      %v3226 = vunpack.c.l.b16 %v3187
      %v3227 = vunpack.c.l.b16 %v3188
      %v3228 = vunpack.c.l.b16 %v3189
      %v3229 = vunpack.c.l.b16 %v3190
      %v3230 = vunpack.c.l.b16 %v3191
      %v3231 = vunpack.c.l.b16 %v3192
      %v3232 = vpack.c.b16 %v3217, %v3216
      %v3233 = vpack.c.b16 %v3219, %v3218
      %v3234 = vpack.c.b16 %v3221, %v3220
      %v3235 = vpack.c.b16 %v3223, %v3222
      %v3236 = vpack.c.b16 %v3225, %v3224
      %v3237 = vpack.c.b16 %v3227, %v3226
      %v3238 = vpack.c.b16 %v3229, %v3228
      %v3239 = vpack.c.b16 %v3231, %v3230
      %3248 = vmatprep.subr.bf16.mxu0 0
      %3249 = vmatpush1.bf16.msra.mxu0 %v3232
      %3250 = vmatprep.subr.bf16.mxu0 0
      %3251 = vmatpush1.bf16.msra.mxu0 %v3233
      %3252 = vmatprep.subr.bf16.mxu0 0
      %3253 = vmatpush1.bf16.msra.mxu0 %v3234
      %3254 = vmatprep.subr.bf16.mxu0 0
      %3255 = vmatpush1.bf16.msra.mxu0 %v3235
      %3256 = vmatprep.subr.bf16.mxu0 0
      %3257 = vmatpush1.bf16.msra.mxu0 %v3236
      %3258 = vmatprep.subr.bf16.mxu0 0
      %3259 = vmatpush1.bf16.msra.mxu0 %v3237
      %3260 = vmatprep.subr.bf16.mxu0 0
      %3261 = vmatpush1.bf16.msra.mxu0 %v3238
      %3262 = vmatprep.subr.bf16.mxu0 0
      %3263 = vmatpush1.bf16.msra.mxu0 %v3239
      %3264 = vmatprep.subr.bf16.mxu0 0
      %3265 = vmatpush1.bf16.msra.mxu0 0
      %3266 = vmatprep.subr.bf16.mxu0 0
      %3267 = vmatpush1.bf16.msra.mxu0 0
      %3268 = vmatprep.subr.bf16.mxu0 0
      %3269 = vmatpush1.bf16.msra.mxu0 0
      %3270 = vmatprep.subr.bf16.mxu0 0
      %3271 = vmatpush1.bf16.msra.mxu0 0
      %3272 = vmatprep.subr.bf16.mxu0 0
      %3273 = vmatpush1.bf16.msra.mxu0 0
      %3274 = vmatprep.subr.bf16.mxu0 0
      %3275 = vmatpush1.bf16.msra.mxu0 0
      %3276 = vmatprep.subr.bf16.mxu0 0
      %3277 = vmatpush1.bf16.msra.mxu0 0
      %3278 = vmatprep.subr.bf16.mxu0 0
      %3279 = vmatpush1.bf16.msra.mxu0 0
      %3280 = vmatprep.mubr.bf16.mxu0 0
      %3281 = vmatmul.mubr.bf16.gmra.mrb[0].mxu0 %v3137
      %v3282 = vpop.f32.mrb[0].mxu0
      %v3283 = vadd.f32 %v3198, %v3282
      %v3284 = vpop.f32.mrb[0].mxu0
      %v3285 = vpop.f32.mrb[0].mxu0
      %v3286 = vadd.f32 %v3198, %v3285
      %v3287 = vpop.f32.mrb[0].mxu0
      %3288 = vmatprep.mubr.bf16.mxu0 0
      %3289 = vmatmul.mubr.bf16.gmra.mrb[0].mxu0 %v3138
      %v3290 = vpop.f32.mrb[0].mxu0
      %v3291 = vadd.f32 %v3198, %v3290
      %v3292 = vpop.f32.mrb[0].mxu0
      %v3293 = vpop.f32.mrb[0].mxu0
      %v3294 = vadd.f32 %v3198, %v3293
      %v3295 = vpop.f32.mrb[0].mxu0
      %3296 = vmatprep.mubr.bf16.mxu0 0
      %3297 = vmatmul.mubr.bf16.gmra.mrb[0].mxu0 %v3139
      %v3298 = vpop.f32.mrb[0].mxu0
      %v3299 = vadd.f32 %v3198, %v3298
      %v3300 = vpop.f32.mrb[0].mxu0
      %v3301 = vpop.f32.mrb[0].mxu0
      %v3302 = vadd.f32 %v3198, %v3301
      %v3303 = vpop.f32.mrb[0].mxu0
      %3304 = vmatprep.mubr.bf16.mxu0 0
      %3305 = vmatmul.mubr.bf16.gmra.mrb[0].mxu0 %v3140
      %v3306 = vpop.f32.mrb[0].mxu0
      %v3307 = vadd.f32 %v3198, %v3306
      %v3308 = vpop.f32.mrb[0].mxu0
      %v3309 = vpop.f32.mrb[0].mxu0
      %v3310 = vadd.f32 %v3198, %v3309
      %v3311 = vpop.f32.mrb[0].mxu0
      %3312 = vmatprep.mubr.bf16.mxu0 0
      %3313 = vmatmul.mubr.bf16.gmra.mrb[0].mxu0 %v3141
      %v3314 = vpop.f32.mrb[0].mxu0
      %v3315 = vadd.f32 %v3198, %v3314
      %v3316 = vpop.f32.mrb[0].mxu0
      %v3317 = vpop.f32.mrb[0].mxu0
      %v3318 = vadd.f32 %v3198, %v3317
      %v3319 = vpop.f32.mrb[0].mxu0
      %3320 = vmatprep.mubr.bf16.mxu0 0
      %3321 = vmatmul.mubr.bf16.gmra.mrb[0].mxu0 %v3142
      %v3322 = vpop.f32.mrb[0].mxu0
      %v3323 = vadd.f32 %v3198, %v3322
      %v3324 = vpop.f32.mrb[0].mxu0
      %v3325 = vpop.f32.mrb[0].mxu0
      %v3326 = vadd.f32 %v3198, %v3325
      %v3327 = vpop.f32.mrb[0].mxu0
      %3328 = vmatprep.mubr.bf16.mxu0 0
      %3329 = vmatmul.mubr.bf16.gmra.mrb[0].mxu0 %v3143
      %v3330 = vpop.f32.mrb[0].mxu0
      %v3331 = vadd.f32 %v3198, %v3330
      %v3332 = vpop.f32.mrb[0].mxu0
      %v3333 = vpop.f32.mrb[0].mxu0
      %v3334 = vadd.f32 %v3198, %v3333
      %v3335 = vpop.f32.mrb[0].mxu0
      %3336 = vmatprep.mubr.bf16.mxu0 0
      %3337 = vmatmul.mubr.bf16.gmra.mrb[0].mxu0 %v3144
      %v3338 = vpop.f32.mrb[0].mxu0
      %v3339 = vadd.f32 %v3198, %v3338
      %v3340 = vpop.f32.mrb[0].mxu0
      %v3341 = vpop.f32.mrb[0].mxu0
      %v3342 = vadd.f32 %v3198, %v3341
      %v3343 = vpop.f32.mrb[0].mxu0
      %3344 = vmatprep.mubr.bf16.mxu0 0
      %3345 = vmatmul.mubr.bf16.gmra.mrb[0].mxu0 %v3145
      %v3346 = vpop.f32.mrb[0].mxu0
      %v3347 = vadd.f32 %v3198, %v3346
      %v3348 = vpop.f32.mrb[0].mxu0
      %v3349 = vpop.f32.mrb[0].mxu0
      %v3350 = vadd.f32 %v3198, %v3349
      %v3351 = vpop.f32.mrb[0].mxu0
      %3352 = vmatprep.mubr.bf16.mxu0 0
      %3353 = vmatmul.mubr.bf16.gmra.mrb[0].mxu0 %v3146
      %v3354 = vpop.f32.mrb[0].mxu0
      %v3355 = vadd.f32 %v3198, %v3354
      %v3356 = vpop.f32.mrb[0].mxu0
      %v3357 = vpop.f32.mrb[0].mxu0
      %v3358 = vadd.f32 %v3198, %v3357
      %v3359 = vpop.f32.mrb[0].mxu0
      %3360 = vmatprep.mubr.bf16.mxu0 0
      %3361 = vmatmul.mubr.bf16.gmra.mrb[0].mxu0 %v3147
      %v3362 = vpop.f32.mrb[0].mxu0
      %v3363 = vadd.f32 %v3198, %v3362
      %v3364 = vpop.f32.mrb[0].mxu0
      %v3365 = vpop.f32.mrb[0].mxu0
      %v3366 = vadd.f32 %v3198, %v3365
      %v3367 = vpop.f32.mrb[0].mxu0
      %3368 = vmatprep.mubr.bf16.mxu0 0
      %3369 = vmatmul.mubr.bf16.gmra.mrb[0].mxu0 %v3148
      %v3370 = vpop.f32.mrb[0].mxu0
      %v3371 = vadd.f32 %v3198, %v3370
      %v3372 = vpop.f32.mrb[0].mxu0
      %v3373 = vpop.f32.mrb[0].mxu0
      %v3374 = vadd.f32 %v3198, %v3373
      %v3375 = vpop.f32.mrb[0].mxu0
      %3376 = vmatprep.mubr.bf16.mxu0 0
      %3377 = vmatmul.mubr.bf16.gmra.mrb[0].mxu0 %v3149
      %v3378 = vpop.f32.mrb[0].mxu0
      %v3379 = vadd.f32 %v3198, %v3378
      %v3380 = vpop.f32.mrb[0].mxu0
      %v3381 = vpop.f32.mrb[0].mxu0
      %v3382 = vadd.f32 %v3198, %v3381
      %v3383 = vpop.f32.mrb[0].mxu0
      %3384 = vmatprep.mubr.bf16.mxu0 0
      %3385 = vmatmul.mubr.bf16.gmra.mrb[0].mxu0 %v3150
      %v3386 = vpop.f32.mrb[0].mxu0
      %v3387 = vadd.f32 %v3198, %v3386
      %v3388 = vpop.f32.mrb[0].mxu0
      %v3389 = vpop.f32.mrb[0].mxu0
      %v3390 = vadd.f32 %v3198, %v3389
      %v3391 = vpop.f32.mrb[0].mxu0
      %3392 = vmatprep.mubr.bf16.mxu0 0
      %3393 = vmatmul.mubr.bf16.gmra.mrb[0].mxu0 %v3151
      %v3394 = vpop.f32.mrb[0].mxu0
      %v3395 = vadd.f32 %v3198, %v3394
      %v3396 = vpop.f32.mrb[0].mxu0
      %v3397 = vpop.f32.mrb[0].mxu0
      %v3398 = vadd.f32 %v3198, %v3397
      %v3399 = vpop.f32.mrb[0].mxu0
      %3400 = vmatprep.mubr.bf16.mxu0 0
      %3401 = vmatmul.mubr.bf16.gmra.mrb[0].mxu0 %v3152
      %v3402 = vpop.f32.mrb[0].mxu0
      %v3403 = vadd.f32 %v3198, %v3402
      %v3404 = vpop.f32.mrb[0].mxu0
      %v3405 = vpop.f32.mrb[0].mxu0
      %v3406 = vadd.f32 %v3198, %v3405
      %v3407 = vpop.f32.mrb[0].mxu0
      %3408 = vmatprep.mubr.bf16.mxu0 0
      %3409 = vmatmul.mubr.bf16.gmra.mrb[0].mxu0 %v3153
      %v3410 = vpop.f32.mrb[0].mxu0
      %v3411 = vadd.f32 %v3198, %v3410
      %v3412 = vpop.f32.mrb[0].mxu0
      %v3413 = vpop.f32.mrb[0].mxu0
      %v3414 = vadd.f32 %v3198, %v3413
      %v3415 = vpop.f32.mrb[0].mxu0
      %3416 = vmatprep.mubr.bf16.mxu0 0
      %3417 = vmatmul.mubr.bf16.gmra.mrb[0].mxu0 %v3154
      %v3418 = vpop.f32.mrb[0].mxu0
      %v3419 = vadd.f32 %v3198, %v3418
      %v3420 = vpop.f32.mrb[0].mxu0
      %v3421 = vpop.f32.mrb[0].mxu0
      %v3422 = vadd.f32 %v3198, %v3421
      %v3423 = vpop.f32.mrb[0].mxu0
      %3424 = vmatprep.mubr.bf16.mxu0 0
      %3425 = vmatmul.mubr.bf16.gmra.mrb[0].mxu0 %v3155
      %v3426 = vpop.f32.mrb[0].mxu0
      %v3427 = vadd.f32 %v3198, %v3426
      %v3428 = vpop.f32.mrb[0].mxu0
      %v3429 = vpop.f32.mrb[0].mxu0
      %v3430 = vadd.f32 %v3198, %v3429
      %v3431 = vpop.f32.mrb[0].mxu0
      %3432 = vmatprep.mubr.bf16.mxu0 0
      %3433 = vmatmul.mubr.bf16.gmra.mrb[0].mxu0 %v3156
      %v3434 = vpop.f32.mrb[0].mxu0
      %v3435 = vadd.f32 %v3198, %v3434
      %v3436 = vpop.f32.mrb[0].mxu0
      %v3437 = vpop.f32.mrb[0].mxu0
      %v3438 = vadd.f32 %v3198, %v3437
      %v3439 = vpop.f32.mrb[0].mxu0
      %3440 = vmatprep.mubr.bf16.mxu0 0
      %3441 = vmatmul.mubr.bf16.gmra.mrb[0].mxu0 %v3157
      %v3442 = vpop.f32.mrb[0].mxu0
      %v3443 = vadd.f32 %v3198, %v3442
      %v3444 = vpop.f32.mrb[0].mxu0
      %v3445 = vpop.f32.mrb[0].mxu0
      %v3446 = vadd.f32 %v3198, %v3445
      %v3447 = vpop.f32.mrb[0].mxu0
      %3448 = vmatprep.mubr.bf16.mxu0 0
      %3449 = vmatmul.mubr.bf16.gmra.mrb[0].mxu0 %v3158
      %v3450 = vpop.f32.mrb[0].mxu0
      %v3451 = vadd.f32 %v3198, %v3450
      %v3452 = vpop.f32.mrb[0].mxu0
      %v3453 = vpop.f32.mrb[0].mxu0
      %v3454 = vadd.f32 %v3198, %v3453
      %v3455 = vpop.f32.mrb[0].mxu0
      %3456 = vmatprep.mubr.bf16.mxu0 0
      %3457 = vmatmul.mubr.bf16.gmra.mrb[0].mxu0 %v3159
      %v3458 = vpop.f32.mrb[0].mxu0
      %v3459 = vadd.f32 %v3198, %v3458
      %v3460 = vpop.f32.mrb[0].mxu0
      %v3461 = vpop.f32.mrb[0].mxu0
      %v3462 = vadd.f32 %v3198, %v3461
      %v3463 = vpop.f32.mrb[0].mxu0
      %3464 = vmatprep.mubr.bf16.mxu0 0
      %3465 = vmatmul.mubr.bf16.gmra.mrb[0].mxu0 %v3160
      %v3466 = vpop.f32.mrb[0].mxu0
      %v3467 = vadd.f32 %v3198, %v3466
      %v3468 = vpop.f32.mrb[0].mxu0
      %v3469 = vpop.f32.mrb[0].mxu0
      %v3470 = vadd.f32 %v3198, %v3469
      %v3471 = vpop.f32.mrb[0].mxu0
      %3472 = vmatprep.mubr.bf16.mxu0 0
      %3473 = vmatmul.mubr.bf16.gmra.mrb[0].mxu0 %v3161
      %v3474 = vpop.f32.mrb[0].mxu0
      %v3475 = vadd.f32 %v3198, %v3474
      %v3476 = vpop.f32.mrb[0].mxu0
      %v3477 = vpop.f32.mrb[0].mxu0
      %v3478 = vadd.f32 %v3198, %v3477
      %v3479 = vpop.f32.mrb[0].mxu0
      %3480 = vmatprep.mubr.bf16.mxu0 0
      %3481 = vmatmul.mubr.bf16.gmra.mrb[0].mxu0 %v3162
      %v3482 = vpop.f32.mrb[0].mxu0
      %v3483 = vadd.f32 %v3198, %v3482
      %v3484 = vpop.f32.mrb[0].mxu0
      %v3485 = vpop.f32.mrb[0].mxu0
      %v3486 = vadd.f32 %v3198, %v3485
      %v3487 = vpop.f32.mrb[0].mxu0
      %3488 = vmatprep.mubr.bf16.mxu0 0
      %3489 = vmatmul.mubr.bf16.gmra.mrb[0].mxu0 %v3163
      %v3490 = vpop.f32.mrb[0].mxu0
      %v3491 = vadd.f32 %v3198, %v3490
      %v3492 = vpop.f32.mrb[0].mxu0
      %v3493 = vpop.f32.mrb[0].mxu0
      %v3494 = vadd.f32 %v3198, %v3493
      %v3495 = vpop.f32.mrb[0].mxu0
      %3496 = vmatprep.mubr.bf16.mxu0 0
      %3497 = vmatmul.mubr.bf16.gmra.mrb[0].mxu0 %v3164
      %v3498 = vpop.f32.mrb[0].mxu0
      %v3499 = vadd.f32 %v3198, %v3498
      %v3500 = vpop.f32.mrb[0].mxu0
      %v3501 = vpop.f32.mrb[0].mxu0
      %v3502 = vadd.f32 %v3198, %v3501
      %v3503 = vpop.f32.mrb[0].mxu0
      %3504 = vmatprep.mubr.bf16.mxu0 0
      %3505 = vmatmul.mubr.bf16.gmra.mrb[0].mxu0 %v3165
      %v3506 = vpop.f32.mrb[0].mxu0
      %v3507 = vadd.f32 %v3198, %v3506
      %v3508 = vpop.f32.mrb[0].mxu0
      %v3509 = vpop.f32.mrb[0].mxu0
      %v3510 = vadd.f32 %v3198, %v3509
      %v3511 = vpop.f32.mrb[0].mxu0
      %3512 = vmatprep.mubr.bf16.mxu0 0
      %3513 = vmatmul.mubr.bf16.gmra.mrb[0].mxu0 %v3166
      %v3514 = vpop.f32.mrb[0].mxu0
      %v3515 = vadd.f32 %v3198, %v3514
      %v3516 = vpop.f32.mrb[0].mxu0
      %v3517 = vpop.f32.mrb[0].mxu0
      %v3518 = vadd.f32 %v3198, %v3517
      %v3519 = vpop.f32.mrb[0].mxu0
      %3520 = vmatprep.mubr.bf16.mxu0 0
      %3521 = vmatmul.mubr.bf16.gmra.mrb[0].mxu0 %v3167
      %v3522 = vpop.f32.mrb[0].mxu0
      %v3523 = vadd.f32 %v3198, %v3522
      %v3524 = vpop.f32.mrb[0].mxu0
      %v3525 = vpop.f32.mrb[0].mxu0
      %v3526 = vadd.f32 %v3198, %v3525
      %v3527 = vpop.f32.mrb[0].mxu0
      %3528 = vmatprep.mubr.bf16.mxu0 0
      %3529 = vmatmul.mubr.bf16.gmra.mrb[0].mxu0 %v3168
      %v3530 = vpop.f32.mrb[0].mxu0
      %v3531 = vadd.f32 %v3198, %v3530
      %v3532 = vpop.f32.mrb[0].mxu0
      %v3533 = vpop.f32.mrb[0].mxu0
      %v3534 = vadd.f32 %v3198, %v3533
      %v3535 = vpop.f32.mrb[0].mxu0
      %3536 = vmatprep.mubr.bf16.mxu0 0
      %3537 = vmatmul.mubr.bf16.gmra.mrb[0].mxu0 %v3169
      %v3538 = vpop.f32.mrb[0].mxu0
      %v3539 = vadd.f32 %v3198, %v3538
      %v3540 = vpop.f32.mrb[0].mxu0
      %v3541 = vpop.f32.mrb[0].mxu0
      %v3542 = vadd.f32 %v3198, %v3541
      %v3543 = vpop.f32.mrb[0].mxu0
      %3544 = vmatprep.mubr.bf16.mxu0 0
      %3545 = vmatmul.mubr.bf16.gmra.mrb[0].mxu0 %v3170
      %v3546 = vpop.f32.mrb[0].mxu0
      %v3547 = vadd.f32 %v3198, %v3546
      %v3548 = vpop.f32.mrb[0].mxu0
      %v3549 = vpop.f32.mrb[0].mxu0
      %v3550 = vadd.f32 %v3198, %v3549
      %v3551 = vpop.f32.mrb[0].mxu0
      %3552 = vmatprep.mubr.bf16.mxu0 0
      %3553 = vmatmul.mubr.bf16.gmra.mrb[0].mxu0 %v3171
      %v3554 = vpop.f32.mrb[0].mxu0
      %v3555 = vadd.f32 %v3198, %v3554
      %v3556 = vpop.f32.mrb[0].mxu0
      %v3557 = vpop.f32.mrb[0].mxu0
      %v3558 = vadd.f32 %v3198, %v3557
      %v3559 = vpop.f32.mrb[0].mxu0
      %3560 = vmatprep.mubr.bf16.mxu0 0
      %3561 = vmatmul.mubr.bf16.gmra.mrb[0].mxu0 %v3172
      %v3562 = vpop.f32.mrb[0].mxu0
      %v3563 = vadd.f32 %v3198, %v3562
      %v3564 = vpop.f32.mrb[0].mxu0
      %v3565 = vpop.f32.mrb[0].mxu0
      %v3566 = vadd.f32 %v3198, %v3565
      %v3567 = vpop.f32.mrb[0].mxu0
      %3568 = vmatprep.mubr.bf16.mxu0 0
      %3569 = vmatmul.mubr.bf16.gmra.mrb[0].mxu0 %v3173
      %v3570 = vpop.f32.mrb[0].mxu0
      %v3571 = vadd.f32 %v3198, %v3570
      %v3572 = vpop.f32.mrb[0].mxu0
      %v3573 = vpop.f32.mrb[0].mxu0
      %v3574 = vadd.f32 %v3198, %v3573
      %v3575 = vpop.f32.mrb[0].mxu0
      %3576 = vmatprep.mubr.bf16.mxu0 0
      %3577 = vmatmul.mubr.bf16.gmra.mrb[0].mxu0 %v3174
      %v3578 = vpop.f32.mrb[0].mxu0
      %v3579 = vadd.f32 %v3198, %v3578
      %v3580 = vpop.f32.mrb[0].mxu0
      %v3581 = vpop.f32.mrb[0].mxu0
      %v3582 = vadd.f32 %v3198, %v3581
      %v3583 = vpop.f32.mrb[0].mxu0
      %3584 = vmatprep.mubr.bf16.mxu0 0
      %3585 = vmatmul.mubr.bf16.gmra.mrb[0].mxu0 %v3175
      %v3586 = vpop.f32.mrb[0].mxu0
      %v3587 = vadd.f32 %v3198, %v3586
      %v3588 = vpop.f32.mrb[0].mxu0
      %v3589 = vpop.f32.mrb[0].mxu0
      %v3590 = vadd.f32 %v3198, %v3589
      %v3591 = vpop.f32.mrb[0].mxu0
      %3592 = vmatprep.mubr.bf16.mxu0 0
      %3593 = vmatmul.mubr.bf16.gmra.mrb[0].mxu0 %v3176
      %v3594 = vpop.f32.mrb[0].mxu0
      %v3595 = vadd.f32 %v3198, %v3594
      %v3596 = vpop.f32.mrb[0].mxu0
      %v3597 = vpop.f32.mrb[0].mxu0
      %v3598 = vadd.f32 %v3198, %v3597
      %v3599 = vpop.f32.mrb[0].mxu0
      %3600 = vdwg.mxu0
      %3601 = vadd.xlane.f32.xlu0 %v3283
      %v3602 = vpop.xlane.xlu0 %3601
      %3603 = vadd.xlane.f32.xlu0 %v3286
      %v3604 = vpop.xlane.xlu0 %3603
      %3605 = vadd.xlane.f32.xlu0 %v3291
      %v3606 = vpop.xlane.xlu0 %3605
      %3607 = vadd.xlane.f32.xlu0 %v3294
      %v3608 = vpop.xlane.xlu0 %3607
      %3609 = vadd.xlane.f32.xlu0 %v3299
      %v3610 = vpop.xlane.xlu0 %3609
      %3611 = vadd.xlane.f32.xlu0 %v3302
      %v3612 = vpop.xlane.xlu0 %3611
      %3613 = vadd.xlane.f32.xlu0 %v3307
      %v3614 = vpop.xlane.xlu0 %3613
      %3615 = vadd.xlane.f32.xlu0 %v3310
      %v3616 = vpop.xlane.xlu0 %3615
      %3617 = vadd.xlane.f32.xlu0 %v3315
      %v3618 = vpop.xlane.xlu0 %3617
      %3619 = vadd.xlane.f32.xlu0 %v3318
      %v3620 = vpop.xlane.xlu0 %3619
      %3621 = vadd.xlane.f32.xlu0 %v3323
      %v3622 = vpop.xlane.xlu0 %3621
      %3623 = vadd.xlane.f32.xlu0 %v3326
      %v3624 = vpop.xlane.xlu0 %3623
      %3625 = vadd.xlane.f32.xlu0 %v3331
      %v3626 = vpop.xlane.xlu0 %3625
      %3627 = vadd.xlane.f32.xlu0 %v3334
      %v3628 = vpop.xlane.xlu0 %3627
      %3629 = vadd.xlane.f32.xlu0 %v3339
      %v3630 = vpop.xlane.xlu0 %3629
      %3631 = vadd.xlane.f32.xlu0 %v3342
      %v3632 = vpop.xlane.xlu0 %3631
      %3633 = vadd.xlane.f32.xlu0 %v3347
      %v3634 = vpop.xlane.xlu0 %3633
      %3635 = vadd.xlane.f32.xlu0 %v3350
      %v3636 = vpop.xlane.xlu0 %3635
      %3637 = vadd.xlane.f32.xlu0 %v3355
      %v3638 = vpop.xlane.xlu0 %3637
      %3639 = vadd.xlane.f32.xlu0 %v3358
      %v3640 = vpop.xlane.xlu0 %3639
      %3641 = vadd.xlane.f32.xlu0 %v3363
      %v3642 = vpop.xlane.xlu0 %3641
      %3643 = vadd.xlane.f32.xlu0 %v3366
      %v3644 = vpop.xlane.xlu0 %3643
      %3645 = vadd.xlane.f32.xlu0 %v3371
      %v3646 = vpop.xlane.xlu0 %3645
      %3647 = vadd.xlane.f32.xlu0 %v3374
      %v3648 = vpop.xlane.xlu0 %3647
      %3649 = vadd.xlane.f32.xlu0 %v3379
      %v3650 = vpop.xlane.xlu0 %3649
      %3651 = vadd.xlane.f32.xlu0 %v3382
      %v3652 = vpop.xlane.xlu0 %3651
      %3653 = vadd.xlane.f32.xlu0 %v3387
      %v3654 = vpop.xlane.xlu0 %3653
      %3655 = vadd.xlane.f32.xlu0 %v3390
      %v3656 = vpop.xlane.xlu0 %3655
      %3657 = vadd.xlane.f32.xlu0 %v3395
      %v3658 = vpop.xlane.xlu0 %3657
      %3659 = vadd.xlane.f32.xlu0 %v3398
      %v3660 = vpop.xlane.xlu0 %3659
      %3661 = vadd.xlane.f32.xlu0 %v3403
      %v3662 = vpop.xlane.xlu0 %3661
      %3663 = vadd.xlane.f32.xlu0 %v3406
      %v3664 = vpop.xlane.xlu0 %3663
      %3665 = vadd.xlane.f32.xlu0 %v3411
      %v3666 = vpop.xlane.xlu0 %3665
      %3667 = vadd.xlane.f32.xlu0 %v3414
      %v3668 = vpop.xlane.xlu0 %3667
      %3669 = vadd.xlane.f32.xlu0 %v3419
      %v3670 = vpop.xlane.xlu0 %3669
      %3671 = vadd.xlane.f32.xlu0 %v3422
      %v3672 = vpop.xlane.xlu0 %3671
      %3673 = vadd.xlane.f32.xlu0 %v3427
      %v3674 = vpop.xlane.xlu0 %3673
      %3675 = vadd.xlane.f32.xlu0 %v3430
      %v3676 = vpop.xlane.xlu0 %3675
      %3677 = vadd.xlane.f32.xlu0 %v3435
      %v3678 = vpop.xlane.xlu0 %3677
      %3679 = vadd.xlane.f32.xlu0 %v3438
      %v3680 = vpop.xlane.xlu0 %3679
      %3681 = vadd.xlane.f32.xlu0 %v3443
      %v3682 = vpop.xlane.xlu0 %3681
      %3683 = vadd.xlane.f32.xlu0 %v3446
      %v3684 = vpop.xlane.xlu0 %3683
      %3685 = vadd.xlane.f32.xlu0 %v3451
      %v3686 = vpop.xlane.xlu0 %3685
      %3687 = vadd.xlane.f32.xlu0 %v3454
      %v3688 = vpop.xlane.xlu0 %3687
      %3689 = vadd.xlane.f32.xlu0 %v3459
      %v3690 = vpop.xlane.xlu0 %3689
      %3691 = vadd.xlane.f32.xlu0 %v3462
      %v3692 = vpop.xlane.xlu0 %3691
      %3693 = vadd.xlane.f32.xlu0 %v3467
      %v3694 = vpop.xlane.xlu0 %3693
      %3695 = vadd.xlane.f32.xlu0 %v3470
      %v3696 = vpop.xlane.xlu0 %3695
      %3697 = vadd.xlane.f32.xlu0 %v3475
      %v3698 = vpop.xlane.xlu0 %3697
      %3699 = vadd.xlane.f32.xlu0 %v3478
      %v3700 = vpop.xlane.xlu0 %3699
      %3701 = vadd.xlane.f32.xlu0 %v3483
      %v3702 = vpop.xlane.xlu0 %3701
      %3703 = vadd.xlane.f32.xlu0 %v3486
      %v3704 = vpop.xlane.xlu0 %3703
      %3705 = vadd.xlane.f32.xlu0 %v3491
      %v3706 = vpop.xlane.xlu0 %3705
      %3707 = vadd.xlane.f32.xlu0 %v3494
      %v3708 = vpop.xlane.xlu0 %3707
      %3709 = vadd.xlane.f32.xlu0 %v3499
      %v3710 = vpop.xlane.xlu0 %3709
      %3711 = vadd.xlane.f32.xlu0 %v3502
      %v3712 = vpop.xlane.xlu0 %3711
      %3713 = vadd.xlane.f32.xlu0 %v3507
      %v3714 = vpop.xlane.xlu0 %3713
      %3715 = vadd.xlane.f32.xlu0 %v3510
      %v3716 = vpop.xlane.xlu0 %3715
      %3717 = vadd.xlane.f32.xlu0 %v3515
      %v3718 = vpop.xlane.xlu0 %3717
      %3719 = vadd.xlane.f32.xlu0 %v3518
      %v3720 = vpop.xlane.xlu0 %3719
      %3721 = vadd.xlane.f32.xlu0 %v3523
      %v3722 = vpop.xlane.xlu0 %3721
      %3723 = vadd.xlane.f32.xlu0 %v3526
      %v3724 = vpop.xlane.xlu0 %3723
      %3725 = vadd.xlane.f32.xlu0 %v3531
      %v3726 = vpop.xlane.xlu0 %3725
      %3727 = vadd.xlane.f32.xlu0 %v3534
      %v3728 = vpop.xlane.xlu0 %3727
      %3729 = vadd.xlane.f32.xlu0 %v3539
      %v3730 = vpop.xlane.xlu0 %3729
      %3731 = vadd.xlane.f32.xlu0 %v3542
      %v3732 = vpop.xlane.xlu0 %3731
      %3733 = vadd.xlane.f32.xlu0 %v3547
      %v3734 = vpop.xlane.xlu0 %3733
      %3735 = vadd.xlane.f32.xlu0 %v3550
      %v3736 = vpop.xlane.xlu0 %3735
      %3737 = vadd.xlane.f32.xlu0 %v3555
      %v3738 = vpop.xlane.xlu0 %3737
      %3739 = vadd.xlane.f32.xlu0 %v3558
      %v3740 = vpop.xlane.xlu0 %3739
      %3741 = vadd.xlane.f32.xlu0 %v3563
      %v3742 = vpop.xlane.xlu0 %3741
      %3743 = vadd.xlane.f32.xlu0 %v3566
      %v3744 = vpop.xlane.xlu0 %3743
      %3745 = vadd.xlane.f32.xlu0 %v3571
      %v3746 = vpop.xlane.xlu0 %3745
      %3747 = vadd.xlane.f32.xlu0 %v3574
      %v3748 = vpop.xlane.xlu0 %3747
      %3749 = vadd.xlane.f32.xlu0 %v3579
      %v3750 = vpop.xlane.xlu0 %3749
      %3751 = vadd.xlane.f32.xlu0 %v3582
      %v3752 = vpop.xlane.xlu0 %3751
      %3753 = vadd.xlane.f32.xlu0 %v3587
      %v3754 = vpop.xlane.xlu0 %3753
      %3755 = vadd.xlane.f32.xlu0 %v3590
      %v3756 = vpop.xlane.xlu0 %3755
      %3757 = vadd.xlane.f32.xlu0 %v3595
      %v3758 = vpop.xlane.xlu0 %3757
      %3759 = vadd.xlane.f32.xlu0 %v3598
      %v3760 = vpop.xlane.xlu0 %3759
      %v3761 = vrcp.pop 128.0
      %v3762 = vmul.f32 %v3602, %v3761
      %v3763 = vmul.f32 %v3604, %v3761
      %v3764 = vmul.f32 %v3606, %v3761
      %v3765 = vmul.f32 %v3608, %v3761
      %v3766 = vmul.f32 %v3610, %v3761
      %v3767 = vmul.f32 %v3612, %v3761
      %v3768 = vmul.f32 %v3614, %v3761
      %v3769 = vmul.f32 %v3616, %v3761
      %v3770 = vmul.f32 %v3618, %v3761
      %v3771 = vmul.f32 %v3620, %v3761
      %v3772 = vmul.f32 %v3622, %v3761
      %v3773 = vmul.f32 %v3624, %v3761
      %v3774 = vmul.f32 %v3626, %v3761
      %v3775 = vmul.f32 %v3628, %v3761
      %v3776 = vmul.f32 %v3630, %v3761
      %v3777 = vmul.f32 %v3632, %v3761
      %v3778 = vmul.f32 %v3634, %v3761
      %v3779 = vmul.f32 %v3636, %v3761
      %v3780 = vmul.f32 %v3638, %v3761
      %v3781 = vmul.f32 %v3640, %v3761
      %v3782 = vmul.f32 %v3642, %v3761
      %v3783 = vmul.f32 %v3644, %v3761
      %v3784 = vmul.f32 %v3646, %v3761
      %v3785 = vmul.f32 %v3648, %v3761
      %v3786 = vmul.f32 %v3650, %v3761
      %v3787 = vmul.f32 %v3652, %v3761
      %v3788 = vmul.f32 %v3654, %v3761
      %v3789 = vmul.f32 %v3656, %v3761
      %v3790 = vmul.f32 %v3658, %v3761
      %v3791 = vmul.f32 %v3660, %v3761
      %v3792 = vmul.f32 %v3662, %v3761
      %v3793 = vmul.f32 %v3664, %v3761
      %v3794 = vmul.f32 %v3666, %v3761
      %v3795 = vmul.f32 %v3668, %v3761
      %v3796 = vmul.f32 %v3670, %v3761
      %v3797 = vmul.f32 %v3672, %v3761
      %v3798 = vmul.f32 %v3674, %v3761
      %v3799 = vmul.f32 %v3676, %v3761
      %v3800 = vmul.f32 %v3678, %v3761
      %v3801 = vmul.f32 %v3680, %v3761
      %v3802 = vmul.f32 %v3682, %v3761
      %v3803 = vmul.f32 %v3684, %v3761
      %v3804 = vmul.f32 %v3686, %v3761
      %v3805 = vmul.f32 %v3688, %v3761
      %v3806 = vmul.f32 %v3690, %v3761
      %v3807 = vmul.f32 %v3692, %v3761
      %v3808 = vmul.f32 %v3694, %v3761
      %v3809 = vmul.f32 %v3696, %v3761
      %v3810 = vmul.f32 %v3698, %v3761
      %v3811 = vmul.f32 %v3700, %v3761
      %v3812 = vmul.f32 %v3702, %v3761
      %v3813 = vmul.f32 %v3704, %v3761
      %v3814 = vmul.f32 %v3706, %v3761
      %v3815 = vmul.f32 %v3708, %v3761
      %v3816 = vmul.f32 %v3710, %v3761
      %v3817 = vmul.f32 %v3712, %v3761
      %v3818 = vmul.f32 %v3714, %v3761
      %v3819 = vmul.f32 %v3716, %v3761
      %v3820 = vmul.f32 %v3718, %v3761
      %v3821 = vmul.f32 %v3720, %v3761
      %v3822 = vmul.f32 %v3722, %v3761
      %v3823 = vmul.f32 %v3724, %v3761
      %v3824 = vmul.f32 %v3726, %v3761
      %v3825 = vmul.f32 %v3728, %v3761
      %v3826 = vmul.f32 %v3730, %v3761
      %v3827 = vmul.f32 %v3732, %v3761
      %v3828 = vmul.f32 %v3734, %v3761
      %v3829 = vmul.f32 %v3736, %v3761
      %v3830 = vmul.f32 %v3738, %v3761
      %v3831 = vmul.f32 %v3740, %v3761
      %v3832 = vmul.f32 %v3742, %v3761
      %v3833 = vmul.f32 %v3744, %v3761
      %v3834 = vmul.f32 %v3746, %v3761
      %v3835 = vmul.f32 %v3748, %v3761
      %v3836 = vmul.f32 %v3750, %v3761
      %v3837 = vmul.f32 %v3752, %v3761
      %v3838 = vmul.f32 %v3754, %v3761
      %v3839 = vmul.f32 %v3756, %v3761
      %v3840 = vmul.f32 %v3758, %v3761
      %v3841 = vmul.f32 %v3760, %v3761
      %v3842 = vsub.f32 %v3283, %v3762
      %v3843 = vsub.f32 %v3286, %v3763
      %v3844 = vsub.f32 %v3291, %v3764
      %v3845 = vsub.f32 %v3294, %v3765
      %v3846 = vsub.f32 %v3299, %v3766
      %v3847 = vsub.f32 %v3302, %v3767
      %v3848 = vsub.f32 %v3307, %v3768
      %v3849 = vsub.f32 %v3310, %v3769
      %v3850 = vsub.f32 %v3315, %v3770
      %v3851 = vsub.f32 %v3318, %v3771
      %v3852 = vsub.f32 %v3323, %v3772
      %v3853 = vsub.f32 %v3326, %v3773
      %v3854 = vsub.f32 %v3331, %v3774
      %v3855 = vsub.f32 %v3334, %v3775
      %v3856 = vsub.f32 %v3339, %v3776
      %v3857 = vsub.f32 %v3342, %v3777
      %v3858 = vsub.f32 %v3347, %v3778
      %v3859 = vsub.f32 %v3350, %v3779
      %v3860 = vsub.f32 %v3355, %v3780
      %v3861 = vsub.f32 %v3358, %v3781
      %v3862 = vsub.f32 %v3363, %v3782
      %v3863 = vsub.f32 %v3366, %v3783
      %v3864 = vsub.f32 %v3371, %v3784
      %v3865 = vsub.f32 %v3374, %v3785
      %v3866 = vsub.f32 %v3379, %v3786
      %v3867 = vsub.f32 %v3382, %v3787
      %v3868 = vsub.f32 %v3387, %v3788
      %v3869 = vsub.f32 %v3390, %v3789
      %v3870 = vsub.f32 %v3395, %v3790
      %v3871 = vsub.f32 %v3398, %v3791
      %v3872 = vsub.f32 %v3403, %v3792
      %v3873 = vsub.f32 %v3406, %v3793
      %v3874 = vsub.f32 %v3411, %v3794
      %v3875 = vsub.f32 %v3414, %v3795
      %v3876 = vsub.f32 %v3419, %v3796
      %v3877 = vsub.f32 %v3422, %v3797
      %v3878 = vsub.f32 %v3427, %v3798
      %v3879 = vsub.f32 %v3430, %v3799
      %v3880 = vsub.f32 %v3435, %v3800
      %v3881 = vsub.f32 %v3438, %v3801
      %v3882 = vsub.f32 %v3443, %v3802
      %v3883 = vsub.f32 %v3446, %v3803
      %v3884 = vsub.f32 %v3451, %v3804
      %v3885 = vsub.f32 %v3454, %v3805
      %v3886 = vsub.f32 %v3459, %v3806
      %v3887 = vsub.f32 %v3462, %v3807
      %v3888 = vsub.f32 %v3467, %v3808
      %v3889 = vsub.f32 %v3470, %v3809
      %v3890 = vsub.f32 %v3475, %v3810
      %v3891 = vsub.f32 %v3478, %v3811
      %v3892 = vsub.f32 %v3483, %v3812
      %v3893 = vsub.f32 %v3486, %v3813
      %v3894 = vsub.f32 %v3491, %v3814
      %v3895 = vsub.f32 %v3494, %v3815
      %v3896 = vsub.f32 %v3499, %v3816
      %v3897 = vsub.f32 %v3502, %v3817
      %v3898 = vsub.f32 %v3507, %v3818
      %v3899 = vsub.f32 %v3510, %v3819
      %v3900 = vsub.f32 %v3515, %v3820
      %v3901 = vsub.f32 %v3518, %v3821
      %v3902 = vsub.f32 %v3523, %v3822
      %v3903 = vsub.f32 %v3526, %v3823
      %v3904 = vsub.f32 %v3531, %v3824
      %v3905 = vsub.f32 %v3534, %v3825
      %v3906 = vsub.f32 %v3539, %v3826
      %v3907 = vsub.f32 %v3542, %v3827
      %v3908 = vsub.f32 %v3547, %v3828
      %v3909 = vsub.f32 %v3550, %v3829
      %v3910 = vsub.f32 %v3555, %v3830
      %v3911 = vsub.f32 %v3558, %v3831
      %v3912 = vsub.f32 %v3563, %v3832
      %v3913 = vsub.f32 %v3566, %v3833
      %v3914 = vsub.f32 %v3571, %v3834
      %v3915 = vsub.f32 %v3574, %v3835
      %v3916 = vsub.f32 %v3579, %v3836
      %v3917 = vsub.f32 %v3582, %v3837
      %v3918 = vsub.f32 %v3587, %v3838
      %v3919 = vsub.f32 %v3590, %v3839
      %v3920 = vsub.f32 %v3595, %v3840
      %v3921 = vsub.f32 %v3598, %v3841
      %v3922 = vmul.f32 %v3842, %v3842
      %v3923 = vmul.f32 %v3843, %v3843
      %v3924 = vmul.f32 %v3844, %v3844
      %v3925 = vmul.f32 %v3845, %v3845
      %v3926 = vmul.f32 %v3846, %v3846
      %v3927 = vmul.f32 %v3847, %v3847
      %v3928 = vmul.f32 %v3848, %v3848
      %v3929 = vmul.f32 %v3849, %v3849
      %v3930 = vmul.f32 %v3850, %v3850
      %v3931 = vmul.f32 %v3851, %v3851
      %v3932 = vmul.f32 %v3852, %v3852
      %v3933 = vmul.f32 %v3853, %v3853
      %v3934 = vmul.f32 %v3854, %v3854
      %v3935 = vmul.f32 %v3855, %v3855
      %v3936 = vmul.f32 %v3856, %v3856
      %v3937 = vmul.f32 %v3857, %v3857
      %v3938 = vmul.f32 %v3858, %v3858
      %v3939 = vmul.f32 %v3859, %v3859
      %v3940 = vmul.f32 %v3860, %v3860
      %v3941 = vmul.f32 %v3861, %v3861
      %v3942 = vmul.f32 %v3862, %v3862
      %v3943 = vmul.f32 %v3863, %v3863
      %v3944 = vmul.f32 %v3864, %v3864
      %v3945 = vmul.f32 %v3865, %v3865
      %v3946 = vmul.f32 %v3866, %v3866
      %v3947 = vmul.f32 %v3867, %v3867
      %v3948 = vmul.f32 %v3868, %v3868
      %v3949 = vmul.f32 %v3869, %v3869
      %v3950 = vmul.f32 %v3870, %v3870
      %v3951 = vmul.f32 %v3871, %v3871
      %v3952 = vmul.f32 %v3872, %v3872
      %v3953 = vmul.f32 %v3873, %v3873
      %v3954 = vmul.f32 %v3874, %v3874
      %v3955 = vmul.f32 %v3875, %v3875
      %v3956 = vmul.f32 %v3876, %v3876
      %v3957 = vmul.f32 %v3877, %v3877
      %v3958 = vmul.f32 %v3878, %v3878
      %v3959 = vmul.f32 %v3879, %v3879
      %v3960 = vmul.f32 %v3880, %v3880
      %v3961 = vmul.f32 %v3881, %v3881
      %v3962 = vmul.f32 %v3882, %v3882
      %v3963 = vmul.f32 %v3883, %v3883
      %v3964 = vmul.f32 %v3884, %v3884
      %v3965 = vmul.f32 %v3885, %v3885
      %v3966 = vmul.f32 %v3886, %v3886
      %v3967 = vmul.f32 %v3887, %v3887
      %v3968 = vmul.f32 %v3888, %v3888
      %v3969 = vmul.f32 %v3889, %v3889
      %v3970 = vmul.f32 %v3890, %v3890
      %v3971 = vmul.f32 %v3891, %v3891
      %v3972 = vmul.f32 %v3892, %v3892
      %v3973 = vmul.f32 %v3893, %v3893
      %v3974 = vmul.f32 %v3894, %v3894
      %v3975 = vmul.f32 %v3895, %v3895
      %v3976 = vmul.f32 %v3896, %v3896
      %v3977 = vmul.f32 %v3897, %v3897
      %v3978 = vmul.f32 %v3898, %v3898
      %v3979 = vmul.f32 %v3899, %v3899
      %v3980 = vmul.f32 %v3900, %v3900
      %v3981 = vmul.f32 %v3901, %v3901
      %v3982 = vmul.f32 %v3902, %v3902
      %v3983 = vmul.f32 %v3903, %v3903
      %v3984 = vmul.f32 %v3904, %v3904
      %v3985 = vmul.f32 %v3905, %v3905
      %v3986 = vmul.f32 %v3906, %v3906
      %v3987 = vmul.f32 %v3907, %v3907
      %v3988 = vmul.f32 %v3908, %v3908
      %v3989 = vmul.f32 %v3909, %v3909
      %v3990 = vmul.f32 %v3910, %v3910
      %v3991 = vmul.f32 %v3911, %v3911
      %v3992 = vmul.f32 %v3912, %v3912
      %v3993 = vmul.f32 %v3913, %v3913
      %v3994 = vmul.f32 %v3914, %v3914
      %v3995 = vmul.f32 %v3915, %v3915
      %v3996 = vmul.f32 %v3916, %v3916
      %v3997 = vmul.f32 %v3917, %v3917
      %v3998 = vmul.f32 %v3918, %v3918
      %v3999 = vmul.f32 %v3919, %v3919
      %v4000 = vmul.f32 %v3920, %v3920
      %v4001 = vmul.f32 %v3921, %v3921
      %4002 = vadd.xlane.f32.xlu0 %v3922
      %v4003 = vpop.xlane.xlu0 %4002
      %4004 = vadd.xlane.f32.xlu0 %v3923
      %v4005 = vpop.xlane.xlu0 %4004
      %4006 = vadd.xlane.f32.xlu0 %v3924
      %v4007 = vpop.xlane.xlu0 %4006
      %4008 = vadd.xlane.f32.xlu0 %v3925
      %v4009 = vpop.xlane.xlu0 %4008
      %4010 = vadd.xlane.f32.xlu0 %v3926
      %v4011 = vpop.xlane.xlu0 %4010
      %4012 = vadd.xlane.f32.xlu0 %v3927
      %v4013 = vpop.xlane.xlu0 %4012
      %4014 = vadd.xlane.f32.xlu0 %v3928
      %v4015 = vpop.xlane.xlu0 %4014
      %4016 = vadd.xlane.f32.xlu0 %v3929
      %v4017 = vpop.xlane.xlu0 %4016
      %4018 = vadd.xlane.f32.xlu0 %v3930
      %v4019 = vpop.xlane.xlu0 %4018
      %4020 = vadd.xlane.f32.xlu0 %v3931
      %v4021 = vpop.xlane.xlu0 %4020
      %4022 = vadd.xlane.f32.xlu0 %v3932
      %v4023 = vpop.xlane.xlu0 %4022
      %4024 = vadd.xlane.f32.xlu0 %v3933
      %v4025 = vpop.xlane.xlu0 %4024
      %4026 = vadd.xlane.f32.xlu0 %v3934
      %v4027 = vpop.xlane.xlu0 %4026
      %4028 = vadd.xlane.f32.xlu0 %v3935
      %v4029 = vpop.xlane.xlu0 %4028
      %4030 = vadd.xlane.f32.xlu0 %v3936
      %v4031 = vpop.xlane.xlu0 %4030
      %4032 = vadd.xlane.f32.xlu0 %v3937
      %v4033 = vpop.xlane.xlu0 %4032
      %4034 = vadd.xlane.f32.xlu0 %v3938
      %v4035 = vpop.xlane.xlu0 %4034
      %4036 = vadd.xlane.f32.xlu0 %v3939
      %v4037 = vpop.xlane.xlu0 %4036
      %4038 = vadd.xlane.f32.xlu0 %v3940
      %v4039 = vpop.xlane.xlu0 %4038
      %4040 = vadd.xlane.f32.xlu0 %v3941
      %v4041 = vpop.xlane.xlu0 %4040
      %4042 = vadd.xlane.f32.xlu0 %v3942
      %v4043 = vpop.xlane.xlu0 %4042
      %4044 = vadd.xlane.f32.xlu0 %v3943
      %v4045 = vpop.xlane.xlu0 %4044
      %4046 = vadd.xlane.f32.xlu0 %v3944
      %v4047 = vpop.xlane.xlu0 %4046
      %4048 = vadd.xlane.f32.xlu0 %v3945
      %v4049 = vpop.xlane.xlu0 %4048
      %4050 = vadd.xlane.f32.xlu0 %v3946
      %v4051 = vpop.xlane.xlu0 %4050
      %4052 = vadd.xlane.f32.xlu0 %v3947
      %v4053 = vpop.xlane.xlu0 %4052
      %4054 = vadd.xlane.f32.xlu0 %v3948
      %v4055 = vpop.xlane.xlu0 %4054
      %4056 = vadd.xlane.f32.xlu0 %v3949
      %v4057 = vpop.xlane.xlu0 %4056
      %4058 = vadd.xlane.f32.xlu0 %v3950
      %v4059 = vpop.xlane.xlu0 %4058
      %4060 = vadd.xlane.f32.xlu0 %v3951
      %v4061 = vpop.xlane.xlu0 %4060
      %4062 = vadd.xlane.f32.xlu0 %v3952
      %v4063 = vpop.xlane.xlu0 %4062
      %4064 = vadd.xlane.f32.xlu0 %v3953
      %v4065 = vpop.xlane.xlu0 %4064
      %4066 = vadd.xlane.f32.xlu0 %v3954
      %v4067 = vpop.xlane.xlu0 %4066
      %4068 = vadd.xlane.f32.xlu0 %v3955
      %v4069 = vpop.xlane.xlu0 %4068
      %4070 = vadd.xlane.f32.xlu0 %v3956
      %v4071 = vpop.xlane.xlu0 %4070
      %4072 = vadd.xlane.f32.xlu0 %v3957
      %v4073 = vpop.xlane.xlu0 %4072
      %4074 = vadd.xlane.f32.xlu0 %v3958
      %v4075 = vpop.xlane.xlu0 %4074
      %4076 = vadd.xlane.f32.xlu0 %v3959
      %v4077 = vpop.xlane.xlu0 %4076
      %4078 = vadd.xlane.f32.xlu0 %v3960
      %v4079 = vpop.xlane.xlu0 %4078
      %4080 = vadd.xlane.f32.xlu0 %v3961
      %v4081 = vpop.xlane.xlu0 %4080
      %4082 = vadd.xlane.f32.xlu0 %v3962
      %v4083 = vpop.xlane.xlu0 %4082
      %4084 = vadd.xlane.f32.xlu0 %v3963
      %v4085 = vpop.xlane.xlu0 %4084
      %4086 = vadd.xlane.f32.xlu0 %v3964
      %v4087 = vpop.xlane.xlu0 %4086
      %4088 = vadd.xlane.f32.xlu0 %v3965
      %v4089 = vpop.xlane.xlu0 %4088
      %4090 = vadd.xlane.f32.xlu0 %v3966
      %v4091 = vpop.xlane.xlu0 %4090
      %4092 = vadd.xlane.f32.xlu0 %v3967
      %v4093 = vpop.xlane.xlu0 %4092
      %4094 = vadd.xlane.f32.xlu0 %v3968
      %v4095 = vpop.xlane.xlu0 %4094
      %4096 = vadd.xlane.f32.xlu0 %v3969
      %v4097 = vpop.xlane.xlu0 %4096
      %4098 = vadd.xlane.f32.xlu0 %v3970
      %v4099 = vpop.xlane.xlu0 %4098
      %4100 = vadd.xlane.f32.xlu0 %v3971
      %v4101 = vpop.xlane.xlu0 %4100
      %4102 = vadd.xlane.f32.xlu0 %v3972
      %v4103 = vpop.xlane.xlu0 %4102
      %4104 = vadd.xlane.f32.xlu0 %v3973
      %v4105 = vpop.xlane.xlu0 %4104
      %4106 = vadd.xlane.f32.xlu0 %v3974
      %v4107 = vpop.xlane.xlu0 %4106
      %4108 = vadd.xlane.f32.xlu0 %v3975
      %v4109 = vpop.xlane.xlu0 %4108
      %4110 = vadd.xlane.f32.xlu0 %v3976
      %v4111 = vpop.xlane.xlu0 %4110
      %4112 = vadd.xlane.f32.xlu0 %v3977
      %v4113 = vpop.xlane.xlu0 %4112
      %4114 = vadd.xlane.f32.xlu0 %v3978
      %v4115 = vpop.xlane.xlu0 %4114
      %4116 = vadd.xlane.f32.xlu0 %v3979
      %v4117 = vpop.xlane.xlu0 %4116
      %4118 = vadd.xlane.f32.xlu0 %v3980
      %v4119 = vpop.xlane.xlu0 %4118
      %4120 = vadd.xlane.f32.xlu0 %v3981
      %v4121 = vpop.xlane.xlu0 %4120
      %4122 = vadd.xlane.f32.xlu0 %v3982
      %v4123 = vpop.xlane.xlu0 %4122
      %4124 = vadd.xlane.f32.xlu0 %v3983
      %v4125 = vpop.xlane.xlu0 %4124
      %4126 = vadd.xlane.f32.xlu0 %v3984
      %v4127 = vpop.xlane.xlu0 %4126
      %4128 = vadd.xlane.f32.xlu0 %v3985
      %v4129 = vpop.xlane.xlu0 %4128
      %4130 = vadd.xlane.f32.xlu0 %v3986
      %v4131 = vpop.xlane.xlu0 %4130
      %4132 = vadd.xlane.f32.xlu0 %v3987
      %v4133 = vpop.xlane.xlu0 %4132
      %4134 = vadd.xlane.f32.xlu0 %v3988
      %v4135 = vpop.xlane.xlu0 %4134
      %4136 = vadd.xlane.f32.xlu0 %v3989
      %v4137 = vpop.xlane.xlu0 %4136
      %4138 = vadd.xlane.f32.xlu0 %v3990
      %v4139 = vpop.xlane.xlu0 %4138
      %4140 = vadd.xlane.f32.xlu0 %v3991
      %v4141 = vpop.xlane.xlu0 %4140
      %4142 = vadd.xlane.f32.xlu0 %v3992
      %v4143 = vpop.xlane.xlu0 %4142
      %4144 = vadd.xlane.f32.xlu0 %v3993
      %v4145 = vpop.xlane.xlu0 %4144
      %4146 = vadd.xlane.f32.xlu0 %v3994
      %v4147 = vpop.xlane.xlu0 %4146
      %4148 = vadd.xlane.f32.xlu0 %v3995
      %v4149 = vpop.xlane.xlu0 %4148
      %4150 = vadd.xlane.f32.xlu0 %v3996
      %v4151 = vpop.xlane.xlu0 %4150
      %4152 = vadd.xlane.f32.xlu0 %v3997
      %v4153 = vpop.xlane.xlu0 %4152
      %4154 = vadd.xlane.f32.xlu0 %v3998
      %v4155 = vpop.xlane.xlu0 %4154
      %4156 = vadd.xlane.f32.xlu0 %v3999
      %v4157 = vpop.xlane.xlu0 %4156
      %4158 = vadd.xlane.f32.xlu0 %v4000
      %v4159 = vpop.xlane.xlu0 %4158
      %4160 = vadd.xlane.f32.xlu0 %v4001
      %v4161 = vpop.xlane.xlu0 %4160
      %v4162 = vmul.f32 %v4003, %v3761
      %v4163 = vmul.f32 %v4005, %v3761
      %v4164 = vmul.f32 %v4007, %v3761
      %v4165 = vmul.f32 %v4009, %v3761
      %v4166 = vmul.f32 %v4011, %v3761
      %v4167 = vmul.f32 %v4013, %v3761
      %v4168 = vmul.f32 %v4015, %v3761
      %v4169 = vmul.f32 %v4017, %v3761
      %v4170 = vmul.f32 %v4019, %v3761
      %v4171 = vmul.f32 %v4021, %v3761
      %v4172 = vmul.f32 %v4023, %v3761
      %v4173 = vmul.f32 %v4025, %v3761
      %v4174 = vmul.f32 %v4027, %v3761
      %v4175 = vmul.f32 %v4029, %v3761
      %v4176 = vmul.f32 %v4031, %v3761
      %v4177 = vmul.f32 %v4033, %v3761
      %v4178 = vmul.f32 %v4035, %v3761
      %v4179 = vmul.f32 %v4037, %v3761
      %v4180 = vmul.f32 %v4039, %v3761
      %v4181 = vmul.f32 %v4041, %v3761
      %v4182 = vmul.f32 %v4043, %v3761
      %v4183 = vmul.f32 %v4045, %v3761
      %v4184 = vmul.f32 %v4047, %v3761
      %v4185 = vmul.f32 %v4049, %v3761
      %v4186 = vmul.f32 %v4051, %v3761
      %v4187 = vmul.f32 %v4053, %v3761
      %v4188 = vmul.f32 %v4055, %v3761
      %v4189 = vmul.f32 %v4057, %v3761
      %v4190 = vmul.f32 %v4059, %v3761
      %v4191 = vmul.f32 %v4061, %v3761
      %v4192 = vmul.f32 %v4063, %v3761
      %v4193 = vmul.f32 %v4065, %v3761
      %v4194 = vmul.f32 %v4067, %v3761
      %v4195 = vmul.f32 %v4069, %v3761
      %v4196 = vmul.f32 %v4071, %v3761
      %v4197 = vmul.f32 %v4073, %v3761
      %v4198 = vmul.f32 %v4075, %v3761
      %v4199 = vmul.f32 %v4077, %v3761
      %v4200 = vmul.f32 %v4079, %v3761
      %v4201 = vmul.f32 %v4081, %v3761
      %v4202 = vmul.f32 %v4083, %v3761
      %v4203 = vmul.f32 %v4085, %v3761
      %v4204 = vmul.f32 %v4087, %v3761
      %v4205 = vmul.f32 %v4089, %v3761
      %v4206 = vmul.f32 %v4091, %v3761
      %v4207 = vmul.f32 %v4093, %v3761
      %v4208 = vmul.f32 %v4095, %v3761
      %v4209 = vmul.f32 %v4097, %v3761
      %v4210 = vmul.f32 %v4099, %v3761
      %v4211 = vmul.f32 %v4101, %v3761
      %v4212 = vmul.f32 %v4103, %v3761
      %v4213 = vmul.f32 %v4105, %v3761
      %v4214 = vmul.f32 %v4107, %v3761
      %v4215 = vmul.f32 %v4109, %v3761
      %v4216 = vmul.f32 %v4111, %v3761
      %v4217 = vmul.f32 %v4113, %v3761
      %v4218 = vmul.f32 %v4115, %v3761
      %v4219 = vmul.f32 %v4117, %v3761
      %v4220 = vmul.f32 %v4119, %v3761
      %v4221 = vmul.f32 %v4121, %v3761
      %v4222 = vmul.f32 %v4123, %v3761
      %v4223 = vmul.f32 %v4125, %v3761
      %v4224 = vmul.f32 %v4127, %v3761
      %v4225 = vmul.f32 %v4129, %v3761
      %v4226 = vmul.f32 %v4131, %v3761
      %v4227 = vmul.f32 %v4133, %v3761
      %v4228 = vmul.f32 %v4135, %v3761
      %v4229 = vmul.f32 %v4137, %v3761
      %v4230 = vmul.f32 %v4139, %v3761
      %v4231 = vmul.f32 %v4141, %v3761
      %v4232 = vmul.f32 %v4143, %v3761
      %v4233 = vmul.f32 %v4145, %v3761
      %v4234 = vmul.f32 %v4147, %v3761
      %v4235 = vmul.f32 %v4149, %v3761
      %v4236 = vmul.f32 %v4151, %v3761
      %v4237 = vmul.f32 %v4153, %v3761
      %v4238 = vmul.f32 %v4155, %v3761
      %v4239 = vmul.f32 %v4157, %v3761
      %v4240 = vmul.f32 %v4159, %v3761
      %v4241 = vmul.f32 %v4161, %v3761
      %v4242 = vadd.f32 %v4162, 1e-05
      %v4243 = vadd.f32 %v4163, 1e-05
      %v4244 = vadd.f32 %v4164, 1e-05
      %v4245 = vadd.f32 %v4165, 1e-05
      %v4246 = vadd.f32 %v4166, 1e-05
      %v4247 = vadd.f32 %v4167, 1e-05
      %v4248 = vadd.f32 %v4168, 1e-05
      %v4249 = vadd.f32 %v4169, 1e-05
      %v4250 = vadd.f32 %v4170, 1e-05
      %v4251 = vadd.f32 %v4171, 1e-05
      %v4252 = vadd.f32 %v4172, 1e-05
      %v4253 = vadd.f32 %v4173, 1e-05
      %v4254 = vadd.f32 %v4174, 1e-05
      %v4255 = vadd.f32 %v4175, 1e-05
      %v4256 = vadd.f32 %v4176, 1e-05
      %v4257 = vadd.f32 %v4177, 1e-05
      %v4258 = vadd.f32 %v4178, 1e-05
      %v4259 = vadd.f32 %v4179, 1e-05
      %v4260 = vadd.f32 %v4180, 1e-05
      %v4261 = vadd.f32 %v4181, 1e-05
      %v4262 = vadd.f32 %v4182, 1e-05
      %v4263 = vadd.f32 %v4183, 1e-05
      %v4264 = vadd.f32 %v4184, 1e-05
      %v4265 = vadd.f32 %v4185, 1e-05
      %v4266 = vadd.f32 %v4186, 1e-05
      %v4267 = vadd.f32 %v4187, 1e-05
      %v4268 = vadd.f32 %v4188, 1e-05
      %v4269 = vadd.f32 %v4189, 1e-05
      %v4270 = vadd.f32 %v4190, 1e-05
      %v4271 = vadd.f32 %v4191, 1e-05
      %v4272 = vadd.f32 %v4192, 1e-05
      %v4273 = vadd.f32 %v4193, 1e-05
      %v4274 = vadd.f32 %v4194, 1e-05
      %v4275 = vadd.f32 %v4195, 1e-05
      %v4276 = vadd.f32 %v4196, 1e-05
      %v4277 = vadd.f32 %v4197, 1e-05
      %v4278 = vadd.f32 %v4198, 1e-05
      %v4279 = vadd.f32 %v4199, 1e-05
      %v4280 = vadd.f32 %v4200, 1e-05
      %v4281 = vadd.f32 %v4201, 1e-05
      %v4282 = vadd.f32 %v4202, 1e-05
      %v4283 = vadd.f32 %v4203, 1e-05
      %v4284 = vadd.f32 %v4204, 1e-05
      %v4285 = vadd.f32 %v4205, 1e-05
      %v4286 = vadd.f32 %v4206, 1e-05
      %v4287 = vadd.f32 %v4207, 1e-05
      %v4288 = vadd.f32 %v4208, 1e-05
      %v4289 = vadd.f32 %v4209, 1e-05
      %v4290 = vadd.f32 %v4210, 1e-05
      %v4291 = vadd.f32 %v4211, 1e-05
      %v4292 = vadd.f32 %v4212, 1e-05
      %v4293 = vadd.f32 %v4213, 1e-05
      %v4294 = vadd.f32 %v4214, 1e-05
      %v4295 = vadd.f32 %v4215, 1e-05
      %v4296 = vadd.f32 %v4216, 1e-05
      %v4297 = vadd.f32 %v4217, 1e-05
      %v4298 = vadd.f32 %v4218, 1e-05
      %v4299 = vadd.f32 %v4219, 1e-05
      %v4300 = vadd.f32 %v4220, 1e-05
      %v4301 = vadd.f32 %v4221, 1e-05
      %v4302 = vadd.f32 %v4222, 1e-05
      %v4303 = vadd.f32 %v4223, 1e-05
      %v4304 = vadd.f32 %v4224, 1e-05
      %v4305 = vadd.f32 %v4225, 1e-05
      %v4306 = vadd.f32 %v4226, 1e-05
      %v4307 = vadd.f32 %v4227, 1e-05
      %v4308 = vadd.f32 %v4228, 1e-05
      %v4309 = vadd.f32 %v4229, 1e-05
      %v4310 = vadd.f32 %v4230, 1e-05
      %v4311 = vadd.f32 %v4231, 1e-05
      %v4312 = vadd.f32 %v4232, 1e-05
      %v4313 = vadd.f32 %v4233, 1e-05
      %v4314 = vadd.f32 %v4234, 1e-05
      %v4315 = vadd.f32 %v4235, 1e-05
      %v4316 = vadd.f32 %v4236, 1e-05
      %v4317 = vadd.f32 %v4237, 1e-05
      %v4318 = vadd.f32 %v4238, 1e-05
      %v4319 = vadd.f32 %v4239, 1e-05
      %v4320 = vadd.f32 %v4240, 1e-05
      %v4321 = vadd.f32 %v4241, 1e-05
      %v4322 = vrsqrt.pop %v4242
      %v4323 = vrsqrt.pop %v4243
      %v4324 = vrsqrt.pop %v4244
      %v4325 = vrsqrt.pop %v4245
      %v4326 = vrsqrt.pop %v4246
      %v4327 = vrsqrt.pop %v4247
      %v4328 = vrsqrt.pop %v4248
      %v4329 = vrsqrt.pop %v4249
      %v4330 = vrsqrt.pop %v4250
      %v4331 = vrsqrt.pop %v4251
      %v4332 = vrsqrt.pop %v4252
      %v4333 = vrsqrt.pop %v4253
      %v4334 = vrsqrt.pop %v4254
      %v4335 = vrsqrt.pop %v4255
      %v4336 = vrsqrt.pop %v4256
      %v4337 = vrsqrt.pop %v4257
      %v4338 = vrsqrt.pop %v4258
      %v4339 = vrsqrt.pop %v4259
      %v4340 = vrsqrt.pop %v4260
      %v4341 = vrsqrt.pop %v4261
      %v4342 = vrsqrt.pop %v4262
      %v4343 = vrsqrt.pop %v4263
      %v4344 = vrsqrt.pop %v4264
      %v4345 = vrsqrt.pop %v4265
      %v4346 = vrsqrt.pop %v4266
      %v4347 = vrsqrt.pop %v4267
      %v4348 = vrsqrt.pop %v4268
      %v4349 = vrsqrt.pop %v4269
      %v4350 = vrsqrt.pop %v4270
      %v4351 = vrsqrt.pop %v4271
      %v4352 = vrsqrt.pop %v4272
      %v4353 = vrsqrt.pop %v4273
      %v4354 = vrsqrt.pop %v4274
      %v4355 = vrsqrt.pop %v4275
      %v4356 = vrsqrt.pop %v4276
      %v4357 = vrsqrt.pop %v4277
      %v4358 = vrsqrt.pop %v4278
      %v4359 = vrsqrt.pop %v4279
      %v4360 = vrsqrt.pop %v4280
      %v4361 = vrsqrt.pop %v4281
      %v4362 = vrsqrt.pop %v4282
      %v4363 = vrsqrt.pop %v4283
      %v4364 = vrsqrt.pop %v4284
      %v4365 = vrsqrt.pop %v4285
      %v4366 = vrsqrt.pop %v4286
      %v4367 = vrsqrt.pop %v4287
      %v4368 = vrsqrt.pop %v4288
      %v4369 = vrsqrt.pop %v4289
      %v4370 = vrsqrt.pop %v4290
      %v4371 = vrsqrt.pop %v4291
      %v4372 = vrsqrt.pop %v4292
      %v4373 = vrsqrt.pop %v4293
      %v4374 = vrsqrt.pop %v4294
      %v4375 = vrsqrt.pop %v4295
      %v4376 = vrsqrt.pop %v4296
      %v4377 = vrsqrt.pop %v4297
      %v4378 = vrsqrt.pop %v4298
      %v4379 = vrsqrt.pop %v4299
      %v4380 = vrsqrt.pop %v4300
      %v4381 = vrsqrt.pop %v4301
      %v4382 = vrsqrt.pop %v4302
      %v4383 = vrsqrt.pop %v4303
      %v4384 = vrsqrt.pop %v4304
      %v4385 = vrsqrt.pop %v4305
      %v4386 = vrsqrt.pop %v4306
      %v4387 = vrsqrt.pop %v4307
      %v4388 = vrsqrt.pop %v4308
      %v4389 = vrsqrt.pop %v4309
      %v4390 = vrsqrt.pop %v4310
      %v4391 = vrsqrt.pop %v4311
      %v4392 = vrsqrt.pop %v4312
      %v4393 = vrsqrt.pop %v4313
      %v4394 = vrsqrt.pop %v4314
      %v4395 = vrsqrt.pop %v4315
      %v4396 = vrsqrt.pop %v4316
      %v4397 = vrsqrt.pop %v4317
      %v4398 = vrsqrt.pop %v4318
      %v4399 = vrsqrt.pop %v4319
      %v4400 = vrsqrt.pop %v4320
      %v4401 = vrsqrt.pop %v4321
      %v4402 = vmul.f32 %v3842, %v4322
      %v4403 = vmul.f32 %v3843, %v4323
      %v4404 = vmul.f32 %v3844, %v4324
      %v4405 = vmul.f32 %v3845, %v4325
      %v4406 = vmul.f32 %v3846, %v4326
      %v4407 = vmul.f32 %v3847, %v4327
      %v4408 = vmul.f32 %v3848, %v4328
      %v4409 = vmul.f32 %v3849, %v4329
      %v4410 = vmul.f32 %v3850, %v4330
      %v4411 = vmul.f32 %v3851, %v4331
      %v4412 = vmul.f32 %v3852, %v4332
      %v4413 = vmul.f32 %v3853, %v4333
      %v4414 = vmul.f32 %v3854, %v4334
      %v4415 = vmul.f32 %v3855, %v4335
      %v4416 = vmul.f32 %v3856, %v4336
      %v4417 = vmul.f32 %v3857, %v4337
      %v4418 = vmul.f32 %v3858, %v4338
      %v4419 = vmul.f32 %v3859, %v4339
      %v4420 = vmul.f32 %v3860, %v4340
      %v4421 = vmul.f32 %v3861, %v4341
      %v4422 = vmul.f32 %v3862, %v4342
      %v4423 = vmul.f32 %v3863, %v4343
      %v4424 = vmul.f32 %v3864, %v4344
      %v4425 = vmul.f32 %v3865, %v4345
      %v4426 = vmul.f32 %v3866, %v4346
      %v4427 = vmul.f32 %v3867, %v4347
      %v4428 = vmul.f32 %v3868, %v4348
      %v4429 = vmul.f32 %v3869, %v4349
      %v4430 = vmul.f32 %v3870, %v4350
      %v4431 = vmul.f32 %v3871, %v4351
      %v4432 = vmul.f32 %v3872, %v4352
      %v4433 = vmul.f32 %v3873, %v4353
      %v4434 = vmul.f32 %v3874, %v4354
      %v4435 = vmul.f32 %v3875, %v4355
      %v4436 = vmul.f32 %v3876, %v4356
      %v4437 = vmul.f32 %v3877, %v4357
      %v4438 = vmul.f32 %v3878, %v4358
      %v4439 = vmul.f32 %v3879, %v4359
      %v4440 = vmul.f32 %v3880, %v4360
      %v4441 = vmul.f32 %v3881, %v4361
      %v4442 = vmul.f32 %v3882, %v4362
      %v4443 = vmul.f32 %v3883, %v4363
      %v4444 = vmul.f32 %v3884, %v4364
      %v4445 = vmul.f32 %v3885, %v4365
      %v4446 = vmul.f32 %v3886, %v4366
      %v4447 = vmul.f32 %v3887, %v4367
      %v4448 = vmul.f32 %v3888, %v4368
      %v4449 = vmul.f32 %v3889, %v4369
      %v4450 = vmul.f32 %v3890, %v4370
      %v4451 = vmul.f32 %v3891, %v4371
      %v4452 = vmul.f32 %v3892, %v4372
      %v4453 = vmul.f32 %v3893, %v4373
      %v4454 = vmul.f32 %v3894, %v4374
      %v4455 = vmul.f32 %v3895, %v4375
      %v4456 = vmul.f32 %v3896, %v4376
      %v4457 = vmul.f32 %v3897, %v4377
      %v4458 = vmul.f32 %v3898, %v4378
      %v4459 = vmul.f32 %v3899, %v4379
      %v4460 = vmul.f32 %v3900, %v4380
      %v4461 = vmul.f32 %v3901, %v4381
      %v4462 = vmul.f32 %v3902, %v4382
      %v4463 = vmul.f32 %v3903, %v4383
      %v4464 = vmul.f32 %v3904, %v4384
      %v4465 = vmul.f32 %v3905, %v4385
      %v4466 = vmul.f32 %v3906, %v4386
      %v4467 = vmul.f32 %v3907, %v4387
      %v4468 = vmul.f32 %v3908, %v4388
      %v4469 = vmul.f32 %v3909, %v4389
      %v4470 = vmul.f32 %v3910, %v4390
      %v4471 = vmul.f32 %v3911, %v4391
      %v4472 = vmul.f32 %v3912, %v4392
      %v4473 = vmul.f32 %v3913, %v4393
      %v4474 = vmul.f32 %v3914, %v4394
      %v4475 = vmul.f32 %v3915, %v4395
      %v4476 = vmul.f32 %v3916, %v4396
      %v4477 = vmul.f32 %v3917, %v4397
      %v4478 = vmul.f32 %v3918, %v4398
      %v4479 = vmul.f32 %v3919, %v4399
      %v4480 = vmul.f32 %v3920, %v4400
      %v4481 = vmul.f32 %v3921, %v4401
      %v4482 = vld [vmem:[%s4] sm:$0x1]
      %v4484 = vlaneseq
      %v4485 = vshrl.u32 %v4484, 7
      %v4486 = vsub.s32 0, %v4485
      %v4487 = vrot.slane %v4482, %v4486
      %v4489 = vmul.f32 %v4402, %v4487
      %v4490 = vmul.f32 %v4403, %v4487
      %v4491 = vmul.f32 %v4404, %v4487
      %v4492 = vmul.f32 %v4405, %v4487
      %v4493 = vmul.f32 %v4406, %v4487
      %v4494 = vmul.f32 %v4407, %v4487
      %v4495 = vmul.f32 %v4408, %v4487
      %v4496 = vmul.f32 %v4409, %v4487
      %v4497 = vmul.f32 %v4410, %v4487
      %v4498 = vmul.f32 %v4411, %v4487
      %v4499 = vmul.f32 %v4412, %v4487
      %v4500 = vmul.f32 %v4413, %v4487
      %v4501 = vmul.f32 %v4414, %v4487
      %v4502 = vmul.f32 %v4415, %v4487
      %v4503 = vmul.f32 %v4416, %v4487
      %v4504 = vmul.f32 %v4417, %v4487
      %v4505 = vmul.f32 %v4418, %v4487
      %v4506 = vmul.f32 %v4419, %v4487
      %v4507 = vmul.f32 %v4420, %v4487
      %v4508 = vmul.f32 %v4421, %v4487
      %v4509 = vmul.f32 %v4422, %v4487
      %v4510 = vmul.f32 %v4423, %v4487
      %v4511 = vmul.f32 %v4424, %v4487
      %v4512 = vmul.f32 %v4425, %v4487
      %v4513 = vmul.f32 %v4426, %v4487
      %v4514 = vmul.f32 %v4427, %v4487
      %v4515 = vmul.f32 %v4428, %v4487
      %v4516 = vmul.f32 %v4429, %v4487
      %v4517 = vmul.f32 %v4430, %v4487
      %v4518 = vmul.f32 %v4431, %v4487
      %v4519 = vmul.f32 %v4432, %v4487
      %v4520 = vmul.f32 %v4433, %v4487
      %v4521 = vmul.f32 %v4434, %v4487
      %v4522 = vmul.f32 %v4435, %v4487
      %v4523 = vmul.f32 %v4436, %v4487
      %v4524 = vmul.f32 %v4437, %v4487
      %v4525 = vmul.f32 %v4438, %v4487
      %v4526 = vmul.f32 %v4439, %v4487
      %v4527 = vmul.f32 %v4440, %v4487
      %v4528 = vmul.f32 %v4441, %v4487
      %v4529 = vmul.f32 %v4442, %v4487
      %v4530 = vmul.f32 %v4443, %v4487
      %v4531 = vmul.f32 %v4444, %v4487
      %v4532 = vmul.f32 %v4445, %v4487
      %v4533 = vmul.f32 %v4446, %v4487
      %v4534 = vmul.f32 %v4447, %v4487
      %v4535 = vmul.f32 %v4448, %v4487
      %v4536 = vmul.f32 %v4449, %v4487
      %v4537 = vmul.f32 %v4450, %v4487
      %v4538 = vmul.f32 %v4451, %v4487
      %v4539 = vmul.f32 %v4452, %v4487
      %v4540 = vmul.f32 %v4453, %v4487
      %v4541 = vmul.f32 %v4454, %v4487
      %v4542 = vmul.f32 %v4455, %v4487
      %v4543 = vmul.f32 %v4456, %v4487
      %v4544 = vmul.f32 %v4457, %v4487
      %v4545 = vmul.f32 %v4458, %v4487
      %v4546 = vmul.f32 %v4459, %v4487
      %v4547 = vmul.f32 %v4460, %v4487
      %v4548 = vmul.f32 %v4461, %v4487
      %v4549 = vmul.f32 %v4462, %v4487
      %v4550 = vmul.f32 %v4463, %v4487
      %v4551 = vmul.f32 %v4464, %v4487
      %v4552 = vmul.f32 %v4465, %v4487
      %v4553 = vmul.f32 %v4466, %v4487
      %v4554 = vmul.f32 %v4467, %v4487
      %v4555 = vmul.f32 %v4468, %v4487
      %v4556 = vmul.f32 %v4469, %v4487
      %v4557 = vmul.f32 %v4470, %v4487
      %v4558 = vmul.f32 %v4471, %v4487
      %v4559 = vmul.f32 %v4472, %v4487
      %v4560 = vmul.f32 %v4473, %v4487
      %v4561 = vmul.f32 %v4474, %v4487
      %v4562 = vmul.f32 %v4475, %v4487
      %v4563 = vmul.f32 %v4476, %v4487
      %v4564 = vmul.f32 %v4477, %v4487
      %v4565 = vmul.f32 %v4478, %v4487
      %v4566 = vmul.f32 %v4479, %v4487
      %v4567 = vmul.f32 %v4480, %v4487
      %v4568 = vmul.f32 %v4481, %v4487
      %v4569 = vld [vmem:[%s5] sm:$0x1]
      %v4571 = vlaneseq
      %v4572 = vshrl.u32 %v4571, 7
      %v4573 = vsub.s32 0, %v4572
      %v4574 = vrot.slane %v4569, %v4573
      %v4576 = vadd.f32 %v4489, %v4574
      %v4577 = vadd.f32 %v4490, %v4574
      %v4578 = vadd.f32 %v4491, %v4574
      %v4579 = vadd.f32 %v4492, %v4574
      %v4580 = vadd.f32 %v4493, %v4574
      %v4581 = vadd.f32 %v4494, %v4574
      %v4582 = vadd.f32 %v4495, %v4574
      %v4583 = vadd.f32 %v4496, %v4574
      %v4584 = vadd.f32 %v4497, %v4574
      %v4585 = vadd.f32 %v4498, %v4574
      %v4586 = vadd.f32 %v4499, %v4574
      %v4587 = vadd.f32 %v4500, %v4574
      %v4588 = vadd.f32 %v4501, %v4574
      %v4589 = vadd.f32 %v4502, %v4574
      %v4590 = vadd.f32 %v4503, %v4574
      %v4591 = vadd.f32 %v4504, %v4574
      %v4592 = vadd.f32 %v4505, %v4574
      %v4593 = vadd.f32 %v4506, %v4574
      %v4594 = vadd.f32 %v4507, %v4574
      %v4595 = vadd.f32 %v4508, %v4574
      %v4596 = vadd.f32 %v4509, %v4574
      %v4597 = vadd.f32 %v4510, %v4574
      %v4598 = vadd.f32 %v4511, %v4574
      %v4599 = vadd.f32 %v4512, %v4574
      %v4600 = vadd.f32 %v4513, %v4574
      %v4601 = vadd.f32 %v4514, %v4574
      %v4602 = vadd.f32 %v4515, %v4574
      %v4603 = vadd.f32 %v4516, %v4574
      %v4604 = vadd.f32 %v4517, %v4574
      %v4605 = vadd.f32 %v4518, %v4574
      %v4606 = vadd.f32 %v4519, %v4574
      %v4607 = vadd.f32 %v4520, %v4574
      %v4608 = vadd.f32 %v4521, %v4574
      %v4609 = vadd.f32 %v4522, %v4574
      %v4610 = vadd.f32 %v4523, %v4574
      %v4611 = vadd.f32 %v4524, %v4574
      %v4612 = vadd.f32 %v4525, %v4574
      %v4613 = vadd.f32 %v4526, %v4574
      %v4614 = vadd.f32 %v4527, %v4574
      %v4615 = vadd.f32 %v4528, %v4574
      %v4616 = vadd.f32 %v4529, %v4574
      %v4617 = vadd.f32 %v4530, %v4574
      %v4618 = vadd.f32 %v4531, %v4574
      %v4619 = vadd.f32 %v4532, %v4574
      %v4620 = vadd.f32 %v4533, %v4574
      %v4621 = vadd.f32 %v4534, %v4574
      %v4622 = vadd.f32 %v4535, %v4574
      %v4623 = vadd.f32 %v4536, %v4574
      %v4624 = vadd.f32 %v4537, %v4574
      %v4625 = vadd.f32 %v4538, %v4574
      %v4626 = vadd.f32 %v4539, %v4574
      %v4627 = vadd.f32 %v4540, %v4574
      %v4628 = vadd.f32 %v4541, %v4574
      %v4629 = vadd.f32 %v4542, %v4574
      %v4630 = vadd.f32 %v4543, %v4574
      %v4631 = vadd.f32 %v4544, %v4574
      %v4632 = vadd.f32 %v4545, %v4574
      %v4633 = vadd.f32 %v4546, %v4574
      %v4634 = vadd.f32 %v4547, %v4574
      %v4635 = vadd.f32 %v4548, %v4574
      %v4636 = vadd.f32 %v4549, %v4574
      %v4637 = vadd.f32 %v4550, %v4574
      %v4638 = vadd.f32 %v4551, %v4574
      %v4639 = vadd.f32 %v4552, %v4574
      %v4640 = vadd.f32 %v4553, %v4574
      %v4641 = vadd.f32 %v4554, %v4574
      %v4642 = vadd.f32 %v4555, %v4574
      %v4643 = vadd.f32 %v4556, %v4574
      %v4644 = vadd.f32 %v4557, %v4574
      %v4645 = vadd.f32 %v4558, %v4574
      %v4646 = vadd.f32 %v4559, %v4574
      %v4647 = vadd.f32 %v4560, %v4574
      %v4648 = vadd.f32 %v4561, %v4574
      %v4649 = vadd.f32 %v4562, %v4574
      %v4650 = vadd.f32 %v4563, %v4574
      %v4651 = vadd.f32 %v4564, %v4574
      %v4652 = vadd.f32 %v4565, %v4574
      %v4653 = vadd.f32 %v4566, %v4574
      %v4654 = vadd.f32 %v4567, %v4574
      %v4655 = vadd.f32 %v4568, %v4574
      %v4656 = vmax.f32 %v4576, 0.0
      %v4657 = vmax.f32 %v4577, 0.0
      %v4658 = vmax.f32 %v4578, 0.0
      %v4659 = vmax.f32 %v4579, 0.0
      %v4660 = vmax.f32 %v4580, 0.0
      %v4661 = vmax.f32 %v4581, 0.0
      %v4662 = vmax.f32 %v4582, 0.0
      %v4663 = vmax.f32 %v4583, 0.0
      %v4664 = vmax.f32 %v4584, 0.0
      %v4665 = vmax.f32 %v4585, 0.0
      %v4666 = vmax.f32 %v4586, 0.0
      %v4667 = vmax.f32 %v4587, 0.0
      %v4668 = vmax.f32 %v4588, 0.0
      %v4669 = vmax.f32 %v4589, 0.0
      %v4670 = vmax.f32 %v4590, 0.0
      %v4671 = vmax.f32 %v4591, 0.0
      %v4672 = vmax.f32 %v4592, 0.0
      %v4673 = vmax.f32 %v4593, 0.0
      %v4674 = vmax.f32 %v4594, 0.0
      %v4675 = vmax.f32 %v4595, 0.0
      %v4676 = vmax.f32 %v4596, 0.0
      %v4677 = vmax.f32 %v4597, 0.0
      %v4678 = vmax.f32 %v4598, 0.0
      %v4679 = vmax.f32 %v4599, 0.0
      %v4680 = vmax.f32 %v4600, 0.0
      %v4681 = vmax.f32 %v4601, 0.0
      %v4682 = vmax.f32 %v4602, 0.0
      %v4683 = vmax.f32 %v4603, 0.0
      %v4684 = vmax.f32 %v4604, 0.0
      %v4685 = vmax.f32 %v4605, 0.0
      %v4686 = vmax.f32 %v4606, 0.0
      %v4687 = vmax.f32 %v4607, 0.0
      %v4688 = vmax.f32 %v4608, 0.0
      %v4689 = vmax.f32 %v4609, 0.0
      %v4690 = vmax.f32 %v4610, 0.0
      %v4691 = vmax.f32 %v4611, 0.0
      %v4692 = vmax.f32 %v4612, 0.0
      %v4693 = vmax.f32 %v4613, 0.0
      %v4694 = vmax.f32 %v4614, 0.0
      %v4695 = vmax.f32 %v4615, 0.0
      %v4696 = vmax.f32 %v4616, 0.0
      %v4697 = vmax.f32 %v4617, 0.0
      %v4698 = vmax.f32 %v4618, 0.0
      %v4699 = vmax.f32 %v4619, 0.0
      %v4700 = vmax.f32 %v4620, 0.0
      %v4701 = vmax.f32 %v4621, 0.0
      %v4702 = vmax.f32 %v4622, 0.0
      %v4703 = vmax.f32 %v4623, 0.0
      %v4704 = vmax.f32 %v4624, 0.0
      %v4705 = vmax.f32 %v4625, 0.0
      %v4706 = vmax.f32 %v4626, 0.0
      %v4707 = vmax.f32 %v4627, 0.0
      %v4708 = vmax.f32 %v4628, 0.0
      %v4709 = vmax.f32 %v4629, 0.0
      %v4710 = vmax.f32 %v4630, 0.0
      %v4711 = vmax.f32 %v4631, 0.0
      %v4712 = vmax.f32 %v4632, 0.0
      %v4713 = vmax.f32 %v4633, 0.0
      %v4714 = vmax.f32 %v4634, 0.0
      %v4715 = vmax.f32 %v4635, 0.0
      %v4716 = vmax.f32 %v4636, 0.0
      %v4717 = vmax.f32 %v4637, 0.0
      %v4718 = vmax.f32 %v4638, 0.0
      %v4719 = vmax.f32 %v4639, 0.0
      %v4720 = vmax.f32 %v4640, 0.0
      %v4721 = vmax.f32 %v4641, 0.0
      %v4722 = vmax.f32 %v4642, 0.0
      %v4723 = vmax.f32 %v4643, 0.0
      %v4724 = vmax.f32 %v4644, 0.0
      %v4725 = vmax.f32 %v4645, 0.0
      %v4726 = vmax.f32 %v4646, 0.0
      %v4727 = vmax.f32 %v4647, 0.0
      %v4728 = vmax.f32 %v4648, 0.0
      %v4729 = vmax.f32 %v4649, 0.0
      %v4730 = vmax.f32 %v4650, 0.0
      %v4731 = vmax.f32 %v4651, 0.0
      %v4732 = vmax.f32 %v4652, 0.0
      %v4733 = vmax.f32 %v4653, 0.0
      %v4734 = vmax.f32 %v4654, 0.0
      %v4735 = vmax.f32 %v4655, 0.0
      %v4736 = vpack.c.bf16 %v4657, %v4656
      %v4737 = vpack.c.bf16 %v4659, %v4658
      %v4738 = vpack.c.bf16 %v4661, %v4660
      %v4739 = vpack.c.bf16 %v4663, %v4662
      %v4740 = vpack.c.bf16 %v4665, %v4664
      %v4741 = vpack.c.bf16 %v4667, %v4666
      %v4742 = vpack.c.bf16 %v4669, %v4668
      %v4743 = vpack.c.bf16 %v4671, %v4670
      %v4744 = vpack.c.bf16 %v4673, %v4672
      %v4745 = vpack.c.bf16 %v4675, %v4674
      %v4746 = vpack.c.bf16 %v4677, %v4676
      %v4747 = vpack.c.bf16 %v4679, %v4678
      %v4748 = vpack.c.bf16 %v4681, %v4680
      %v4749 = vpack.c.bf16 %v4683, %v4682
      %v4750 = vpack.c.bf16 %v4685, %v4684
      %v4751 = vpack.c.bf16 %v4687, %v4686
      %v4752 = vpack.c.bf16 %v4689, %v4688
      %v4753 = vpack.c.bf16 %v4691, %v4690
      %v4754 = vpack.c.bf16 %v4693, %v4692
      %v4755 = vpack.c.bf16 %v4695, %v4694
      %v4756 = vpack.c.bf16 %v4697, %v4696
      %v4757 = vpack.c.bf16 %v4699, %v4698
      %v4758 = vpack.c.bf16 %v4701, %v4700
      %v4759 = vpack.c.bf16 %v4703, %v4702
      %v4760 = vpack.c.bf16 %v4705, %v4704
      %v4761 = vpack.c.bf16 %v4707, %v4706
      %v4762 = vpack.c.bf16 %v4709, %v4708
      %v4763 = vpack.c.bf16 %v4711, %v4710
      %v4764 = vpack.c.bf16 %v4713, %v4712
      %v4765 = vpack.c.bf16 %v4715, %v4714
      %v4766 = vpack.c.bf16 %v4717, %v4716
      %v4767 = vpack.c.bf16 %v4719, %v4718
      %v4768 = vpack.c.bf16 %v4721, %v4720
      %v4769 = vpack.c.bf16 %v4723, %v4722
      %v4770 = vpack.c.bf16 %v4725, %v4724
      %v4771 = vpack.c.bf16 %v4727, %v4726
      %v4772 = vpack.c.bf16 %v4729, %v4728
      %v4773 = vpack.c.bf16 %v4731, %v4730
      %v4774 = vpack.c.bf16 %v4733, %v4732
      %v4775 = vpack.c.bf16 %v4735, %v4734
      %v4816 = vunpack.c.l.b16 %v4736
      %v4817 = vunpack.c.h.b16 %v4736
      %v4818 = vunpack.c.l.b16 %v4737
      %v4819 = vunpack.c.h.b16 %v4737
      %v4820 = vunpack.c.l.b16 %v4738
      %v4821 = vunpack.c.h.b16 %v4738
      %v4822 = vunpack.c.l.b16 %v4739
      %v4823 = vunpack.c.h.b16 %v4739
      %v4824 = vunpack.c.l.b16 %v4740
      %v4825 = vunpack.c.h.b16 %v4740
      %v4826 = vunpack.c.l.b16 %v4741
      %v4827 = vunpack.c.h.b16 %v4741
      %v4828 = vunpack.c.l.b16 %v4742
      %v4829 = vunpack.c.h.b16 %v4742
      %v4830 = vunpack.c.l.b16 %v4743
      %v4831 = vunpack.c.h.b16 %v4743
      %v4832 = vunpack.c.l.b16 %v4744
      %v4833 = vunpack.c.h.b16 %v4744
      %v4834 = vunpack.c.l.b16 %v4745
      %v4835 = vunpack.c.h.b16 %v4745
      %v4836 = vunpack.c.l.b16 %v4746
      %v4837 = vunpack.c.h.b16 %v4746
      %v4838 = vunpack.c.l.b16 %v4747
      %v4839 = vunpack.c.h.b16 %v4747
      %v4840 = vunpack.c.l.b16 %v4748
      %v4841 = vunpack.c.h.b16 %v4748
      %v4842 = vunpack.c.l.b16 %v4749
      %v4843 = vunpack.c.h.b16 %v4749
      %v4844 = vunpack.c.l.b16 %v4750
      %v4845 = vunpack.c.h.b16 %v4750
      %v4846 = vunpack.c.l.b16 %v4751
      %v4847 = vunpack.c.h.b16 %v4751
      %v4848 = vunpack.c.l.b16 %v4752
      %v4849 = vunpack.c.h.b16 %v4752
      %v4850 = vunpack.c.l.b16 %v4753
      %v4851 = vunpack.c.h.b16 %v4753
      %v4852 = vunpack.c.l.b16 %v4754
      %v4853 = vunpack.c.h.b16 %v4754
      %v4854 = vunpack.c.l.b16 %v4755
      %v4855 = vunpack.c.h.b16 %v4755
      %v4856 = vunpack.c.l.b16 %v4756
      %v4857 = vunpack.c.h.b16 %v4756
      %v4858 = vunpack.c.l.b16 %v4757
      %v4859 = vunpack.c.h.b16 %v4757
      %v4860 = vunpack.c.l.b16 %v4758
      %v4861 = vunpack.c.h.b16 %v4758
      %v4862 = vunpack.c.l.b16 %v4759
      %v4863 = vunpack.c.h.b16 %v4759
      %v4864 = vunpack.c.l.b16 %v4760
      %v4865 = vunpack.c.h.b16 %v4760
      %v4866 = vunpack.c.l.b16 %v4761
      %v4867 = vunpack.c.h.b16 %v4761
      %v4868 = vunpack.c.l.b16 %v4762
      %v4869 = vunpack.c.h.b16 %v4762
      %v4870 = vunpack.c.l.b16 %v4763
      %v4871 = vunpack.c.h.b16 %v4763
      %v4872 = vunpack.c.l.b16 %v4764
      %v4873 = vunpack.c.h.b16 %v4764
      %v4874 = vunpack.c.l.b16 %v4765
      %v4875 = vunpack.c.h.b16 %v4765
      %v4876 = vunpack.c.l.b16 %v4766
      %v4877 = vunpack.c.h.b16 %v4766
      %v4878 = vunpack.c.l.b16 %v4767
      %v4879 = vunpack.c.h.b16 %v4767
      %v4880 = vunpack.c.l.b16 %v4768
      %v4881 = vunpack.c.h.b16 %v4768
      %v4882 = vunpack.c.l.b16 %v4769
      %v4883 = vunpack.c.h.b16 %v4769
      %v4884 = vunpack.c.l.b16 %v4770
      %v4885 = vunpack.c.h.b16 %v4770
      %v4886 = vunpack.c.l.b16 %v4771
      %v4887 = vunpack.c.h.b16 %v4771
      %v4888 = vunpack.c.l.b16 %v4772
      %v4889 = vunpack.c.h.b16 %v4772
      %v4890 = vunpack.c.l.b16 %v4773
      %v4891 = vunpack.c.h.b16 %v4773
      %v4892 = vunpack.c.l.b16 %v4774
      %v4893 = vunpack.c.h.b16 %v4774
      %v4894 = vunpack.c.l.b16 %v4775
      %v4895 = vunpack.c.h.b16 %v4775
      %v4896 = vpack.c.b16 %v4816, %v4816
      %v4897 = vpack.c.b16 %v4817, %v4817
      %v4898 = vpack.c.b16 %v4818, %v4818
      %v4899 = vpack.c.b16 %v4819, %v4819
      %v4900 = vpack.c.b16 %v4820, %v4820
      %v4901 = vpack.c.b16 %v4821, %v4821
      %v4902 = vpack.c.b16 %v4822, %v4822
      %v4903 = vpack.c.b16 %v4823, %v4823
      %v4904 = vpack.c.b16 %v4824, %v4824
      %v4905 = vpack.c.b16 %v4825, %v4825
      %v4906 = vpack.c.b16 %v4826, %v4826
      %v4907 = vpack.c.b16 %v4827, %v4827
      %v4908 = vpack.c.b16 %v4828, %v4828
      %v4909 = vpack.c.b16 %v4829, %v4829
      %v4910 = vpack.c.b16 %v4830, %v4830
      %v4911 = vpack.c.b16 %v4831, %v4831
      %v4912 = vpack.c.b16 %v4832, %v4832
      %v4913 = vpack.c.b16 %v4833, %v4833
      %v4914 = vpack.c.b16 %v4834, %v4834
      %v4915 = vpack.c.b16 %v4835, %v4835
      %v4916 = vpack.c.b16 %v4836, %v4836
      %v4917 = vpack.c.b16 %v4837, %v4837
      %v4918 = vpack.c.b16 %v4838, %v4838
      %v4919 = vpack.c.b16 %v4839, %v4839
      %v4920 = vpack.c.b16 %v4840, %v4840
      %v4921 = vpack.c.b16 %v4841, %v4841
      %v4922 = vpack.c.b16 %v4842, %v4842
      %v4923 = vpack.c.b16 %v4843, %v4843
      %v4924 = vpack.c.b16 %v4844, %v4844
      %v4925 = vpack.c.b16 %v4845, %v4845
      %v4926 = vpack.c.b16 %v4846, %v4846
      %v4927 = vpack.c.b16 %v4847, %v4847
      %v4928 = vpack.c.b16 %v4848, %v4848
      %v4929 = vpack.c.b16 %v4849, %v4849
      %v4930 = vpack.c.b16 %v4850, %v4850
      %v4931 = vpack.c.b16 %v4851, %v4851
      %v4932 = vpack.c.b16 %v4852, %v4852
      %v4933 = vpack.c.b16 %v4853, %v4853
      %v4934 = vpack.c.b16 %v4854, %v4854
      %v4935 = vpack.c.b16 %v4855, %v4855
      %v4936 = vpack.c.b16 %v4856, %v4856
      %v4937 = vpack.c.b16 %v4857, %v4857
      %v4938 = vpack.c.b16 %v4858, %v4858
      %v4939 = vpack.c.b16 %v4859, %v4859
      %v4940 = vpack.c.b16 %v4860, %v4860
      %v4941 = vpack.c.b16 %v4861, %v4861
      %v4942 = vpack.c.b16 %v4862, %v4862
      %v4943 = vpack.c.b16 %v4863, %v4863
      %v4944 = vpack.c.b16 %v4864, %v4864
      %v4945 = vpack.c.b16 %v4865, %v4865
      %v4946 = vpack.c.b16 %v4866, %v4866
      %v4947 = vpack.c.b16 %v4867, %v4867
      %v4948 = vpack.c.b16 %v4868, %v4868
      %v4949 = vpack.c.b16 %v4869, %v4869
      %v4950 = vpack.c.b16 %v4870, %v4870
      %v4951 = vpack.c.b16 %v4871, %v4871
      %v4952 = vpack.c.b16 %v4872, %v4872
      %v4953 = vpack.c.b16 %v4873, %v4873
      %v4954 = vpack.c.b16 %v4874, %v4874
      %v4955 = vpack.c.b16 %v4875, %v4875
      %v4956 = vpack.c.b16 %v4876, %v4876
      %v4957 = vpack.c.b16 %v4877, %v4877
      %v4958 = vpack.c.b16 %v4878, %v4878
      %v4959 = vpack.c.b16 %v4879, %v4879
      %v4960 = vpack.c.b16 %v4880, %v4880
      %v4961 = vpack.c.b16 %v4881, %v4881
      %v4962 = vpack.c.b16 %v4882, %v4882
      %v4963 = vpack.c.b16 %v4883, %v4883
      %v4964 = vpack.c.b16 %v4884, %v4884
      %v4965 = vpack.c.b16 %v4885, %v4885
      %v4966 = vpack.c.b16 %v4886, %v4886
      %v4967 = vpack.c.b16 %v4887, %v4887
      %v4968 = vpack.c.b16 %v4888, %v4888
      %v4969 = vpack.c.b16 %v4889, %v4889
      %v4970 = vpack.c.b16 %v4890, %v4890
      %v4971 = vpack.c.b16 %v4891, %v4891
      %v4972 = vpack.c.b16 %v4892, %v4892
      %v4973 = vpack.c.b16 %v4893, %v4893
      %v4974 = vpack.c.b16 %v4894, %v4894
      %v4975 = vpack.c.b16 %v4895, %v4895
      %5056 = vst [vmem:[#allocation9] sm:$0xf] %v4896
      %5057 = vst [vmem:[#allocation9 + $0x4] sm:$0xf] %v4897
      %5058 = vst [vmem:[#allocation9 + $0x8] sm:$0xf] %v4898
      %5059 = vst [vmem:[#allocation9 + $0xc] sm:$0xf] %v4899
      %5060 = vst [vmem:[#allocation9 + $0x10] sm:$0xf] %v4900
      %5061 = vst [vmem:[#allocation9 + $0x14] sm:$0xf] %v4901
      %5062 = vst [vmem:[#allocation9 + $0x18] sm:$0xf] %v4902
      %5063 = vst [vmem:[#allocation9 + $0x1c] sm:$0xf] %v4903
      %5064 = vst [vmem:[#allocation9 + $0x20] sm:$0xf] %v4904
      %5065 = vst [vmem:[#allocation9 + $0x24] sm:$0xf] %v4905
      %5066 = vst [vmem:[#allocation9 + $0x28] sm:$0xf] %v4906
      %5067 = vst [vmem:[#allocation9 + $0x2c] sm:$0xf] %v4907
      %5068 = vst [vmem:[#allocation9 + $0x30] sm:$0xf] %v4908
      %5069 = vst [vmem:[#allocation9 + $0x34] sm:$0xf] %v4909
      %5070 = vst [vmem:[#allocation9 + $0x38] sm:$0xf] %v4910
      %5071 = vst [vmem:[#allocation9 + $0x3c] sm:$0xf] %v4911
      %5072 = vst [vmem:[#allocation9 + $0x40] sm:$0xf] %v4912
      %5073 = vst [vmem:[#allocation9 + $0x44] sm:$0xf] %v4913
      %5074 = vst [vmem:[#allocation9 + $0x48] sm:$0xf] %v4914
      %5075 = vst [vmem:[#allocation9 + $0x4c] sm:$0xf] %v4915
      %5076 = vst [vmem:[#allocation9 + $0x50] sm:$0xf] %v4916
      %5077 = vst [vmem:[#allocation9 + $0x54] sm:$0xf] %v4917
      %5078 = vst [vmem:[#allocation9 + $0x58] sm:$0xf] %v4918
      %5079 = vst [vmem:[#allocation9 + $0x5c] sm:$0xf] %v4919
      %5080 = vst [vmem:[#allocation9 + $0x60] sm:$0xf] %v4920
      %5081 = vst [vmem:[#allocation9 + $0x64] sm:$0xf] %v4921
      %5082 = vst [vmem:[#allocation9 + $0x68] sm:$0xf] %v4922
      %5083 = vst [vmem:[#allocation9 + $0x6c] sm:$0xf] %v4923
      %5084 = vst [vmem:[#allocation9 + $0x70] sm:$0xf] %v4924
      %5085 = vst [vmem:[#allocation9 + $0x74] sm:$0xf] %v4925
      %5086 = vst [vmem:[#allocation9 + $0x78] sm:$0xf] %v4926
      %5087 = vst [vmem:[#allocation9 + $0x7c] sm:$0xf] %v4927
      %5088 = vst [vmem:[#allocation9 + $0x80] sm:$0xf] %v4928
      %5089 = vst [vmem:[#allocation9 + $0x84] sm:$0xf] %v4929
      %5090 = vst [vmem:[#allocation9 + $0x88] sm:$0xf] %v4930
      %5091 = vst [vmem:[#allocation9 + $0x8c] sm:$0xf] %v4931
      %5092 = vst [vmem:[#allocation9 + $0x90] sm:$0xf] %v4932
      %5093 = vst [vmem:[#allocation9 + $0x94] sm:$0xf] %v4933
      %5094 = vst [vmem:[#allocation9 + $0x98] sm:$0xf] %v4934
      %5095 = vst [vmem:[#allocation9 + $0x9c] sm:$0xf] %v4935
      %5096 = vst [vmem:[#allocation9 + $0xa0] sm:$0xf] %v4936
      %5097 = vst [vmem:[#allocation9 + $0xa4] sm:$0xf] %v4937
      %5098 = vst [vmem:[#allocation9 + $0xa8] sm:$0xf] %v4938
      %5099 = vst [vmem:[#allocation9 + $0xac] sm:$0xf] %v4939
      %5100 = vst [vmem:[#allocation9 + $0xb0] sm:$0xf] %v4940
      %5101 = vst [vmem:[#allocation9 + $0xb4] sm:$0xf] %v4941
      %5102 = vst [vmem:[#allocation9 + $0xb8] sm:$0xf] %v4942
      %5103 = vst [vmem:[#allocation9 + $0xbc] sm:$0xf] %v4943
      %5104 = vst [vmem:[#allocation9 + $0xc0] sm:$0xf] %v4944
      %5105 = vst [vmem:[#allocation9 + $0xc4] sm:$0xf] %v4945
      %5106 = vst [vmem:[#allocation9 + $0xc8] sm:$0xf] %v4946
      %5107 = vst [vmem:[#allocation9 + $0xcc] sm:$0xf] %v4947
      %5108 = vst [vmem:[#allocation9 + $0xd0] sm:$0xf] %v4948
      %5109 = vst [vmem:[#allocation9 + $0xd4] sm:$0xf] %v4949
      %5110 = vst [vmem:[#allocation9 + $0xd8] sm:$0xf] %v4950
      %5111 = vst [vmem:[#allocation9 + $0xdc] sm:$0xf] %v4951
      %5112 = vst [vmem:[#allocation9 + $0xe0] sm:$0xf] %v4952
      %5113 = vst [vmem:[#allocation9 + $0xe4] sm:$0xf] %v4953
      %5114 = vst [vmem:[#allocation9 + $0xe8] sm:$0xf] %v4954
      %5115 = vst [vmem:[#allocation9 + $0xec] sm:$0xf] %v4955
      %5116 = vst [vmem:[#allocation9 + $0xf0] sm:$0xf] %v4956
      %5117 = vst [vmem:[#allocation9 + $0xf4] sm:$0xf] %v4957
      %5118 = vst [vmem:[#allocation9 + $0xf8] sm:$0xf] %v4958
      %5119 = vst [vmem:[#allocation9 + $0xfc] sm:$0xf] %v4959
      %5120 = vst [vmem:[#allocation9 + $0x100] sm:$0xf] %v4960
      %5121 = vst [vmem:[#allocation9 + $0x104] sm:$0xf] %v4961
      %5122 = vst [vmem:[#allocation9 + $0x108] sm:$0xf] %v4962
      %5123 = vst [vmem:[#allocation9 + $0x10c] sm:$0xf] %v4963
      %5124 = vst [vmem:[#allocation9 + $0x110] sm:$0xf] %v4964
      %5125 = vst [vmem:[#allocation9 + $0x114] sm:$0xf] %v4965
      %5126 = vst [vmem:[#allocation9 + $0x118] sm:$0xf] %v4966
      %5127 = vst [vmem:[#allocation9 + $0x11c] sm:$0xf] %v4967
      %5128 = vst [vmem:[#allocation9 + $0x120] sm:$0xf] %v4968
      %5129 = vst [vmem:[#allocation9 + $0x124] sm:$0xf] %v4969
      %5130 = vst [vmem:[#allocation9 + $0x128] sm:$0xf] %v4970
      %5131 = vst [vmem:[#allocation9 + $0x12c] sm:$0xf] %v4971
      %5132 = vst [vmem:[#allocation9 + $0x130] sm:$0xf] %v4972
      %5133 = vst [vmem:[#allocation9 + $0x134] sm:$0xf] %v4973
      %5134 = vst [vmem:[#allocation9 + $0x138] sm:$0xf] %v4974
      %5135 = vst [vmem:[#allocation9 + $0x13c] sm:$0xf] %v4975
    $region45: #{tpu_custom_call.1} parent=1 // pred_fallthru
      _
    // Predicated region
    $region46: #{tpu_custom_call.1} parent=1 // pred_check
      _
    $region47: #{tpu_custom_call.1} parent=1 // pred_check_branch
      %5137 = sbr.rel (0) target = $region49
    $region48: #{tpu_custom_call.1} parent=1 // pred_region
      %s5139 = ssub.s32 5120, 5120
      %5140 = vsyncadd [#allocation5], %s5139
      %s5141 = sshll.u32 [#allocation9], 4
      %s5142 = int_to_ptr.vmem [resolvable:$true] %s5141
      %5147 = dma.vmem_to_hbm [thread:$0]  %s5142, 5120, %s6, [#allocation5], 64, 64, 4
    $region49: #{tpu_custom_call.1} parent=1 // pred_fallthru
      _
    // Predicated region
    $region50: #{tpu_custom_call.1} parent=1 // pred_check
      _
    $region51: #{tpu_custom_call.1} parent=1 // pred_check_branch
      %5149 = sbr.rel (0) target = $region53
    $region52: #{tpu_custom_call.1} parent=1 // pred_region
      %5150 = dma.done [#allocation5], 5120
    $region53: #{tpu_custom_call.1} parent=1 // pred_fallthru
      _
    %5151 = vsyncpa [#allocation4], 1
    %5152 = vsyncpa [#allocation7], 1
    %5153 = vsyncpa [#allocation5], 1

</llo_original>
